<compile_context>
chip_gen: v7x
topology: tpu7x:2x2x1
jax: 0.10.0
libtpu: 0.0.40
codegen_flags: <defaults>
</compile_context>

<pallas_src>
import functools
import numpy as np
import jax
import jax.numpy as jnp
from jax.experimental import pallas as pl
from jax.experimental.pallas import tpu as pltpu

# ---------------- static module config ----------------
NF = 32            # nf (channels)
DLATENT = 32       # dlatent_size
H = W = 4
HW = H * W
HWC = HW * NF      # 512
GAIN = float(np.sqrt(2.0))
USE_WSCALE = True
USE_NOISE = True
USE_PIXEL_NORM = False
USE_INSTANCE_NORM = True
USE_STYLES = True
LRELU_SLOPE = 0.2
IN_EPS = 1e-5      # nn.InstanceNorm2d default eps

# equalized-lr runtime weight multipliers (lrmul = 1)
CONV_WMUL = (GAIN / np.sqrt(NF * 3 * 3)) if USE_WSCALE else 1.0
STYLE_WMUL = (1.0 / np.sqrt(DLATENT)) if USE_WSCALE else 1.0  # StyleMod linear uses gain=1.0

# bf16 MXU operands for the conv / style / noise matmuls (normalization
# projections stay f32).  Kept OFF by default so the strict 2e-3 f32 check
# holds on all generations (review's own caveat: re-validate before enabling).
MXU_BF16 = False


# ---------------- trace-time constants (numpy, built once) ----------------
def _make_conv_map():
    """M[p_in, p_out, ky, kx] = 1 iff output pixel p_out's 3x3 tap (ky,kx) reads
    input pixel p_in (SAME padding: out-of-bounds taps simply never appear)."""
    m = np.zeros((HW, HW, 3, 3), np.float32)
    for ho in range(H):
        for wo in range(W):
            po = ho * W + wo
            for ky in range(3):
                for kx in range(3):
                    hi, wi = ho + ky - 1, wo + kx - 1
                    if 0 <= hi < H and 0 <= wi < W:
                        m[hi * W + wi, po, ky, kx] = 1.0
    return m


CONV_MAP = _make_conv_map()                                          # (HW, HW, 3, 3)
# per-channel spatial mean:  (bs, 512) @ PM -> (bs, 32)
PM_NP = np.tile(np.eye(NF, dtype=np.float32) / HW, (HW, 1))          # (512, 32)
# per-channel broadcast back: (bs, 32) @ PT -> (bs, 512)
PT_NP = np.tile(np.eye(NF, dtype=np.float32), (1, HW))               # (32, 512)


# ---------------- kernel ----------------
def _mm(a, b):
    """Heavy MXU matmul (conv / style / noise); optionally bf16 operands."""
    if MXU_BF16:
        a = a.astype(jnp.bfloat16)
        b = b.astype(jnp.bfloat16)
    return jnp.dot(a, b, preferred_element_type=jnp.float32)


def _mm_f32(a, b):
    """Normalization / broadcast projections: keep f32 operands for exactness."""
    return jnp.dot(a, b, preferred_element_type=jnp.float32)


def _epilogue(x, dlat, noise, nmat, sws, sbs, swb, sbb, pm, pt):
    """LayerEpilogue on the flat (bs, HW*C) layout.
    x:(bs,512) f32, dlat:(bs,D), noise:(bs,HW), nmat:(HW,512) (noise weight folded),
    sws/swb:(D,C), sbs:(1,C) (includes the StyleMod '+1'), sbb:(1,C),
    pm:(512,C) spatial-mean projection, pt:(C,512) channel broadcast."""
    if USE_NOISE:
        x = x + _mm(noise, nmat)                      # noise[b,p] * nw[c] on flat layout
    x = jnp.where(x >= 0.0, x, LRELU_SLOPE * x)       # LeakyReLU(0.2)
    # TODO(synk): PixelNorm (per-pixel across-channel) would need a second
    # projection pair on this flat layout; unused in this configuration.
    if USE_INSTANCE_NORM:
        mu = _mm_f32(x, pm)                           # (bs, C) per-channel spatial mean
        xc = x - _mm_f32(mu, pt)                      # centered
        var = _mm_f32(xc * xc, pm)                    # (bs, C) biased variance
        inv = jax.lax.rsqrt(var + IN_EPS)
        x = xc * _mm_f32(inv, pt)
    if USE_STYLES:
        ys = _mm(dlat, sws) + sbs                     # (bs, C) scale  ('+1' folded into sbs)
        yb = _mm(dlat, swb) + sbb                     # (bs, C) bias
        x = x * _mm_f32(ys, pt) + _mm_f32(yb, pt)
    return x


def input_block_kernel(dlat0_ref, dlat1_ref, n1_ref, n2_ref, const_ref,
                       nm1_ref, sws1_ref, sbs1_ref, swb1_ref, sbb1_ref,
                       nm2_ref, sws2_ref, sbs2_ref, swb2_ref, sbb2_ref,
                       pm_ref, pt_ref, wf_ref, cbf_ref, out_ref):
    bs = out_ref.shape[0]
    pm = pm_ref[...]
    pt = pt_ref[...]

    # const input broadcast over the block (hoisted, single broadcast)
    x = jnp.broadcast_to(const_ref[...], (bs, HWC))

    # ---- LayerEpilogue 1 ----
    x = _epilogue(x, dlat0_ref[...], n1_ref[...], nm1_ref[...],
                  sws1_ref[...], sbs1_ref[...], swb1_ref[...], sbb1_ref[...], pm, pt)

    # ---- EqualizedConv2d 3x3 "same": im2col folded into one (512,512) matrix ----
    x = _mm(x, wf_ref[...]) + cbf_ref[...]            # lane-dense K=N=512 matmul + bias

    # ---- LayerEpilogue 2 ----
    x = _epilogue(x, dlat1_ref[...], n2_ref[...], nm2_ref[...],
                  sws2_ref[...], sbs2_ref[...], swb2_ref[...], sbb2_ref[...], pm, pt)

    out_ref[...] = x.astype(out_ref.dtype)            # (bs, 512) lane-dense store


# ---------------- parameter preparation (pure layout glue, done once) ----------------
def _noise_matrix(nw):
    """R[p, q*C+c] = (p==q) * nw[c]  so  noise(bs,HW) @ R -> noise[b,p]*nw[c]."""
    eye = jnp.eye(HW, dtype=jnp.float32)
    return (eye[:, :, None] * nw.reshape(1, 1, NF)).reshape(HW, HWC)


def _style_params(sw, sb):
    """Split StyleMod linear into scale/bias halves; fold wscale and the '+1'."""
    sws = sw[:, :NF] * STYLE_WMUL
    swb = sw[:, NF:] * STYLE_WMUL
    sbs = sb[:, :NF] + 1.0
    sbb = sb[:, NF:]
    return sws, sbs, swb, sbb


def prepare_params(const_nchw, nw1, nw2, sw1, sb1, sw2, sb2, cw_oihw, cb):
    const_flat = jnp.transpose(const_nchw[0], (1, 2, 0)).reshape(1, HWC)
    nm1 = _noise_matrix(nw1)
    nm2 = _noise_matrix(nw2)
    sws1, sbs1, swb1, sbb1 = _style_params(sw1, sb1)
    sws2, sbs2, swb2, sbb2 = _style_params(sw2, sb2)
    pm = jnp.asarray(PM_NP)
    pt = jnp.asarray(PT_NP)
    # Wfull[p_in*C+ci, p_out*C+co] = CONV_WMUL * w[co, ci, ky, kx] (zero padding baked in)
    wfull = jnp.einsum('pqyx,oiyx->piqo', jnp.asarray(CONV_MAP),
                       cw_oihw * CONV_WMUL).reshape(HWC, HWC)
    cb_flat = jnp.tile(cb.reshape(1, NF), (1, HW))
    return (const_flat, nm1, sws1, sbs1, swb1, sbb1, nm2, sws2, sbs2, swb2, sbb2,
            pm, pt, wfull, cb_flat)


# ---------------- wrapper ----------------
def choose_block_batch(B):
    """Single grid step on single-TensorCore chips (v5e/v6e); two large
    'parallel' steps on v7x (2 TCs). Falls back to one step."""
    try:
        kind = jax.devices()[0].device_kind.lower()
        two_tc = ("v7" in kind) or ("7x" in kind)
    except Exception:
        two_tc = False
    if two_tc and B % 2 == 0 and (B // 2) % 8 == 0:
        return B // 2
    return B


@functools.partial(jax.jit, static_argnames=("block_batch",))
def input_block_forward(dlatents, noise1, noise2, const_flat,
                        nm1, sws1, sbs1, swb1, sbb1,
                        nm2, sws2, sbs2, swb2, sbb2,
                        pm, pt, wfull, cb_flat, *, block_batch):
    B, _, D = dlatents.shape
    bs = block_batch
    assert B % bs == 0, "batch must be divisible by block_batch"

    dlat0 = dlatents[:, 0]                            # (B, D) layout glue
    dlat1 = dlatents[:, 1]

    inv2 = lambda i: (0, 0)                           # grid-invariant operands
    bat2 = lambda i: (i, 0)                           # batch-blocked operands

    out = pl.pallas_call(
        input_block_kernel,
        out_shape=jax.ShapeDtypeStruct((B, HWC), jnp.float32),
        grid_spec=pltpu.PrefetchScalarGridSpec(
            num_scalar_prefetch=0,
            grid=(B // bs,),
            in_specs=[
                pl.BlockSpec((bs, D), bat2),          # dlatents[:, 0]
                pl.BlockSpec((bs, D), bat2),          # dlatents[:, 1]
                pl.BlockSpec((bs, HW), bat2),         # noise 1 (2-D, no trailing 1)
                pl.BlockSpec((bs, HW), bat2),         # noise 2
                pl.BlockSpec((1, HWC), inv2),         # const (flat)
                pl.BlockSpec((HW, HWC), inv2),        # noise-expansion matrix 1
                pl.BlockSpec((D, NF), inv2),          # style scale W 1
                pl.BlockSpec((1, NF), inv2),          # style scale b 1 (+1 folded)
                pl.BlockSpec((D, NF), inv2),          # style bias  W 1
                pl.BlockSpec((1, NF), inv2),          # style bias  b 1
                pl.BlockSpec((HW, HWC), inv2),        # noise-expansion matrix 2
                pl.BlockSpec((D, NF), inv2),          # style scale W 2
                pl.BlockSpec((1, NF), inv2),          # style scale b 2
                pl.BlockSpec((D, NF), inv2),          # style bias  W 2
                pl.BlockSpec((1, NF), inv2),          # style bias  b 2
                pl.BlockSpec((HWC, NF), inv2),        # spatial-mean projection PM
                pl.BlockSpec((NF, HWC), inv2),        # channel broadcast PT
                pl.BlockSpec((HWC, HWC), inv2),       # im2col-folded conv matrix
                pl.BlockSpec((1, HWC), inv2),         # conv bias (flat)
            ],
            out_specs=pl.BlockSpec((bs, HWC), bat2),  # lane-dense (512) output
        ),
        compiler_params=pltpu.CompilerParams(
            dimension_semantics=("parallel",)),
    )(dlat0, dlat1, noise1, noise2, const_flat,
      nm1, sws1, sbs1, swb1, sbb1, nm2, sws2, sbs2, swb2, sbb2,
      pm, pt, wfull, cb_flat)

    return out.reshape(B, HW, NF)                     # NHWC-flat view for the caller


# ---------------- pure-JAX reference (for correctness check) ----------------
def _ref_epilogue(x, dlat, noise, nw, sw, sb):
    c = x.shape[-1]
    if USE_NOISE:
        x = x + noise[:, :, None] * nw[None]
    x = jnp.where(x >= 0, x, LRELU_SLOPE * x)
    if USE_INSTANCE_NORM:
        mu = jnp.mean(x, axis=1, keepdims=True)
        xc = x - mu
        var = jnp.mean(xc * xc, axis=1, keepdims=True)
        x = xc * jax.lax.rsqrt(var + IN_EPS)
    if USE_STYLES:
        style = jnp.matmul(dlat, sw * STYLE_WMUL,
                           precision=jax.lax.Precision.HIGHEST) + sb
        x = x * (style[:, None, :c] + 1.0) + style[:, None, c:]
    return x


def ref_forward(dlatents, const_nchw, noise1, noise2, nw1, nw2,
                sw1, sb1, sw2, sb2, cw_oihw, cb):
    B = dlatents.shape[0]
    const_hwc = jnp.transpose(const_nchw[0], (1, 2, 0)).reshape(HW, NF)
    x = jnp.broadcast_to(const_hwc[None], (B, HW, NF))
    x = _ref_epilogue(x, dlatents[:, 0], noise1, nw1, sw1, sb1)
    x_nchw = x.reshape(B, H, W, NF).transpose(0, 3, 1, 2)
    y = jax.lax.conv_general_dilated(
        x_nchw, cw_oihw * CONV_WMUL, window_strides=(1, 1), padding="SAME",
        dimension_numbers=("NCHW", "OIHW", "NCHW"),
        precision=jax.lax.Precision.HIGHEST)
    y = y + cb.reshape(1, NF, 1, 1)
    x = y.transpose(0, 2, 3, 1).reshape(B, HW, NF)
    x = _ref_epilogue(x, dlatents[:, 1], noise2, nw2, sw2, sb2)
    return x


# ---------------- main ----------------
if __name__ == "__main__":
    B = 16
    key = jax.random.PRNGKey(0)
    ks = jax.random.split(key, 12)

    # module input: dlatents_in_range (B, 2, dlatent_size)
    dlatents = jax.random.normal(ks[0], (B, 2, DLATENT), jnp.float32)

    # parameters (deterministic synthetic init; shapes follow the module __init__)
    const_nchw = jnp.ones((1, NF, H, W), jnp.float32)                # torch.ones(1, nf, 4, 4)
    nw1 = 0.1 * jax.random.normal(ks[1], (1, NF), jnp.float32)       # NoiseLayer weights
    nw2 = 0.1 * jax.random.normal(ks[2], (1, NF), jnp.float32)
    sw1 = jax.random.normal(ks[3], (DLATENT, 2 * NF), jnp.float32)   # StyleMod linear (in, out)
    sb1 = 0.1 * jax.random.normal(ks[4], (1, 2 * NF), jnp.float32)
    sw2 = jax.random.normal(ks[5], (DLATENT, 2 * NF), jnp.float32)
    sb2 = 0.1 * jax.random.normal(ks[6], (1, 2 * NF), jnp.float32)
    cw_oihw = jax.random.normal(ks[7], (NF, NF, 3, 3), jnp.float32)  # EqualizedConv2d weight
    cb = 0.1 * jax.random.normal(ks[8], (1, NF), jnp.float32)        # conv bias

    # per-forward noise (torch.randn inside NoiseLayer; supplied explicitly, 2-D)
    noise1 = jax.random.normal(ks[9], (B, HW), jnp.float32)
    noise2 = jax.random.normal(ks[10], (B, HW), jnp.float32)

    params = prepare_params(const_nchw, nw1, nw2, sw1, sb1, sw2, sb2, cw_oihw, cb)
    bs = choose_block_batch(B)

    out = input_block_forward(dlatents, noise1, noise2, *params, block_batch=bs)
    out = jax.block_until_ready(out)

    ref = ref_forward(dlatents, const_nchw, noise1, noise2, nw1, nw2,
                      sw1, sb1, sw2, sb2, cw_oihw, cb)
    tol = 2e-2 if MXU_BF16 else 2e-3
    np.testing.assert_allclose(np.asarray(out), np.asarray(ref), rtol=tol, atol=tol)

    print("KERNEL_OK")
</pallas_src>

<mosaic_0001>
module attributes {stable_mosaic.version = 11 : i64} {
  func.func @input_block_kernel(%arg0: i32, %arg1: memref<16x32xf32, #tpu.memory_space<vmem>>, %arg2: memref<16x32xf32, #tpu.memory_space<vmem>>, %arg3: memref<16x16xf32, #tpu.memory_space<vmem>>, %arg4: memref<16x16xf32, #tpu.memory_space<vmem>>, %arg5: memref<1x512xf32, #tpu.memory_space<vmem>>, %arg6: memref<16x512xf32, #tpu.memory_space<vmem>>, %arg7: memref<32x32xf32, #tpu.memory_space<vmem>>, %arg8: memref<1x32xf32, #tpu.memory_space<vmem>>, %arg9: memref<32x32xf32, #tpu.memory_space<vmem>>, %arg10: memref<1x32xf32, #tpu.memory_space<vmem>>, %arg11: memref<16x512xf32, #tpu.memory_space<vmem>>, %arg12: memref<32x32xf32, #tpu.memory_space<vmem>>, %arg13: memref<1x32xf32, #tpu.memory_space<vmem>>, %arg14: memref<32x32xf32, #tpu.memory_space<vmem>>, %arg15: memref<1x32xf32, #tpu.memory_space<vmem>>, %arg16: memref<512x32xf32, #tpu.memory_space<vmem>>, %arg17: memref<32x512xf32, #tpu.memory_space<vmem>>, %arg18: memref<512x512xf32, #tpu.memory_space<vmem>>, %arg19: memref<1x512xf32, #tpu.memory_space<vmem>>, %arg20: memref<16x512xf32, #tpu.memory_space<vmem>>) attributes {dimension_semantics = [#tpu.dimension_semantics<parallel>], iteration_bounds = array<i64: 1>, scalar_prefetch = 0 : i64, scratch_operands = 0 : i64, tpu.core_type = #tpu.core_type<tc>, window_params = [{transform_indices = @transform_0, window_bounds = array<i64: 16, 32>}, {transform_indices = @transform_1, window_bounds = array<i64: 16, 32>}, {transform_indices = @transform_2, window_bounds = array<i64: 16, 16>}, {transform_indices = @transform_3, window_bounds = array<i64: 16, 16>}, {pipeline_mode = #tpu.pipeline_mode<synchronous>, transform_indices = @transform_4, window_bounds = array<i64: 1, 512>}, {pipeline_mode = #tpu.pipeline_mode<synchronous>, transform_indices = @transform_5, window_bounds = array<i64: 16, 512>}, {pipeline_mode = #tpu.pipeline_mode<synchronous>, transform_indices = @transform_6, window_bounds = array<i64: 32, 32>}, {pipeline_mode = #tpu.pipeline_mode<synchronous>, transform_indices = @transform_7, window_bounds = array<i64: 1, 32>}, {pipeline_mode = #tpu.pipeline_mode<synchronous>, transform_indices = @transform_8, window_bounds = array<i64: 32, 32>}, {pipeline_mode = #tpu.pipeline_mode<synchronous>, transform_indices = @transform_9, window_bounds = array<i64: 1, 32>}, {pipeline_mode = #tpu.pipeline_mode<synchronous>, transform_indices = @transform_10, window_bounds = array<i64: 16, 512>}, {pipeline_mode = #tpu.pipeline_mode<synchronous>, transform_indices = @transform_11, window_bounds = array<i64: 32, 32>}, {pipeline_mode = #tpu.pipeline_mode<synchronous>, transform_indices = @transform_12, window_bounds = array<i64: 1, 32>}, {pipeline_mode = #tpu.pipeline_mode<synchronous>, transform_indices = @transform_13, window_bounds = array<i64: 32, 32>}, {pipeline_mode = #tpu.pipeline_mode<synchronous>, transform_indices = @transform_14, window_bounds = array<i64: 1, 32>}, {pipeline_mode = #tpu.pipeline_mode<synchronous>, transform_indices = @transform_15, window_bounds = array<i64: 512, 32>}, {pipeline_mode = #tpu.pipeline_mode<synchronous>, transform_indices = @transform_16, window_bounds = array<i64: 32, 512>}, {pipeline_mode = #tpu.pipeline_mode<synchronous>, transform_indices = @transform_17, window_bounds = array<i64: 512, 512>}, {pipeline_mode = #tpu.pipeline_mode<synchronous>, transform_indices = @transform_18, window_bounds = array<i64: 1, 512>}, {transform_indices = @transform_19, window_bounds = array<i64: 16, 512>}]} {
    %c0 = arith.constant 0 : index
    %c0_0 = arith.constant 0 : index
    %0 = vector.load %arg16[%c0, %c0_0] : memref<512x32xf32, #tpu.memory_space<vmem>>, vector<512x32xf32>
    %c0_1 = arith.constant 0 : index
    %c0_2 = arith.constant 0 : index
    %1 = vector.load %arg17[%c0_1, %c0_2] : memref<32x512xf32, #tpu.memory_space<vmem>>, vector<32x512xf32>
    %c0_3 = arith.constant 0 : index
    %c0_4 = arith.constant 0 : index
    %2 = vector.load %arg5[%c0_3, %c0_4] : memref<1x512xf32, #tpu.memory_space<vmem>>, vector<1x512xf32>
    %3 = vector.shape_cast %2 : vector<1x512xf32> to vector<1x512xf32>
    %4 = vector.broadcast %3 : vector<1x512xf32> to vector<16x512xf32>
    %c0_5 = arith.constant 0 : index
    %c0_6 = arith.constant 0 : index
    %5 = vector.load %arg1[%c0_5, %c0_6] : memref<16x32xf32, #tpu.memory_space<vmem>>, vector<16x32xf32>
    %c0_7 = arith.constant 0 : index
    %c0_8 = arith.constant 0 : index
    %6 = vector.load %arg3[%c0_7, %c0_8] : memref<16x16xf32, #tpu.memory_space<vmem>>, vector<16x16xf32>
    %c0_9 = arith.constant 0 : index
    %c0_10 = arith.constant 0 : index
    %7 = vector.load %arg6[%c0_9, %c0_10] : memref<16x512xf32, #tpu.memory_space<vmem>>, vector<16x512xf32>
    %c0_11 = arith.constant 0 : index
    %c0_12 = arith.constant 0 : index
    %8 = vector.load %arg7[%c0_11, %c0_12] : memref<32x32xf32, #tpu.memory_space<vmem>>, vector<32x32xf32>
    %c0_13 = arith.constant 0 : index
    %c0_14 = arith.constant 0 : index
    %9 = vector.load %arg8[%c0_13, %c0_14] : memref<1x32xf32, #tpu.memory_space<vmem>>, vector<1x32xf32>
    %c0_15 = arith.constant 0 : index
    %c0_16 = arith.constant 0 : index
    %10 = vector.load %arg9[%c0_15, %c0_16] : memref<32x32xf32, #tpu.memory_space<vmem>>, vector<32x32xf32>
    %c0_17 = arith.constant 0 : index
    %c0_18 = arith.constant 0 : index
    %11 = vector.load %arg10[%c0_17, %c0_18] : memref<1x32xf32, #tpu.memory_space<vmem>>, vector<1x32xf32>
    %cst = arith.constant dense<0.000000e+00> : vector<16x512xf32>
    %12 = tpu.matmul %6, %7, %cst {dimension_numbers = #tpu.dot_dimension_numbers<[1], [0], [0], [1], [0, 0, 1, 1], [], []>} : vector<16x16xf32>, vector<16x512xf32>, vector<16x512xf32> -> vector<16x512xf32>
    %13 = arith.addf %4, %12 : vector<16x512xf32>
    %cst_19 = arith.constant 0.000000e+00 : f32
    %14 = vector.broadcast %cst_19 : f32 to vector<16x512xf32>
    %15 = arith.cmpf oge, %13, %14 : vector<16x512xf32>
    %cst_20 = arith.constant 2.000000e-01 : f32
    %16 = vector.broadcast %cst_20 : f32 to vector<16x512xf32>
    %17 = arith.mulf %16, %13 : vector<16x512xf32>
    %18 = arith.select %15, %13, %17 : vector<16x512xi1>, vector<16x512xf32>
    %cst_21 = arith.constant dense<0.000000e+00> : vector<16x32xf32>
    %19 = tpu.matmul %18, %0, %cst_21 {dimension_numbers = #tpu.dot_dimension_numbers<[1], [0], [0], [1], [0, 0, 1, 1], [], []>} : vector<16x512xf32>, vector<512x32xf32>, vector<16x32xf32> -> vector<16x32xf32>
    %cst_22 = arith.constant dense<0.000000e+00> : vector<16x512xf32>
    %20 = tpu.matmul %19, %1, %cst_22 {dimension_numbers = #tpu.dot_dimension_numbers<[1], [0], [0], [1], [0, 0, 1, 1], [], []>} : vector<16x32xf32>, vector<32x512xf32>, vector<16x512xf32> -> vector<16x512xf32>
    %21 = arith.subf %18, %20 : vector<16x512xf32>
    %22 = arith.mulf %21, %21 : vector<16x512xf32>
    %cst_23 = arith.constant dense<0.000000e+00> : vector<16x32xf32>
    %23 = tpu.matmul %22, %0, %cst_23 {dimension_numbers = #tpu.dot_dimension_numbers<[1], [0], [0], [1], [0, 0, 1, 1], [], []>} : vector<16x512xf32>, vector<512x32xf32>, vector<16x32xf32> -> vector<16x32xf32>
    %cst_24 = arith.constant 9.99999974E-6 : f32
    %24 = vector.broadcast %cst_24 : f32 to vector<16x32xf32>
    %25 = arith.addf %23, %24 : vector<16x32xf32>
    %26 = math.rsqrt %25 : vector<16x32xf32>
    %cst_25 = arith.constant dense<0.000000e+00> : vector<16x512xf32>
    %27 = tpu.matmul %26, %1, %cst_25 {dimension_numbers = #tpu.dot_dimension_numbers<[1], [0], [0], [1], [0, 0, 1, 1], [], []>} : vector<16x32xf32>, vector<32x512xf32>, vector<16x512xf32> -> vector<16x512xf32>
    %28 = arith.mulf %21, %27 : vector<16x512xf32>
    %cst_26 = arith.constant dense<0.000000e+00> : vector<16x32xf32>
    %29 = tpu.matmul %5, %8, %cst_26 {dimension_numbers = #tpu.dot_dimension_numbers<[1], [0], [0], [1], [0, 0, 1, 1], [], []>} : vector<16x32xf32>, vector<32x32xf32>, vector<16x32xf32> -> vector<16x32xf32>
    %30 = vector.broadcast %9 : vector<1x32xf32> to vector<16x32xf32>
    %31 = arith.addf %29, %30 : vector<16x32xf32>
    %cst_27 = arith.constant dense<0.000000e+00> : vector<16x32xf32>
    %32 = tpu.matmul %5, %10, %cst_27 {dimension_numbers = #tpu.dot_dimension_numbers<[1], [0], [0], [1], [0, 0, 1, 1], [], []>} : vector<16x32xf32>, vector<32x32xf32>, vector<16x32xf32> -> vector<16x32xf32>
    %33 = vector.broadcast %11 : vector<1x32xf32> to vector<16x32xf32>
    %34 = arith.addf %32, %33 : vector<16x32xf32>
    %cst_28 = arith.constant dense<0.000000e+00> : vector<16x512xf32>
    %35 = tpu.matmul %31, %1, %cst_28 {dimension_numbers = #tpu.dot_dimension_numbers<[1], [0], [0], [1], [0, 0, 1, 1], [], []>} : vector<16x32xf32>, vector<32x512xf32>, vector<16x512xf32> -> vector<16x512xf32>
    %36 = arith.mulf %28, %35 : vector<16x512xf32>
    %cst_29 = arith.constant dense<0.000000e+00> : vector<16x512xf32>
    %37 = tpu.matmul %34, %1, %cst_29 {dimension_numbers = #tpu.dot_dimension_numbers<[1], [0], [0], [1], [0, 0, 1, 1], [], []>} : vector<16x32xf32>, vector<32x512xf32>, vector<16x512xf32> -> vector<16x512xf32>
    %38 = arith.addf %36, %37 : vector<16x512xf32>
    %c0_30 = arith.constant 0 : index
    %c0_31 = arith.constant 0 : index
    %39 = vector.load %arg18[%c0_30, %c0_31] : memref<512x512xf32, #tpu.memory_space<vmem>>, vector<512x512xf32>
    %cst_32 = arith.constant dense<0.000000e+00> : vector<16x512xf32>
    %40 = tpu.matmul %38, %39, %cst_32 {dimension_numbers = #tpu.dot_dimension_numbers<[1], [0], [0], [1], [0, 0, 1, 1], [], []>} : vector<16x512xf32>, vector<512x512xf32>, vector<16x512xf32> -> vector<16x512xf32>
    %c0_33 = arith.constant 0 : index
    %c0_34 = arith.constant 0 : index
    %41 = vector.load %arg19[%c0_33, %c0_34] : memref<1x512xf32, #tpu.memory_space<vmem>>, vector<1x512xf32>
    %42 = vector.broadcast %41 : vector<1x512xf32> to vector<16x512xf32>
    %43 = arith.addf %40, %42 : vector<16x512xf32>
    %c0_35 = arith.constant 0 : index
    %c0_36 = arith.constant 0 : index
    %44 = vector.load %arg2[%c0_35, %c0_36] : memref<16x32xf32, #tpu.memory_space<vmem>>, vector<16x32xf32>
    %c0_37 = arith.constant 0 : index
    %c0_38 = arith.constant 0 : index
    %45 = vector.load %arg4[%c0_37, %c0_38] : memref<16x16xf32, #tpu.memory_space<vmem>>, vector<16x16xf32>
    %c0_39 = arith.constant 0 : index
    %c0_40 = arith.constant 0 : index
    %46 = vector.load %arg11[%c0_39, %c0_40] : memref<16x512xf32, #tpu.memory_space<vmem>>, vector<16x512xf32>
    %c0_41 = arith.constant 0 : index
    %c0_42 = arith.constant 0 : index
    %47 = vector.load %arg12[%c0_41, %c0_42] : memref<32x32xf32, #tpu.memory_space<vmem>>, vector<32x32xf32>
    %c0_43 = arith.constant 0 : index
    %c0_44 = arith.constant 0 : index
    %48 = vector.load %arg13[%c0_43, %c0_44] : memref<1x32xf32, #tpu.memory_space<vmem>>, vector<1x32xf32>
    %c0_45 = arith.constant 0 : index
    %c0_46 = arith.constant 0 : index
    %49 = vector.load %arg14[%c0_45, %c0_46] : memref<32x32xf32, #tpu.memory_space<vmem>>, vector<32x32xf32>
    %c0_47 = arith.constant 0 : index
    %c0_48 = arith.constant 0 : index
    %50 = vector.load %arg15[%c0_47, %c0_48] : memref<1x32xf32, #tpu.memory_space<vmem>>, vector<1x32xf32>
    %cst_49 = arith.constant dense<0.000000e+00> : vector<16x512xf32>
    %51 = tpu.matmul %45, %46, %cst_49 {dimension_numbers = #tpu.dot_dimension_numbers<[1], [0], [0], [1], [0, 0, 1, 1], [], []>} : vector<16x16xf32>, vector<16x512xf32>, vector<16x512xf32> -> vector<16x512xf32>
    %52 = arith.addf %43, %51 : vector<16x512xf32>
    %cst_50 = arith.constant 0.000000e+00 : f32
    %53 = vector.broadcast %cst_50 : f32 to vector<16x512xf32>
    %54 = arith.cmpf oge, %52, %53 : vector<16x512xf32>
    %cst_51 = arith.constant 2.000000e-01 : f32
    %55 = vector.broadcast %cst_51 : f32 to vector<16x512xf32>
    %56 = arith.mulf %55, %52 : vector<16x512xf32>
    %57 = arith.select %54, %52, %56 : vector<16x512xi1>, vector<16x512xf32>
    %cst_52 = arith.constant dense<0.000000e+00> : vector<16x32xf32>
    %58 = tpu.matmul %57, %0, %cst_52 {dimension_numbers = #tpu.dot_dimension_numbers<[1], [0], [0], [1], [0, 0, 1, 1], [], []>} : vector<16x512xf32>, vector<512x32xf32>, vector<16x32xf32> -> vector<16x32xf32>
    %cst_53 = arith.constant dense<0.000000e+00> : vector<16x512xf32>
    %59 = tpu.matmul %58, %1, %cst_53 {dimension_numbers = #tpu.dot_dimension_numbers<[1], [0], [0], [1], [0, 0, 1, 1], [], []>} : vector<16x32xf32>, vector<32x512xf32>, vector<16x512xf32> -> vector<16x512xf32>
    %60 = arith.subf %57, %59 : vector<16x512xf32>
    %61 = arith.mulf %60, %60 : vector<16x512xf32>
    %cst_54 = arith.constant dense<0.000000e+00> : vector<16x32xf32>
    %62 = tpu.matmul %61, %0, %cst_54 {dimension_numbers = #tpu.dot_dimension_numbers<[1], [0], [0], [1], [0, 0, 1, 1], [], []>} : vector<16x512xf32>, vector<512x32xf32>, vector<16x32xf32> -> vector<16x32xf32>
    %cst_55 = arith.constant 9.99999974E-6 : f32
    %63 = vector.broadcast %cst_55 : f32 to vector<16x32xf32>
    %64 = arith.addf %62, %63 : vector<16x32xf32>
    %65 = math.rsqrt %64 : vector<16x32xf32>
    %cst_56 = arith.constant dense<0.000000e+00> : vector<16x512xf32>
    %66 = tpu.matmul %65, %1, %cst_56 {dimension_numbers = #tpu.dot_dimension_numbers<[1], [0], [0], [1], [0, 0, 1, 1], [], []>} : vector<16x32xf32>, vector<32x512xf32>, vector<16x512xf32> -> vector<16x512xf32>
    %67 = arith.mulf %60, %66 : vector<16x512xf32>
    %cst_57 = arith.constant dense<0.000000e+00> : vector<16x32xf32>
    %68 = tpu.matmul %44, %47, %cst_57 {dimension_numbers = #tpu.dot_dimension_numbers<[1], [0], [0], [1], [0, 0, 1, 1], [], []>} : vector<16x32xf32>, vector<32x32xf32>, vector<16x32xf32> -> vector<16x32xf32>
    %69 = vector.broadcast %48 : vector<1x32xf32> to vector<16x32xf32>
    %70 = arith.addf %68, %69 : vector<16x32xf32>
    %cst_58 = arith.constant dense<0.000000e+00> : vector<16x32xf32>
    %71 = tpu.matmul %44, %49, %cst_58 {dimension_numbers = #tpu.dot_dimension_numbers<[1], [0], [0], [1], [0, 0, 1, 1], [], []>} : vector<16x32xf32>, vector<32x32xf32>, vector<16x32xf32> -> vector<16x32xf32>
    %72 = vector.broadcast %50 : vector<1x32xf32> to vector<16x32xf32>
    %73 = arith.addf %71, %72 : vector<16x32xf32>
    %cst_59 = arith.constant dense<0.000000e+00> : vector<16x512xf32>
    %74 = tpu.matmul %70, %1, %cst_59 {dimension_numbers = #tpu.dot_dimension_numbers<[1], [0], [0], [1], [0, 0, 1, 1], [], []>} : vector<16x32xf32>, vector<32x512xf32>, vector<16x512xf32> -> vector<16x512xf32>
    %75 = arith.mulf %67, %74 : vector<16x512xf32>
    %cst_60 = arith.constant dense<0.000000e+00> : vector<16x512xf32>
    %76 = tpu.matmul %73, %1, %cst_60 {dimension_numbers = #tpu.dot_dimension_numbers<[1], [0], [0], [1], [0, 0, 1, 1], [], []>} : vector<16x32xf32>, vector<32x512xf32>, vector<16x512xf32> -> vector<16x512xf32>
    %77 = arith.addf %75, %76 : vector<16x512xf32>
    %c0_61 = arith.constant 0 : index
    %c0_62 = arith.constant 0 : index
    %78 = vector.load %arg20[%c0_61, %c0_62] : memref<16x512xf32, #tpu.memory_space<vmem>>, vector<16x512xf32>
    tpu.vector_store %arg20[%c0_61, %c0_62], %77 {strides = array<i32>} : memref<16x512xf32, #tpu.memory_space<vmem>>, vector<16x512xf32>,
    return
  }
  func.func @transform_0(%arg0: i32) -> (i32, i32) {
    %c0_i32 = arith.constant 0 : i32
    %c0_i32_0 = arith.constant 0 : i32
    return %arg0, %c0_i32 : i32, i32
  }
  func.func @transform_1(%arg0: i32) -> (i32, i32) {
    %c0_i32 = arith.constant 0 : i32
    %c0_i32_0 = arith.constant 0 : i32
    return %arg0, %c0_i32 : i32, i32
  }
  func.func @transform_2(%arg0: i32) -> (i32, i32) {
    %c0_i32 = arith.constant 0 : i32
    %c0_i32_0 = arith.constant 0 : i32
    return %arg0, %c0_i32 : i32, i32
  }
  func.func @transform_3(%arg0: i32) -> (i32, i32) {
    %c0_i32 = arith.constant 0 : i32
    %c0_i32_0 = arith.constant 0 : i32
    return %arg0, %c0_i32 : i32, i32
  }
  func.func @transform_4(%arg0: i32) -> (i32, i32) {
    %c0_i32 = arith.constant 0 : i32
    %c0_i32_0 = arith.constant 0 : i32
    %c0_i32_1 = arith.constant 0 : i32
    return %c0_i32, %c0_i32_0 : i32, i32
  }
  func.func @transform_5(%arg0: i32) -> (i32, i32) {
    %c0_i32 = arith.constant 0 : i32
    %c0_i32_0 = arith.constant 0 : i32
    %c0_i32_1 = arith.constant 0 : i32
    return %c0_i32, %c0_i32_0 : i32, i32
  }
  func.func @transform_6(%arg0: i32) -> (i32, i32) {
    %c0_i32 = arith.constant 0 : i32
    %c0_i32_0 = arith.constant 0 : i32
    %c0_i32_1 = arith.constant 0 : i32
    return %c0_i32, %c0_i32_0 : i32, i32
  }
  func.func @transform_7(%arg0: i32) -> (i32, i32) {
    %c0_i32 = arith.constant 0 : i32
    %c0_i32_0 = arith.constant 0 : i32
    %c0_i32_1 = arith.constant 0 : i32
    return %c0_i32, %c0_i32_0 : i32, i32
  }
  func.func @transform_8(%arg0: i32) -> (i32, i32) {
    %c0_i32 = arith.constant 0 : i32
    %c0_i32_0 = arith.constant 0 : i32
    %c0_i32_1 = arith.constant 0 : i32
    return %c0_i32, %c0_i32_0 : i32, i32
  }
  func.func @transform_9(%arg0: i32) -> (i32, i32) {
    %c0_i32 = arith.constant 0 : i32
    %c0_i32_0 = arith.constant 0 : i32
    %c0_i32_1 = arith.constant 0 : i32
    return %c0_i32, %c0_i32_0 : i32, i32
  }
  func.func @transform_10(%arg0: i32) -> (i32, i32) {
    %c0_i32 = arith.constant 0 : i32
    %c0_i32_0 = arith.constant 0 : i32
    %c0_i32_1 = arith.constant 0 : i32
    return %c0_i32, %c0_i32_0 : i32, i32
  }
  func.func @transform_11(%arg0: i32) -> (i32, i32) {
    %c0_i32 = arith.constant 0 : i32
    %c0_i32_0 = arith.constant 0 : i32
    %c0_i32_1 = arith.constant 0 : i32
    return %c0_i32, %c0_i32_0 : i32, i32
  }
  func.func @transform_12(%arg0: i32) -> (i32, i32) {
    %c0_i32 = arith.constant 0 : i32
    %c0_i32_0 = arith.constant 0 : i32
    %c0_i32_1 = arith.constant 0 : i32
    return %c0_i32, %c0_i32_0 : i32, i32
  }
  func.func @transform_13(%arg0: i32) -> (i32, i32) {
    %c0_i32 = arith.constant 0 : i32
    %c0_i32_0 = arith.constant 0 : i32
    %c0_i32_1 = arith.constant 0 : i32
    return %c0_i32, %c0_i32_0 : i32, i32
  }
  func.func @transform_14(%arg0: i32) -> (i32, i32) {
    %c0_i32 = arith.constant 0 : i32
    %c0_i32_0 = arith.constant 0 : i32
    %c0_i32_1 = arith.constant 0 : i32
    return %c0_i32, %c0_i32_0 : i32, i32
  }
  func.func @transform_15(%arg0: i32) -> (i32, i32) {
    %c0_i32 = arith.constant 0 : i32
    %c0_i32_0 = arith.constant 0 : i32
    %c0_i32_1 = arith.constant 0 : i32
    return %c0_i32, %c0_i32_0 : i32, i32
  }
  func.func @transform_16(%arg0: i32) -> (i32, i32) {
    %c0_i32 = arith.constant 0 : i32
    %c0_i32_0 = arith.constant 0 : i32
    %c0_i32_1 = arith.constant 0 : i32
    return %c0_i32, %c0_i32_0 : i32, i32
  }
  func.func @transform_17(%arg0: i32) -> (i32, i32) {
    %c0_i32 = arith.constant 0 : i32
    %c0_i32_0 = arith.constant 0 : i32
    %c0_i32_1 = arith.constant 0 : i32
    return %c0_i32, %c0_i32_0 : i32, i32
  }
  func.func @transform_18(%arg0: i32) -> (i32, i32) {
    %c0_i32 = arith.constant 0 : i32
    %c0_i32_0 = arith.constant 0 : i32
    %c0_i32_1 = arith.constant 0 : i32
    return %c0_i32, %c0_i32_0 : i32, i32
  }
  func.func @transform_19(%arg0: i32) -> (i32, i32) {
    %c0_i32 = arith.constant 0 : i32
    %c0_i32_0 = arith.constant 0 : i32
    return %arg0, %c0_i32 : i32, i32
  }
}

</mosaic_0001>

<llo_original>
// kernel: input_block_forward.1
$region0: #{input_block_forward.1}
  #allocation0 [shape = 'u32[]', space=smem, size = 0x4, offset = 0x4, fixed_abs, tag = 'smem constant byte address 0x4 - core index']
  #allocation1 [shape = 'u32[144,128]{1,0:T(1,128)}', space=vmem, size = 0x12000, scoped, tag = 'internal scratch']
  %s0 = inlined_call_operand.vmem [shape: f32[16,32], index: 0, kind: input, shape index: {}]
  %s1 = inlined_call_operand.vmem [shape: f32[16,32], index: 1, kind: input, shape index: {}]
  %s2 = inlined_call_operand.vmem [shape: f32[16,16], index: 2, kind: input, shape index: {}]
  %s3 = inlined_call_operand.vmem [shape: f32[16,16], index: 3, kind: input, shape index: {}]
  %s4 = inlined_call_operand.vmem [shape: f32[1,512], index: 4, kind: input, shape index: {}]
  %s5 = inlined_call_operand.vmem [shape: f32[16,512], index: 5, kind: input, shape index: {}]
  %s6 = inlined_call_operand.vmem [shape: f32[32,32], index: 6, kind: input, shape index: {}]
  %s7 = inlined_call_operand.vmem [shape: f32[1,32], index: 7, kind: input, shape index: {}]
  %s8 = inlined_call_operand.vmem [shape: f32[32,32], index: 8, kind: input, shape index: {}]
  %s9 = inlined_call_operand.vmem [shape: f32[1,32], index: 9, kind: input, shape index: {}]
  %s10 = inlined_call_operand.vmem [shape: f32[16,512], index: 10, kind: input, shape index: {}]
  %s11 = inlined_call_operand.vmem [shape: f32[32,32], index: 11, kind: input, shape index: {}]
  %s12 = inlined_call_operand.vmem [shape: f32[1,32], index: 12, kind: input, shape index: {}]
  %s13 = inlined_call_operand.vmem [shape: f32[32,32], index: 13, kind: input, shape index: {}]
  %s14 = inlined_call_operand.vmem [shape: f32[1,32], index: 14, kind: input, shape index: {}]
  %s15 = inlined_call_operand.vmem [shape: f32[512,32], index: 15, kind: input, shape index: {}]
  %s16 = inlined_call_operand.vmem [shape: f32[32,512], index: 16, kind: input, shape index: {}]
  %s17 = inlined_call_operand.hbm [shape: f32[512,512], index: 17, kind: input, shape index: {}]
  %s18 = inlined_call_operand.vmem [shape: f32[1,512], index: 18, kind: input, shape index: {}]
  %s19 = inlined_call_operand.vmem [shape: f32[16,512], index: 19, kind: output, shape index: {}]
  %s20 = sld [smem:[#allocation0]]
  $region90: #{input_block_forward.1} parent=0
    _
  %s22 = ssub.s32 1, %s20
  %s23 = scalar_select 0, %s22, %s20
  $region1: #{input_block_forward.1} parent=0
    #allocation2 [shape = 'u8[1048576]{0}', space=vmem, size = 0x100000, scoped, tag = 'input window, operand 17, single buffered']
    #allocation3 [shape = 's32[1]{0}', space=sflag, size = 0x4, scoped, tag = 'scoped memory for input_block_forward.1']
    %24 = vsyncpa [#allocation3], 0
    // Predicated region
    $region2: #{input_block_forward.1} parent=1 // pred_check
      _
    $region3: #{input_block_forward.1} parent=1 // pred_check_branch
      %26 = sbr.rel (0) target = $region5
    $region4: #{input_block_forward.1} parent=1 // pred_region
      _
    $region5: #{input_block_forward.1} parent=1 // pred_fallthru
      _
    // Predicated region
    $region6: #{input_block_forward.1} parent=1 // pred_check
      _
    $region7: #{input_block_forward.1} parent=1 // pred_check_branch
      %28 = sbr.rel (0) target = $region9
    $region8: #{input_block_forward.1} parent=1 // pred_region
      _
    $region9: #{input_block_forward.1} parent=1 // pred_fallthru
      _
    // Predicated region
    $region10: #{input_block_forward.1} parent=1 // pred_check
      _
    $region11: #{input_block_forward.1} parent=1 // pred_check_branch
      %30 = sbr.rel (0) target = $region13
    $region12: #{input_block_forward.1} parent=1 // pred_region
      _
    $region13: #{input_block_forward.1} parent=1 // pred_fallthru
      _
    // Predicated region
    $region14: #{input_block_forward.1} parent=1 // pred_check
      _
    $region15: #{input_block_forward.1} parent=1 // pred_check_branch
      %32 = sbr.rel (0) target = $region17
    $region16: #{input_block_forward.1} parent=1 // pred_region
      _
    $region17: #{input_block_forward.1} parent=1 // pred_fallthru
      _
    // Predicated region
    $region18: #{input_block_forward.1} parent=1 // pred_check
      _
    $region19: #{input_block_forward.1} parent=1 // pred_check_branch
      %34 = sbr.rel (0) target = $region21
    $region20: #{input_block_forward.1} parent=1 // pred_region
      _
    $region21: #{input_block_forward.1} parent=1 // pred_fallthru
      _
    // Predicated region
    $region22: #{input_block_forward.1} parent=1 // pred_check
      _
    $region23: #{input_block_forward.1} parent=1 // pred_check_branch
      %36 = sbr.rel (0) target = $region25
    $region24: #{input_block_forward.1} parent=1 // pred_region
      _
    $region25: #{input_block_forward.1} parent=1 // pred_fallthru
      _
    // Predicated region
    $region26: #{input_block_forward.1} parent=1 // pred_check
      _
    $region27: #{input_block_forward.1} parent=1 // pred_check_branch
      %38 = sbr.rel (0) target = $region29
    $region28: #{input_block_forward.1} parent=1 // pred_region
      _
    $region29: #{input_block_forward.1} parent=1 // pred_fallthru
      _
    // Predicated region
    $region30: #{input_block_forward.1} parent=1 // pred_check
      _
    $region31: #{input_block_forward.1} parent=1 // pred_check_branch
      %40 = sbr.rel (0) target = $region33
    $region32: #{input_block_forward.1} parent=1 // pred_region
      _
    $region33: #{input_block_forward.1} parent=1 // pred_fallthru
      _
    // Predicated region
    $region34: #{input_block_forward.1} parent=1 // pred_check
      _
    $region35: #{input_block_forward.1} parent=1 // pred_check_branch
      %42 = sbr.rel (0) target = $region37
    $region36: #{input_block_forward.1} parent=1 // pred_region
      _
    $region37: #{input_block_forward.1} parent=1 // pred_fallthru
      _
    // Predicated region
    $region38: #{input_block_forward.1} parent=1 // pred_check
      _
    $region39: #{input_block_forward.1} parent=1 // pred_check_branch
      %44 = sbr.rel (0) target = $region41
    $region40: #{input_block_forward.1} parent=1 // pred_region
      _
    $region41: #{input_block_forward.1} parent=1 // pred_fallthru
      _
    // Predicated region
    $region42: #{input_block_forward.1} parent=1 // pred_check
      _
    $region43: #{input_block_forward.1} parent=1 // pred_check_branch
      %46 = sbr.rel (0) target = $region45
    $region44: #{input_block_forward.1} parent=1 // pred_region
      _
    $region45: #{input_block_forward.1} parent=1 // pred_fallthru
      _
    // Predicated region
    $region46: #{input_block_forward.1} parent=1 // pred_check
      _
    $region47: #{input_block_forward.1} parent=1 // pred_check_branch
      %48 = sbr.rel (0) target = $region49
    $region48: #{input_block_forward.1} parent=1 // pred_region
      _
    $region49: #{input_block_forward.1} parent=1 // pred_fallthru
      _
    // Predicated region
    $region50: #{input_block_forward.1} parent=1 // pred_check
      _
    $region51: #{input_block_forward.1} parent=1 // pred_check_branch
      %50 = sbr.rel (0) target = $region53
    $region52: #{input_block_forward.1} parent=1 // pred_region
      _
    $region53: #{input_block_forward.1} parent=1 // pred_fallthru
      _
    // Predicated region
    $region54: #{input_block_forward.1} parent=1 // pred_check
      _
    $region55: #{input_block_forward.1} parent=1 // pred_check_branch
      %52 = sbr.rel (0) target = $region57
    $region56: #{input_block_forward.1} parent=1 // pred_region
      _
    $region57: #{input_block_forward.1} parent=1 // pred_fallthru
      _
    // Predicated region
    $region58: #{input_block_forward.1} parent=1 // pred_check
      _
    $region59: #{input_block_forward.1} parent=1 // pred_check_branch
      %54 = sbr.rel (0) target = $region61
    $region60: #{input_block_forward.1} parent=1 // pred_region
      _
    $region61: #{input_block_forward.1} parent=1 // pred_fallthru
      _
    // Predicated region
    $region62: #{input_block_forward.1} parent=1 // pred_check
      _
    $region63: #{input_block_forward.1} parent=1 // pred_check_branch
      %56 = sbr.rel (0) target = $region65
    $region64: #{input_block_forward.1} parent=1 // pred_region
      _
    $region65: #{input_block_forward.1} parent=1 // pred_fallthru
      _
    // Predicated region
    $region66: #{input_block_forward.1} parent=1 // pred_check
      _
    $region67: #{input_block_forward.1} parent=1 // pred_check_branch
      %58 = sbr.rel (0) target = $region69
    $region68: #{input_block_forward.1} parent=1 // pred_region
      _
    $region69: #{input_block_forward.1} parent=1 // pred_fallthru
      _
    // Predicated region
    $region70: #{input_block_forward.1} parent=1 // pred_check
      _
    $region71: #{input_block_forward.1} parent=1 // pred_check_branch
      %60 = sbr.rel (0) target = $region73
    $region72: #{input_block_forward.1} parent=1 // pred_region
      %s62 = ssub.s32 32768, 32768
      %63 = vsyncadd [#allocation3], %s62
      %s64 = sshll.u32 [#allocation2], 4
      %s65 = int_to_ptr.vmem [resolvable:$true] %s64
      %70 = dma.hbm_to_vmem [thread:$0]  %s17, 32768, %s65, [#allocation3], 512, 512, 32
    $region73: #{input_block_forward.1} parent=1 // pred_fallthru
      _
    // Predicated region
    $region74: #{input_block_forward.1} parent=1 // pred_check
      _
    $region75: #{input_block_forward.1} parent=1 // pred_check_branch
      %72 = sbr.rel (0) target = $region77
    $region76: #{input_block_forward.1} parent=1 // pred_region
      _
    $region77: #{input_block_forward.1} parent=1 // pred_fallthru
      _
    // Predicated region
    $region78: #{input_block_forward.1} parent=1 // pred_check
      _
    $region79: #{input_block_forward.1} parent=1 // pred_check_branch
      %74 = sbr.rel (0) target = $region81
    $region80: #{input_block_forward.1} parent=1 // pred_region
      %75 = dma.done [#allocation3], 32768
    $region81: #{input_block_forward.1} parent=1 // pred_fallthru
      _
    %v76 = vld [vmem:[%s15] sm:$0xff]
    %v77 = vld [vmem:[%s15 + $0x8] sm:$0xff]
    %v78 = vld [vmem:[%s15 + $0x10] sm:$0xff]
    %v79 = vld [vmem:[%s15 + $0x18] sm:$0xff]
    %v80 = vld [vmem:[%s15 + $0x20] sm:$0xff]
    %v81 = vld [vmem:[%s15 + $0x28] sm:$0xff]
    %v82 = vld [vmem:[%s15 + $0x30] sm:$0xff]
    %v83 = vld [vmem:[%s15 + $0x38] sm:$0xff]
    %v84 = vld [vmem:[%s15 + $0x40] sm:$0xff]
    %v85 = vld [vmem:[%s15 + $0x48] sm:$0xff]
    %v86 = vld [vmem:[%s15 + $0x50] sm:$0xff]
    %v87 = vld [vmem:[%s15 + $0x58] sm:$0xff]
    %v88 = vld [vmem:[%s15 + $0x60] sm:$0xff]
    %v89 = vld [vmem:[%s15 + $0x68] sm:$0xff]
    %v90 = vld [vmem:[%s15 + $0x70] sm:$0xff]
    %v91 = vld [vmem:[%s15 + $0x78] sm:$0xff]
    %v92 = vld [vmem:[%s15 + $0x80] sm:$0xff]
    %v93 = vld [vmem:[%s15 + $0x88] sm:$0xff]
    %v94 = vld [vmem:[%s15 + $0x90] sm:$0xff]
    %v95 = vld [vmem:[%s15 + $0x98] sm:$0xff]
    %v96 = vld [vmem:[%s15 + $0xa0] sm:$0xff]
    %v97 = vld [vmem:[%s15 + $0xa8] sm:$0xff]
    %v98 = vld [vmem:[%s15 + $0xb0] sm:$0xff]
    %v99 = vld [vmem:[%s15 + $0xb8] sm:$0xff]
    %v100 = vld [vmem:[%s15 + $0xc0] sm:$0xff]
    %v101 = vld [vmem:[%s15 + $0xc8] sm:$0xff]
    %v102 = vld [vmem:[%s15 + $0xd0] sm:$0xff]
    %v103 = vld [vmem:[%s15 + $0xd8] sm:$0xff]
    %v104 = vld [vmem:[%s15 + $0xe0] sm:$0xff]
    %v105 = vld [vmem:[%s15 + $0xe8] sm:$0xff]
    %v106 = vld [vmem:[%s15 + $0xf0] sm:$0xff]
    %v107 = vld [vmem:[%s15 + $0xf8] sm:$0xff]
    %v108 = vld [vmem:[%s15 + $0x100] sm:$0xff]
    %v109 = vld [vmem:[%s15 + $0x108] sm:$0xff]
    %v110 = vld [vmem:[%s15 + $0x110] sm:$0xff]
    %v111 = vld [vmem:[%s15 + $0x118] sm:$0xff]
    %v112 = vld [vmem:[%s15 + $0x120] sm:$0xff]
    %v113 = vld [vmem:[%s15 + $0x128] sm:$0xff]
    %v114 = vld [vmem:[%s15 + $0x130] sm:$0xff]
    %v115 = vld [vmem:[%s15 + $0x138] sm:$0xff]
    %v116 = vld [vmem:[%s15 + $0x140] sm:$0xff]
    %v117 = vld [vmem:[%s15 + $0x148] sm:$0xff]
    %v118 = vld [vmem:[%s15 + $0x150] sm:$0xff]
    %v119 = vld [vmem:[%s15 + $0x158] sm:$0xff]
    %v120 = vld [vmem:[%s15 + $0x160] sm:$0xff]
    %v121 = vld [vmem:[%s15 + $0x168] sm:$0xff]
    %v122 = vld [vmem:[%s15 + $0x170] sm:$0xff]
    %v123 = vld [vmem:[%s15 + $0x178] sm:$0xff]
    %v124 = vld [vmem:[%s15 + $0x180] sm:$0xff]
    %v125 = vld [vmem:[%s15 + $0x188] sm:$0xff]
    %v126 = vld [vmem:[%s15 + $0x190] sm:$0xff]
    %v127 = vld [vmem:[%s15 + $0x198] sm:$0xff]
    %v128 = vld [vmem:[%s15 + $0x1a0] sm:$0xff]
    %v129 = vld [vmem:[%s15 + $0x1a8] sm:$0xff]
    %v130 = vld [vmem:[%s15 + $0x1b0] sm:$0xff]
    %v131 = vld [vmem:[%s15 + $0x1b8] sm:$0xff]
    %v132 = vld [vmem:[%s15 + $0x1c0] sm:$0xff]
    %v133 = vld [vmem:[%s15 + $0x1c8] sm:$0xff]
    %v134 = vld [vmem:[%s15 + $0x1d0] sm:$0xff]
    %v135 = vld [vmem:[%s15 + $0x1d8] sm:$0xff]
    %v136 = vld [vmem:[%s15 + $0x1e0] sm:$0xff]
    %v137 = vld [vmem:[%s15 + $0x1e8] sm:$0xff]
    %v138 = vld [vmem:[%s15 + $0x1f0] sm:$0xff]
    %v139 = vld [vmem:[%s15 + $0x1f8] sm:$0xff]
    %v140 = vld [vmem:[%s16] sm:$0xff]
    %v141 = vld [vmem:[%s16 + $0x8] sm:$0xff]
    %v142 = vld [vmem:[%s16 + $0x10] sm:$0xff]
    %v143 = vld [vmem:[%s16 + $0x18] sm:$0xff]
    %v144 = vld [vmem:[%s16 + $0x20] sm:$0xff]
    %v145 = vld [vmem:[%s16 + $0x28] sm:$0xff]
    %v146 = vld [vmem:[%s16 + $0x30] sm:$0xff]
    %v147 = vld [vmem:[%s16 + $0x38] sm:$0xff]
    %v148 = vld [vmem:[%s16 + $0x40] sm:$0xff]
    %v149 = vld [vmem:[%s16 + $0x48] sm:$0xff]
    %v150 = vld [vmem:[%s16 + $0x50] sm:$0xff]
    %v151 = vld [vmem:[%s16 + $0x58] sm:$0xff]
    %v152 = vld [vmem:[%s16 + $0x60] sm:$0xff]
    %v153 = vld [vmem:[%s16 + $0x68] sm:$0xff]
    %v154 = vld [vmem:[%s16 + $0x70] sm:$0xff]
    %v155 = vld [vmem:[%s16 + $0x78] sm:$0xff]
    %v156 = vld [vmem:[%s4] sm:$0xf]
    %v158 = vlaneseq
    %v159 = vshrl.u32 %v158, 7
    %v160 = vsub.s32 0, %v159
    %v161 = vrot.slane %v156, %v160
    %v162 = vlaneseq
    %v163 = vshrl.u32 %v162, 7
    %v164 = vsub.s32 1, %v163
    %v165 = vrot.slane %v156, %v164
    %v166 = vlaneseq
    %v167 = vshrl.u32 %v166, 7
    %v168 = vsub.s32 2, %v167
    %v169 = vrot.slane %v156, %v168
    %v170 = vlaneseq
    %v171 = vshrl.u32 %v170, 7
    %v172 = vsub.s32 3, %v171
    %v173 = vrot.slane %v156, %v172
    %v178 = vld [vmem:[%s0] sm:$0xff]
    %v179 = vld [vmem:[%s0 + $0x8] sm:$0xff]
    %v180 = vld [vmem:[%s2] sm:$0xff]
    %v181 = vld [vmem:[%s2 + $0x8] sm:$0xff]
    %v182 = vld [vmem:[%s5] sm:$0xff]
    %v183 = vld [vmem:[%s5 + $0x8] sm:$0xff]
    %v184 = vld [vmem:[%s5 + $0x10] sm:$0xff]
    %v185 = vld [vmem:[%s5 + $0x18] sm:$0xff]
    %v186 = vld [vmem:[%s5 + $0x20] sm:$0xff]
    %v187 = vld [vmem:[%s5 + $0x28] sm:$0xff]
    %v188 = vld [vmem:[%s5 + $0x30] sm:$0xff]
    %v189 = vld [vmem:[%s5 + $0x38] sm:$0xff]
    %v190 = vld [vmem:[%s6] sm:$0xff]
    %v191 = vld [vmem:[%s6 + $0x8] sm:$0xff]
    %v192 = vld [vmem:[%s6 + $0x10] sm:$0xff]
    %v193 = vld [vmem:[%s6 + $0x18] sm:$0xff]
    %v194 = vld [vmem:[%s7] sm:$0x1]
    %v195 = vld [vmem:[%s8] sm:$0xff]
    %v196 = vld [vmem:[%s8 + $0x8] sm:$0xff]
    %v197 = vld [vmem:[%s8 + $0x10] sm:$0xff]
    %v198 = vld [vmem:[%s8 + $0x18] sm:$0xff]
    %v199 = vld [vmem:[%s9] sm:$0x1]
    %vm200 = vcmask 130048
    %v202 = vsel %vm200, %v180, 0
    %v205 = vsel %vm200, %v181, 0
    %207 = vmatprep.subr.mxu0 %v183
    %208 = vmatpush1.msra.mxu0 %v182
    %209 = vmatprep.subr.mxu0 %v187
    %210 = vmatpush1.msra.mxu0 %v186
    %211 = vmatprep.subr.mxu0 0.0
    %212 = vmatpush1.msra.mxu0 0.0
    %213 = vmatprep.subr.mxu0 0.0
    %214 = vmatpush1.msra.mxu0 0.0
    %215 = vmatprep.subr.mxu0 0.0
    %216 = vmatpush1.msra.mxu0 0.0
    %217 = vmatprep.subr.mxu0 0.0
    %218 = vmatpush1.msra.mxu0 0.0
    %219 = vmatprep.subr.mxu0 0.0
    %220 = vmatpush1.msra.mxu0 0.0
    %221 = vmatprep.subr.mxu0 0.0
    %222 = vmatpush1.msra.mxu0 0.0
    %223 = vmatprep.subr.mxu0 0.0
    %224 = vmatpush1.msra.mxu0 0.0
    %225 = vmatprep.subr.mxu0 0.0
    %226 = vmatpush1.msra.mxu0 0.0
    %227 = vmatprep.subr.mxu0 0.0
    %228 = vmatpush1.msra.mxu0 0.0
    %229 = vmatprep.subr.mxu0 0.0
    %230 = vmatpush1.msra.mxu0 0.0
    %231 = vmatprep.subr.mxu0 0.0
    %232 = vmatpush1.msra.mxu0 0.0
    %233 = vmatprep.subr.mxu0 0.0
    %234 = vmatpush1.msra.mxu0 0.0
    %235 = vmatprep.subr.mxu0 0.0
    %236 = vmatpush1.msra.mxu0 0.0
    %237 = vmatprep.subr.mxu0 0.0
    %238 = vmatpush1.msra.mxu0 0.0
    %239 = vmatprep.subr.mxu0 0.0
    %240 = vmatpush1.msra.mxu0 0.0
    %241 = vmatprep.subr.mxu0 0.0
    %242 = vmatpush1.msra.mxu0 0.0
    %243 = vmatprep.subr.mxu0 0.0
    %244 = vmatpush1.msra.mxu0 0.0
    %245 = vmatprep.subr.mxu0 0.0
    %246 = vmatpush1.msra.mxu0 0.0
    %247 = vmatprep.subr.mxu0 0.0
    %248 = vmatpush1.msra.mxu0 0.0
    %249 = vmatprep.subr.mxu0 0.0
    %250 = vmatpush1.msra.mxu0 0.0
    %251 = vmatprep.subr.mxu0 0.0
    %252 = vmatpush1.msra.mxu0 0.0
    %253 = vmatprep.subr.mxu0 0.0
    %254 = vmatpush1.msra.mxu0 0.0
    %255 = vmatprep.subr.mxu0 0.0
    %256 = vmatpush1.msra.mxu0 0.0
    %257 = vmatprep.subr.mxu0 0.0
    %258 = vmatpush1.msra.mxu0 0.0
    %259 = vmatprep.subr.mxu0 0.0
    %260 = vmatpush1.msra.mxu0 0.0
    %261 = vmatprep.subr.mxu0 0.0
    %262 = vmatpush1.msra.mxu0 0.0
    %263 = vmatprep.subr.mxu0 0.0
    %264 = vmatpush1.msra.mxu0 0.0
    %265 = vmatprep.subr.mxu0 0.0
    %266 = vmatpush1.msra.mxu0 0.0
    %267 = vmatprep.subr.mxu0 0.0
    %268 = vmatpush1.msra.mxu0 0.0
    %269 = vmatprep.subr.mxu0 0.0
    %270 = vmatpush1.msra.mxu0 0.0
    %271 = vmatprep.mubr.f32.mxu0 0.0
    %272 = vmatmul.mubr.f32.gmra.mrb[0].mxu0 %v202
    %v273 = vpop.f32.mrb[0].mxu0
    %v274 = vadd.f32 0.0, %v273
    %v275 = vpop.f32.mrb[0].mxu0
    %v276 = vadd.f32 0.0, %v275
    %277 = vmatprep.mubr.f32.mxu0 0.0
    %278 = vmatmul.mubr.f32.gmra.mrb[0].mxu0 %v205
    %v279 = vpop.f32.mrb[0].mxu0
    %v280 = vadd.f32 0.0, %v279
    %v281 = vpop.f32.mrb[0].mxu0
    %v282 = vadd.f32 0.0, %v281
    %283 = vdwg.mxu0
    %284 = vmatprep.subr.mxu0 %v185
    %285 = vmatpush1.msra.mxu0 %v184
    %286 = vmatprep.subr.mxu0 %v189
    %287 = vmatpush1.msra.mxu0 %v188
    %288 = vmatprep.subr.mxu0 0.0
    %289 = vmatpush1.msra.mxu0 0.0
    %290 = vmatprep.subr.mxu0 0.0
    %291 = vmatpush1.msra.mxu0 0.0
    %292 = vmatprep.subr.mxu0 0.0
    %293 = vmatpush1.msra.mxu0 0.0
    %294 = vmatprep.subr.mxu0 0.0
    %295 = vmatpush1.msra.mxu0 0.0
    %296 = vmatprep.subr.mxu0 0.0
    %297 = vmatpush1.msra.mxu0 0.0
    %298 = vmatprep.subr.mxu0 0.0
    %299 = vmatpush1.msra.mxu0 0.0
    %300 = vmatprep.subr.mxu0 0.0
    %301 = vmatpush1.msra.mxu0 0.0
    %302 = vmatprep.subr.mxu0 0.0
    %303 = vmatpush1.msra.mxu0 0.0
    %304 = vmatprep.subr.mxu0 0.0
    %305 = vmatpush1.msra.mxu0 0.0
    %306 = vmatprep.subr.mxu0 0.0
    %307 = vmatpush1.msra.mxu0 0.0
    %308 = vmatprep.subr.mxu0 0.0
    %309 = vmatpush1.msra.mxu0 0.0
    %310 = vmatprep.subr.mxu0 0.0
    %311 = vmatpush1.msra.mxu0 0.0
    %312 = vmatprep.subr.mxu0 0.0
    %313 = vmatpush1.msra.mxu0 0.0
    %314 = vmatprep.subr.mxu0 0.0
    %315 = vmatpush1.msra.mxu0 0.0
    %316 = vmatprep.subr.mxu0 0.0
    %317 = vmatpush1.msra.mxu0 0.0
    %318 = vmatprep.subr.mxu0 0.0
    %319 = vmatpush1.msra.mxu0 0.0
    %320 = vmatprep.subr.mxu0 0.0
    %321 = vmatpush1.msra.mxu0 0.0
    %322 = vmatprep.subr.mxu0 0.0
    %323 = vmatpush1.msra.mxu0 0.0
    %324 = vmatprep.subr.mxu0 0.0
    %325 = vmatpush1.msra.mxu0 0.0
    %326 = vmatprep.subr.mxu0 0.0
    %327 = vmatpush1.msra.mxu0 0.0
    %328 = vmatprep.subr.mxu0 0.0
    %329 = vmatpush1.msra.mxu0 0.0
    %330 = vmatprep.subr.mxu0 0.0
    %331 = vmatpush1.msra.mxu0 0.0
    %332 = vmatprep.subr.mxu0 0.0
    %333 = vmatpush1.msra.mxu0 0.0
    %334 = vmatprep.subr.mxu0 0.0
    %335 = vmatpush1.msra.mxu0 0.0
    %336 = vmatprep.subr.mxu0 0.0
    %337 = vmatpush1.msra.mxu0 0.0
    %338 = vmatprep.subr.mxu0 0.0
    %339 = vmatpush1.msra.mxu0 0.0
    %340 = vmatprep.subr.mxu0 0.0
    %341 = vmatpush1.msra.mxu0 0.0
    %342 = vmatprep.subr.mxu0 0.0
    %343 = vmatpush1.msra.mxu0 0.0
    %344 = vmatprep.subr.mxu0 0.0
    %345 = vmatpush1.msra.mxu0 0.0
    %346 = vmatprep.subr.mxu0 0.0
    %347 = vmatpush1.msra.mxu0 0.0
    %348 = vmatprep.mubr.f32.mxu0 0.0
    %349 = vmatmul.mubr.f32.gmra.mrb[0].mxu0 %v202
    %v350 = vpop.f32.mrb[0].mxu0
    %v351 = vadd.f32 0.0, %v350
    %v352 = vpop.f32.mrb[0].mxu0
    %v353 = vadd.f32 0.0, %v352
    %354 = vmatprep.mubr.f32.mxu0 0.0
    %355 = vmatmul.mubr.f32.gmra.mrb[0].mxu0 %v205
    %v356 = vpop.f32.mrb[0].mxu0
    %v357 = vadd.f32 0.0, %v356
    %v358 = vpop.f32.mrb[0].mxu0
    %v359 = vadd.f32 0.0, %v358
    %360 = vdwg.mxu0
    %v361 = vadd.f32 %v161, %v274
    %v362 = vadd.f32 %v165, %v276
    %v363 = vadd.f32 %v169, %v351
    %v364 = vadd.f32 %v173, %v353
    %v365 = vadd.f32 %v161, %v280
    %v366 = vadd.f32 %v165, %v282
    %v367 = vadd.f32 %v169, %v357
    %v368 = vadd.f32 %v173, %v359
    %vm369 = vcmp.ge.f32.partialorder %v361, 0.0
    %vm370 = vcmp.ge.f32.partialorder %v362, 0.0
    %vm371 = vcmp.ge.f32.partialorder %v363, 0.0
    %vm372 = vcmp.ge.f32.partialorder %v364, 0.0
    %vm373 = vcmp.ge.f32.partialorder %v365, 0.0
    %vm374 = vcmp.ge.f32.partialorder %v366, 0.0
    %vm375 = vcmp.ge.f32.partialorder %v367, 0.0
    %vm376 = vcmp.ge.f32.partialorder %v368, 0.0
    %v377 = vmul.f32 %v361, 0.2
    %v378 = vmul.f32 %v362, 0.2
    %v379 = vmul.f32 %v363, 0.2
    %v380 = vmul.f32 %v364, 0.2
    %v381 = vmul.f32 %v365, 0.2
    %v382 = vmul.f32 %v366, 0.2
    %v383 = vmul.f32 %v367, 0.2
    %v384 = vmul.f32 %v368, 0.2
    %v385 = vsel %vm369, %v361, %v377
    %v386 = vsel %vm370, %v362, %v378
    %v387 = vsel %vm371, %v363, %v379
    %v388 = vsel %vm372, %v364, %v380
    %v389 = vsel %vm373, %v365, %v381
    %v390 = vsel %vm374, %v366, %v382
    %v391 = vsel %vm375, %v367, %v383
    %v392 = vsel %vm376, %v368, %v384
    %393 = vmatprep.subr.mxu0 0.0
    %394 = vmatpush1.msra.mxu0 %v76
    %395 = vmatprep.subr.mxu0 0.0
    %396 = vmatpush1.msra.mxu0 %v77
    %397 = vmatprep.subr.mxu0 0.0
    %398 = vmatpush1.msra.mxu0 %v78
    %399 = vmatprep.subr.mxu0 0.0
    %400 = vmatpush1.msra.mxu0 %v79
    %401 = vmatprep.subr.mxu0 0.0
    %402 = vmatpush1.msra.mxu0 %v80
    %403 = vmatprep.subr.mxu0 0.0
    %404 = vmatpush1.msra.mxu0 %v81
    %405 = vmatprep.subr.mxu0 0.0
    %406 = vmatpush1.msra.mxu0 %v82
    %407 = vmatprep.subr.mxu0 0.0
    %408 = vmatpush1.msra.mxu0 %v83
    %409 = vmatprep.subr.mxu0 0.0
    %410 = vmatpush1.msra.mxu0 %v84
    %411 = vmatprep.subr.mxu0 0.0
    %412 = vmatpush1.msra.mxu0 %v85
    %413 = vmatprep.subr.mxu0 0.0
    %414 = vmatpush1.msra.mxu0 %v86
    %415 = vmatprep.subr.mxu0 0.0
    %416 = vmatpush1.msra.mxu0 %v87
    %417 = vmatprep.subr.mxu0 0.0
    %418 = vmatpush1.msra.mxu0 %v88
    %419 = vmatprep.subr.mxu0 0.0
    %420 = vmatpush1.msra.mxu0 %v89
    %421 = vmatprep.subr.mxu0 0.0
    %422 = vmatpush1.msra.mxu0 %v90
    %423 = vmatprep.subr.mxu0 0.0
    %424 = vmatpush1.msra.mxu0 %v91
    %425 = vmatprep.subr.mxu0 0.0
    %426 = vmatpush1.msra.mxu0 %v92
    %427 = vmatprep.subr.mxu0 0.0
    %428 = vmatpush1.msra.mxu0 %v93
    %429 = vmatprep.subr.mxu0 0.0
    %430 = vmatpush1.msra.mxu0 %v94
    %431 = vmatprep.subr.mxu0 0.0
    %432 = vmatpush1.msra.mxu0 %v95
    %433 = vmatprep.subr.mxu0 0.0
    %434 = vmatpush1.msra.mxu0 %v96
    %435 = vmatprep.subr.mxu0 0.0
    %436 = vmatpush1.msra.mxu0 %v97
    %437 = vmatprep.subr.mxu0 0.0
    %438 = vmatpush1.msra.mxu0 %v98
    %439 = vmatprep.subr.mxu0 0.0
    %440 = vmatpush1.msra.mxu0 %v99
    %441 = vmatprep.subr.mxu0 0.0
    %442 = vmatpush1.msra.mxu0 %v100
    %443 = vmatprep.subr.mxu0 0.0
    %444 = vmatpush1.msra.mxu0 %v101
    %445 = vmatprep.subr.mxu0 0.0
    %446 = vmatpush1.msra.mxu0 %v102
    %447 = vmatprep.subr.mxu0 0.0
    %448 = vmatpush1.msra.mxu0 %v103
    %449 = vmatprep.subr.mxu0 0.0
    %450 = vmatpush1.msra.mxu0 %v104
    %451 = vmatprep.subr.mxu0 0.0
    %452 = vmatpush1.msra.mxu0 %v105
    %453 = vmatprep.subr.mxu0 0.0
    %454 = vmatpush1.msra.mxu0 %v106
    %455 = vmatprep.subr.mxu0 0.0
    %456 = vmatpush1.msra.mxu0 %v107
    %457 = vmatprep.mubr.f32.mxu0 %v386
    %458 = vmatmul.mubr.f32.gmra.mrb[0].mxu0 %v385
    %v459 = vpop.f32.mrb[0].mxu0
    %v460 = vadd.f32 0.0, %v459
    %v461 = vpop.f32.mrb[0].mxu0
    %462 = vmatprep.mubr.f32.mxu0 %v390
    %463 = vmatmul.mubr.f32.gmra.mrb[0].mxu0 %v389
    %v464 = vpop.f32.mrb[0].mxu0
    %v465 = vadd.f32 0.0, %v464
    %v466 = vpop.f32.mrb[0].mxu0
    %467 = vdwg.mxu0
    %468 = vmatprep.subr.mxu0 0.0
    %469 = vmatpush1.msra.mxu0 %v108
    %470 = vmatprep.subr.mxu0 0.0
    %471 = vmatpush1.msra.mxu0 %v109
    %472 = vmatprep.subr.mxu0 0.0
    %473 = vmatpush1.msra.mxu0 %v110
    %474 = vmatprep.subr.mxu0 0.0
    %475 = vmatpush1.msra.mxu0 %v111
    %476 = vmatprep.subr.mxu0 0.0
    %477 = vmatpush1.msra.mxu0 %v112
    %478 = vmatprep.subr.mxu0 0.0
    %479 = vmatpush1.msra.mxu0 %v113
    %480 = vmatprep.subr.mxu0 0.0
    %481 = vmatpush1.msra.mxu0 %v114
    %482 = vmatprep.subr.mxu0 0.0
    %483 = vmatpush1.msra.mxu0 %v115
    %484 = vmatprep.subr.mxu0 0.0
    %485 = vmatpush1.msra.mxu0 %v116
    %486 = vmatprep.subr.mxu0 0.0
    %487 = vmatpush1.msra.mxu0 %v117
    %488 = vmatprep.subr.mxu0 0.0
    %489 = vmatpush1.msra.mxu0 %v118
    %490 = vmatprep.subr.mxu0 0.0
    %491 = vmatpush1.msra.mxu0 %v119
    %492 = vmatprep.subr.mxu0 0.0
    %493 = vmatpush1.msra.mxu0 %v120
    %494 = vmatprep.subr.mxu0 0.0
    %495 = vmatpush1.msra.mxu0 %v121
    %496 = vmatprep.subr.mxu0 0.0
    %497 = vmatpush1.msra.mxu0 %v122
    %498 = vmatprep.subr.mxu0 0.0
    %499 = vmatpush1.msra.mxu0 %v123
    %500 = vmatprep.subr.mxu0 0.0
    %501 = vmatpush1.msra.mxu0 %v124
    %502 = vmatprep.subr.mxu0 0.0
    %503 = vmatpush1.msra.mxu0 %v125
    %504 = vmatprep.subr.mxu0 0.0
    %505 = vmatpush1.msra.mxu0 %v126
    %506 = vmatprep.subr.mxu0 0.0
    %507 = vmatpush1.msra.mxu0 %v127
    %508 = vmatprep.subr.mxu0 0.0
    %509 = vmatpush1.msra.mxu0 %v128
    %510 = vmatprep.subr.mxu0 0.0
    %511 = vmatpush1.msra.mxu0 %v129
    %512 = vmatprep.subr.mxu0 0.0
    %513 = vmatpush1.msra.mxu0 %v130
    %514 = vmatprep.subr.mxu0 0.0
    %515 = vmatpush1.msra.mxu0 %v131
    %516 = vmatprep.subr.mxu0 0.0
    %517 = vmatpush1.msra.mxu0 %v132
    %518 = vmatprep.subr.mxu0 0.0
    %519 = vmatpush1.msra.mxu0 %v133
    %520 = vmatprep.subr.mxu0 0.0
    %521 = vmatpush1.msra.mxu0 %v134
    %522 = vmatprep.subr.mxu0 0.0
    %523 = vmatpush1.msra.mxu0 %v135
    %524 = vmatprep.subr.mxu0 0.0
    %525 = vmatpush1.msra.mxu0 %v136
    %526 = vmatprep.subr.mxu0 0.0
    %527 = vmatpush1.msra.mxu0 %v137
    %528 = vmatprep.subr.mxu0 0.0
    %529 = vmatpush1.msra.mxu0 %v138
    %530 = vmatprep.subr.mxu0 0.0
    %531 = vmatpush1.msra.mxu0 %v139
    %532 = vmatprep.mubr.f32.mxu0 %v388
    %533 = vmatmul.mubr.f32.gmra.mrb[0].mxu0 %v387
    %v534 = vpop.f32.mrb[0].mxu0
    %v535 = vadd.f32 %v460, %v534
    %v536 = vpop.f32.mrb[0].mxu0
    %537 = vmatprep.mubr.f32.mxu0 %v392
    %538 = vmatmul.mubr.f32.gmra.mrb[0].mxu0 %v391
    %v539 = vpop.f32.mrb[0].mxu0
    %v540 = vadd.f32 %v465, %v539
    %v541 = vpop.f32.mrb[0].mxu0
    %542 = vdwg.mxu0
    %vm543 = vcmask 261120
    %v545 = vsel %vm543, %v535, 0
    %v548 = vsel %vm543, %v540, 0
    %550 = vmatprep.subr.mxu0 %v141
    %551 = vmatpush1.msra.mxu0 %v140
    %552 = vmatprep.subr.mxu0 %v145
    %553 = vmatpush1.msra.mxu0 %v144
    %554 = vmatprep.subr.mxu0 %v149
    %555 = vmatpush1.msra.mxu0 %v148
    %556 = vmatprep.subr.mxu0 %v153
    %557 = vmatpush1.msra.mxu0 %v152
    %558 = vmatprep.subr.mxu0 0.0
    %559 = vmatpush1.msra.mxu0 0.0
    %560 = vmatprep.subr.mxu0 0.0
    %561 = vmatpush1.msra.mxu0 0.0
    %562 = vmatprep.subr.mxu0 0.0
    %563 = vmatpush1.msra.mxu0 0.0
    %564 = vmatprep.subr.mxu0 0.0
    %565 = vmatpush1.msra.mxu0 0.0
    %566 = vmatprep.subr.mxu0 0.0
    %567 = vmatpush1.msra.mxu0 0.0
    %568 = vmatprep.subr.mxu0 0.0
    %569 = vmatpush1.msra.mxu0 0.0
    %570 = vmatprep.subr.mxu0 0.0
    %571 = vmatpush1.msra.mxu0 0.0
    %572 = vmatprep.subr.mxu0 0.0
    %573 = vmatpush1.msra.mxu0 0.0
    %574 = vmatprep.subr.mxu0 0.0
    %575 = vmatpush1.msra.mxu0 0.0
    %576 = vmatprep.subr.mxu0 0.0
    %577 = vmatpush1.msra.mxu0 0.0
    %578 = vmatprep.subr.mxu0 0.0
    %579 = vmatpush1.msra.mxu0 0.0
    %580 = vmatprep.subr.mxu0 0.0
    %581 = vmatpush1.msra.mxu0 0.0
    %582 = vmatprep.subr.mxu0 0.0
    %583 = vmatpush1.msra.mxu0 0.0
    %584 = vmatprep.subr.mxu0 0.0
    %585 = vmatpush1.msra.mxu0 0.0
    %586 = vmatprep.subr.mxu0 0.0
    %587 = vmatpush1.msra.mxu0 0.0
    %588 = vmatprep.subr.mxu0 0.0
    %589 = vmatpush1.msra.mxu0 0.0
    %590 = vmatprep.subr.mxu0 0.0
    %591 = vmatpush1.msra.mxu0 0.0
    %592 = vmatprep.subr.mxu0 0.0
    %593 = vmatpush1.msra.mxu0 0.0
    %594 = vmatprep.subr.mxu0 0.0
    %595 = vmatpush1.msra.mxu0 0.0
    %596 = vmatprep.subr.mxu0 0.0
    %597 = vmatpush1.msra.mxu0 0.0
    %598 = vmatprep.subr.mxu0 0.0
    %599 = vmatpush1.msra.mxu0 0.0
    %600 = vmatprep.subr.mxu0 0.0
    %601 = vmatpush1.msra.mxu0 0.0
    %602 = vmatprep.subr.mxu0 0.0
    %603 = vmatpush1.msra.mxu0 0.0
    %604 = vmatprep.subr.mxu0 0.0
    %605 = vmatpush1.msra.mxu0 0.0
    %606 = vmatprep.subr.mxu0 0.0
    %607 = vmatpush1.msra.mxu0 0.0
    %608 = vmatprep.subr.mxu0 0.0
    %609 = vmatpush1.msra.mxu0 0.0
    %610 = vmatprep.subr.mxu0 0.0
    %611 = vmatpush1.msra.mxu0 0.0
    %612 = vmatprep.subr.mxu0 0.0
    %613 = vmatpush1.msra.mxu0 0.0
    %614 = vmatprep.mubr.f32.mxu0 0.0
    %615 = vmatmul.mubr.f32.gmra.mrb[0].mxu0 %v545
    %v616 = vpop.f32.mrb[0].mxu0
    %v617 = vadd.f32 0.0, %v616
    %v618 = vpop.f32.mrb[0].mxu0
    %v619 = vadd.f32 0.0, %v618
    %620 = vmatprep.mubr.f32.mxu0 0.0
    %621 = vmatmul.mubr.f32.gmra.mrb[0].mxu0 %v548
    %v622 = vpop.f32.mrb[0].mxu0
    %v623 = vadd.f32 0.0, %v622
    %v624 = vpop.f32.mrb[0].mxu0
    %v625 = vadd.f32 0.0, %v624
    %626 = vdwg.mxu0
    %627 = vmatprep.subr.mxu0 %v143
    %628 = vmatpush1.msra.mxu0 %v142
    %629 = vmatprep.subr.mxu0 %v147
    %630 = vmatpush1.msra.mxu0 %v146
    %631 = vmatprep.subr.mxu0 %v151
    %632 = vmatpush1.msra.mxu0 %v150
    %633 = vmatprep.subr.mxu0 %v155
    %634 = vmatpush1.msra.mxu0 %v154
    %635 = vmatprep.subr.mxu0 0.0
    %636 = vmatpush1.msra.mxu0 0.0
    %637 = vmatprep.subr.mxu0 0.0
    %638 = vmatpush1.msra.mxu0 0.0
    %639 = vmatprep.subr.mxu0 0.0
    %640 = vmatpush1.msra.mxu0 0.0
    %641 = vmatprep.subr.mxu0 0.0
    %642 = vmatpush1.msra.mxu0 0.0
    %643 = vmatprep.subr.mxu0 0.0
    %644 = vmatpush1.msra.mxu0 0.0
    %645 = vmatprep.subr.mxu0 0.0
    %646 = vmatpush1.msra.mxu0 0.0
    %647 = vmatprep.subr.mxu0 0.0
    %648 = vmatpush1.msra.mxu0 0.0
    %649 = vmatprep.subr.mxu0 0.0
    %650 = vmatpush1.msra.mxu0 0.0
    %651 = vmatprep.subr.mxu0 0.0
    %652 = vmatpush1.msra.mxu0 0.0
    %653 = vmatprep.subr.mxu0 0.0
    %654 = vmatpush1.msra.mxu0 0.0
    %655 = vmatprep.subr.mxu0 0.0
    %656 = vmatpush1.msra.mxu0 0.0
    %657 = vmatprep.subr.mxu0 0.0
    %658 = vmatpush1.msra.mxu0 0.0
    %659 = vmatprep.subr.mxu0 0.0
    %660 = vmatpush1.msra.mxu0 0.0
    %661 = vmatprep.subr.mxu0 0.0
    %662 = vmatpush1.msra.mxu0 0.0
    %663 = vmatprep.subr.mxu0 0.0
    %664 = vmatpush1.msra.mxu0 0.0
    %665 = vmatprep.subr.mxu0 0.0
    %666 = vmatpush1.msra.mxu0 0.0
    %667 = vmatprep.subr.mxu0 0.0
    %668 = vmatpush1.msra.mxu0 0.0
    %669 = vmatprep.subr.mxu0 0.0
    %670 = vmatpush1.msra.mxu0 0.0
    %671 = vmatprep.subr.mxu0 0.0
    %672 = vmatpush1.msra.mxu0 0.0
    %673 = vmatprep.subr.mxu0 0.0
    %674 = vmatpush1.msra.mxu0 0.0
    %675 = vmatprep.subr.mxu0 0.0
    %676 = vmatpush1.msra.mxu0 0.0
    %677 = vmatprep.subr.mxu0 0.0
    %678 = vmatpush1.msra.mxu0 0.0
    %679 = vmatprep.subr.mxu0 0.0
    %680 = vmatpush1.msra.mxu0 0.0
    %681 = vmatprep.subr.mxu0 0.0
    %682 = vmatpush1.msra.mxu0 0.0
    %683 = vmatprep.subr.mxu0 0.0
    %684 = vmatpush1.msra.mxu0 0.0
    %685 = vmatprep.subr.mxu0 0.0
    %686 = vmatpush1.msra.mxu0 0.0
    %687 = vmatprep.subr.mxu0 0.0
    %688 = vmatpush1.msra.mxu0 0.0
    %689 = vmatprep.subr.mxu0 0.0
    %690 = vmatpush1.msra.mxu0 0.0
    %691 = vmatprep.mubr.f32.mxu0 0.0
    %692 = vmatmul.mubr.f32.gmra.mrb[0].mxu0 %v545
    %v693 = vpop.f32.mrb[0].mxu0
    %v694 = vadd.f32 0.0, %v693
    %v695 = vpop.f32.mrb[0].mxu0
    %v696 = vadd.f32 0.0, %v695
    %697 = vmatprep.mubr.f32.mxu0 0.0
    %698 = vmatmul.mubr.f32.gmra.mrb[0].mxu0 %v548
    %v699 = vpop.f32.mrb[0].mxu0
    %v700 = vadd.f32 0.0, %v699
    %v701 = vpop.f32.mrb[0].mxu0
    %v702 = vadd.f32 0.0, %v701
    %703 = vdwg.mxu0
    %v704 = vsub.f32 %v385, %v617
    %v705 = vsub.f32 %v386, %v619
    %v706 = vsub.f32 %v387, %v694
    %v707 = vsub.f32 %v388, %v696
    %v708 = vsub.f32 %v389, %v623
    %v709 = vsub.f32 %v390, %v625
    %v710 = vsub.f32 %v391, %v700
    %v711 = vsub.f32 %v392, %v702
    %v712 = vmul.f32 %v704, %v704
    %v713 = vmul.f32 %v705, %v705
    %v714 = vmul.f32 %v706, %v706
    %v715 = vmul.f32 %v707, %v707
    %v716 = vmul.f32 %v708, %v708
    %v717 = vmul.f32 %v709, %v709
    %v718 = vmul.f32 %v710, %v710
    %v719 = vmul.f32 %v711, %v711
    %720 = vmatprep.subr.mxu0 0.0
    %721 = vmatpush1.msra.mxu0 %v76
    %722 = vmatprep.subr.mxu0 0.0
    %723 = vmatpush1.msra.mxu0 %v77
    %724 = vmatprep.subr.mxu0 0.0
    %725 = vmatpush1.msra.mxu0 %v78
    %726 = vmatprep.subr.mxu0 0.0
    %727 = vmatpush1.msra.mxu0 %v79
    %728 = vmatprep.subr.mxu0 0.0
    %729 = vmatpush1.msra.mxu0 %v80
    %730 = vmatprep.subr.mxu0 0.0
    %731 = vmatpush1.msra.mxu0 %v81
    %732 = vmatprep.subr.mxu0 0.0
    %733 = vmatpush1.msra.mxu0 %v82
    %734 = vmatprep.subr.mxu0 0.0
    %735 = vmatpush1.msra.mxu0 %v83
    %736 = vmatprep.subr.mxu0 0.0
    %737 = vmatpush1.msra.mxu0 %v84
    %738 = vmatprep.subr.mxu0 0.0
    %739 = vmatpush1.msra.mxu0 %v85
    %740 = vmatprep.subr.mxu0 0.0
    %741 = vmatpush1.msra.mxu0 %v86
    %742 = vmatprep.subr.mxu0 0.0
    %743 = vmatpush1.msra.mxu0 %v87
    %744 = vmatprep.subr.mxu0 0.0
    %745 = vmatpush1.msra.mxu0 %v88
    %746 = vmatprep.subr.mxu0 0.0
    %747 = vmatpush1.msra.mxu0 %v89
    %748 = vmatprep.subr.mxu0 0.0
    %749 = vmatpush1.msra.mxu0 %v90
    %750 = vmatprep.subr.mxu0 0.0
    %751 = vmatpush1.msra.mxu0 %v91
    %752 = vmatprep.subr.mxu0 0.0
    %753 = vmatpush1.msra.mxu0 %v92
    %754 = vmatprep.subr.mxu0 0.0
    %755 = vmatpush1.msra.mxu0 %v93
    %756 = vmatprep.subr.mxu0 0.0
    %757 = vmatpush1.msra.mxu0 %v94
    %758 = vmatprep.subr.mxu0 0.0
    %759 = vmatpush1.msra.mxu0 %v95
    %760 = vmatprep.subr.mxu0 0.0
    %761 = vmatpush1.msra.mxu0 %v96
    %762 = vmatprep.subr.mxu0 0.0
    %763 = vmatpush1.msra.mxu0 %v97
    %764 = vmatprep.subr.mxu0 0.0
    %765 = vmatpush1.msra.mxu0 %v98
    %766 = vmatprep.subr.mxu0 0.0
    %767 = vmatpush1.msra.mxu0 %v99
    %768 = vmatprep.subr.mxu0 0.0
    %769 = vmatpush1.msra.mxu0 %v100
    %770 = vmatprep.subr.mxu0 0.0
    %771 = vmatpush1.msra.mxu0 %v101
    %772 = vmatprep.subr.mxu0 0.0
    %773 = vmatpush1.msra.mxu0 %v102
    %774 = vmatprep.subr.mxu0 0.0
    %775 = vmatpush1.msra.mxu0 %v103
    %776 = vmatprep.subr.mxu0 0.0
    %777 = vmatpush1.msra.mxu0 %v104
    %778 = vmatprep.subr.mxu0 0.0
    %779 = vmatpush1.msra.mxu0 %v105
    %780 = vmatprep.subr.mxu0 0.0
    %781 = vmatpush1.msra.mxu0 %v106
    %782 = vmatprep.subr.mxu0 0.0
    %783 = vmatpush1.msra.mxu0 %v107
    %784 = vmatprep.mubr.f32.mxu0 %v713
    %785 = vmatmul.mubr.f32.gmra.mrb[0].mxu0 %v712
    %v786 = vpop.f32.mrb[0].mxu0
    %v787 = vadd.f32 1e-05, %v786
    %v788 = vpop.f32.mrb[0].mxu0
    %789 = vmatprep.mubr.f32.mxu0 %v717
    %790 = vmatmul.mubr.f32.gmra.mrb[0].mxu0 %v716
    %v791 = vpop.f32.mrb[0].mxu0
    %v792 = vadd.f32 1e-05, %v791
    %v793 = vpop.f32.mrb[0].mxu0
    %794 = vdwg.mxu0
    %795 = vmatprep.subr.mxu0 0.0
    %796 = vmatpush1.msra.mxu0 %v108
    %797 = vmatprep.subr.mxu0 0.0
    %798 = vmatpush1.msra.mxu0 %v109
    %799 = vmatprep.subr.mxu0 0.0
    %800 = vmatpush1.msra.mxu0 %v110
    %801 = vmatprep.subr.mxu0 0.0
    %802 = vmatpush1.msra.mxu0 %v111
    %803 = vmatprep.subr.mxu0 0.0
    %804 = vmatpush1.msra.mxu0 %v112
    %805 = vmatprep.subr.mxu0 0.0
    %806 = vmatpush1.msra.mxu0 %v113
    %807 = vmatprep.subr.mxu0 0.0
    %808 = vmatpush1.msra.mxu0 %v114
    %809 = vmatprep.subr.mxu0 0.0
    %810 = vmatpush1.msra.mxu0 %v115
    %811 = vmatprep.subr.mxu0 0.0
    %812 = vmatpush1.msra.mxu0 %v116
    %813 = vmatprep.subr.mxu0 0.0
    %814 = vmatpush1.msra.mxu0 %v117
    %815 = vmatprep.subr.mxu0 0.0
    %816 = vmatpush1.msra.mxu0 %v118
    %817 = vmatprep.subr.mxu0 0.0
    %818 = vmatpush1.msra.mxu0 %v119
    %819 = vmatprep.subr.mxu0 0.0
    %820 = vmatpush1.msra.mxu0 %v120
    %821 = vmatprep.subr.mxu0 0.0
    %822 = vmatpush1.msra.mxu0 %v121
    %823 = vmatprep.subr.mxu0 0.0
    %824 = vmatpush1.msra.mxu0 %v122
    %825 = vmatprep.subr.mxu0 0.0
    %826 = vmatpush1.msra.mxu0 %v123
    %827 = vmatprep.subr.mxu0 0.0
    %828 = vmatpush1.msra.mxu0 %v124
    %829 = vmatprep.subr.mxu0 0.0
    %830 = vmatpush1.msra.mxu0 %v125
    %831 = vmatprep.subr.mxu0 0.0
    %832 = vmatpush1.msra.mxu0 %v126
    %833 = vmatprep.subr.mxu0 0.0
    %834 = vmatpush1.msra.mxu0 %v127
    %835 = vmatprep.subr.mxu0 0.0
    %836 = vmatpush1.msra.mxu0 %v128
    %837 = vmatprep.subr.mxu0 0.0
    %838 = vmatpush1.msra.mxu0 %v129
    %839 = vmatprep.subr.mxu0 0.0
    %840 = vmatpush1.msra.mxu0 %v130
    %841 = vmatprep.subr.mxu0 0.0
    %842 = vmatpush1.msra.mxu0 %v131
    %843 = vmatprep.subr.mxu0 0.0
    %844 = vmatpush1.msra.mxu0 %v132
    %845 = vmatprep.subr.mxu0 0.0
    %846 = vmatpush1.msra.mxu0 %v133
    %847 = vmatprep.subr.mxu0 0.0
    %848 = vmatpush1.msra.mxu0 %v134
    %849 = vmatprep.subr.mxu0 0.0
    %850 = vmatpush1.msra.mxu0 %v135
    %851 = vmatprep.subr.mxu0 0.0
    %852 = vmatpush1.msra.mxu0 %v136
    %853 = vmatprep.subr.mxu0 0.0
    %854 = vmatpush1.msra.mxu0 %v137
    %855 = vmatprep.subr.mxu0 0.0
    %856 = vmatpush1.msra.mxu0 %v138
    %857 = vmatprep.subr.mxu0 0.0
    %858 = vmatpush1.msra.mxu0 %v139
    %859 = vmatprep.mubr.f32.mxu0 %v715
    %860 = vmatmul.mubr.f32.gmra.mrb[0].mxu0 %v714
    %v861 = vpop.f32.mrb[0].mxu0
    %v862 = vadd.f32 %v787, %v861
    %v863 = vpop.f32.mrb[0].mxu0
    %864 = vmatprep.mubr.f32.mxu0 %v719
    %865 = vmatmul.mubr.f32.gmra.mrb[0].mxu0 %v718
    %v866 = vpop.f32.mrb[0].mxu0
    %v867 = vadd.f32 %v792, %v866
    %v868 = vpop.f32.mrb[0].mxu0
    %869 = vdwg.mxu0
    %v870 = vrsqrt.pop %v862
    %v871 = vrsqrt.pop %v867
    %v873 = vsel %vm543, %v870, 0
    %v876 = vsel %vm543, %v871, 0
    %878 = vmatprep.subr.mxu0 %v141
    %879 = vmatpush1.msra.mxu0 %v140
    %880 = vmatprep.subr.mxu0 %v145
    %881 = vmatpush1.msra.mxu0 %v144
    %882 = vmatprep.subr.mxu0 %v149
    %883 = vmatpush1.msra.mxu0 %v148
    %884 = vmatprep.subr.mxu0 %v153
    %885 = vmatpush1.msra.mxu0 %v152
    %886 = vmatprep.subr.mxu0 0.0
    %887 = vmatpush1.msra.mxu0 0.0
    %888 = vmatprep.subr.mxu0 0.0
    %889 = vmatpush1.msra.mxu0 0.0
    %890 = vmatprep.subr.mxu0 0.0
    %891 = vmatpush1.msra.mxu0 0.0
    %892 = vmatprep.subr.mxu0 0.0
    %893 = vmatpush1.msra.mxu0 0.0
    %894 = vmatprep.subr.mxu0 0.0
    %895 = vmatpush1.msra.mxu0 0.0
    %896 = vmatprep.subr.mxu0 0.0
    %897 = vmatpush1.msra.mxu0 0.0
    %898 = vmatprep.subr.mxu0 0.0
    %899 = vmatpush1.msra.mxu0 0.0
    %900 = vmatprep.subr.mxu0 0.0
    %901 = vmatpush1.msra.mxu0 0.0
    %902 = vmatprep.subr.mxu0 0.0
    %903 = vmatpush1.msra.mxu0 0.0
    %904 = vmatprep.subr.mxu0 0.0
    %905 = vmatpush1.msra.mxu0 0.0
    %906 = vmatprep.subr.mxu0 0.0
    %907 = vmatpush1.msra.mxu0 0.0
    %908 = vmatprep.subr.mxu0 0.0
    %909 = vmatpush1.msra.mxu0 0.0
    %910 = vmatprep.subr.mxu0 0.0
    %911 = vmatpush1.msra.mxu0 0.0
    %912 = vmatprep.subr.mxu0 0.0
    %913 = vmatpush1.msra.mxu0 0.0
    %914 = vmatprep.subr.mxu0 0.0
    %915 = vmatpush1.msra.mxu0 0.0
    %916 = vmatprep.subr.mxu0 0.0
    %917 = vmatpush1.msra.mxu0 0.0
    %918 = vmatprep.subr.mxu0 0.0
    %919 = vmatpush1.msra.mxu0 0.0
    %920 = vmatprep.subr.mxu0 0.0
    %921 = vmatpush1.msra.mxu0 0.0
    %922 = vmatprep.subr.mxu0 0.0
    %923 = vmatpush1.msra.mxu0 0.0
    %924 = vmatprep.subr.mxu0 0.0
    %925 = vmatpush1.msra.mxu0 0.0
    %926 = vmatprep.subr.mxu0 0.0
    %927 = vmatpush1.msra.mxu0 0.0
    %928 = vmatprep.subr.mxu0 0.0
    %929 = vmatpush1.msra.mxu0 0.0
    %930 = vmatprep.subr.mxu0 0.0
    %931 = vmatpush1.msra.mxu0 0.0
    %932 = vmatprep.subr.mxu0 0.0
    %933 = vmatpush1.msra.mxu0 0.0
    %934 = vmatprep.subr.mxu0 0.0
    %935 = vmatpush1.msra.mxu0 0.0
    %936 = vmatprep.subr.mxu0 0.0
    %937 = vmatpush1.msra.mxu0 0.0
    %938 = vmatprep.subr.mxu0 0.0
    %939 = vmatpush1.msra.mxu0 0.0
    %940 = vmatprep.subr.mxu0 0.0
    %941 = vmatpush1.msra.mxu0 0.0
    %942 = vmatprep.mubr.f32.mxu0 0.0
    %943 = vmatmul.mubr.f32.gmra.mrb[0].mxu0 %v873
    %v944 = vpop.f32.mrb[0].mxu0
    %v945 = vadd.f32 0.0, %v944
    %v946 = vpop.f32.mrb[0].mxu0
    %v947 = vadd.f32 0.0, %v946
    %948 = vmatprep.mubr.f32.mxu0 0.0
    %949 = vmatmul.mubr.f32.gmra.mrb[0].mxu0 %v876
    %v950 = vpop.f32.mrb[0].mxu0
    %v951 = vadd.f32 0.0, %v950
    %v952 = vpop.f32.mrb[0].mxu0
    %v953 = vadd.f32 0.0, %v952
    %954 = vdwg.mxu0
    %955 = vmatprep.subr.mxu0 %v143
    %956 = vmatpush1.msra.mxu0 %v142
    %957 = vmatprep.subr.mxu0 %v147
    %958 = vmatpush1.msra.mxu0 %v146
    %959 = vmatprep.subr.mxu0 %v151
    %960 = vmatpush1.msra.mxu0 %v150
    %961 = vmatprep.subr.mxu0 %v155
    %962 = vmatpush1.msra.mxu0 %v154
    %963 = vmatprep.subr.mxu0 0.0
    %964 = vmatpush1.msra.mxu0 0.0
    %965 = vmatprep.subr.mxu0 0.0
    %966 = vmatpush1.msra.mxu0 0.0
    %967 = vmatprep.subr.mxu0 0.0
    %968 = vmatpush1.msra.mxu0 0.0
    %969 = vmatprep.subr.mxu0 0.0
    %970 = vmatpush1.msra.mxu0 0.0
    %971 = vmatprep.subr.mxu0 0.0
    %972 = vmatpush1.msra.mxu0 0.0
    %973 = vmatprep.subr.mxu0 0.0
    %974 = vmatpush1.msra.mxu0 0.0
    %975 = vmatprep.subr.mxu0 0.0
    %976 = vmatpush1.msra.mxu0 0.0
    %977 = vmatprep.subr.mxu0 0.0
    %978 = vmatpush1.msra.mxu0 0.0
    %979 = vmatprep.subr.mxu0 0.0
    %980 = vmatpush1.msra.mxu0 0.0
    %981 = vmatprep.subr.mxu0 0.0
    %982 = vmatpush1.msra.mxu0 0.0
    %983 = vmatprep.subr.mxu0 0.0
    %984 = vmatpush1.msra.mxu0 0.0
    %985 = vmatprep.subr.mxu0 0.0
    %986 = vmatpush1.msra.mxu0 0.0
    %987 = vmatprep.subr.mxu0 0.0
    %988 = vmatpush1.msra.mxu0 0.0
    %989 = vmatprep.subr.mxu0 0.0
    %990 = vmatpush1.msra.mxu0 0.0
    %991 = vmatprep.subr.mxu0 0.0
    %992 = vmatpush1.msra.mxu0 0.0
    %993 = vmatprep.subr.mxu0 0.0
    %994 = vmatpush1.msra.mxu0 0.0
    %995 = vmatprep.subr.mxu0 0.0
    %996 = vmatpush1.msra.mxu0 0.0
    %997 = vmatprep.subr.mxu0 0.0
    %998 = vmatpush1.msra.mxu0 0.0
    %999 = vmatprep.subr.mxu0 0.0
    %1000 = vmatpush1.msra.mxu0 0.0
    %1001 = vmatprep.subr.mxu0 0.0
    %1002 = vmatpush1.msra.mxu0 0.0
    %1003 = vmatprep.subr.mxu0 0.0
    %1004 = vmatpush1.msra.mxu0 0.0
    %1005 = vmatprep.subr.mxu0 0.0
    %1006 = vmatpush1.msra.mxu0 0.0
    %1007 = vmatprep.subr.mxu0 0.0
    %1008 = vmatpush1.msra.mxu0 0.0
    %1009 = vmatprep.subr.mxu0 0.0
    %1010 = vmatpush1.msra.mxu0 0.0
    %1011 = vmatprep.subr.mxu0 0.0
    %1012 = vmatpush1.msra.mxu0 0.0
    %1013 = vmatprep.subr.mxu0 0.0
    %1014 = vmatpush1.msra.mxu0 0.0
    %1015 = vmatprep.subr.mxu0 0.0
    %1016 = vmatpush1.msra.mxu0 0.0
    %1017 = vmatprep.subr.mxu0 0.0
    %1018 = vmatpush1.msra.mxu0 0.0
    %1019 = vmatprep.mubr.f32.mxu0 0.0
    %1020 = vmatmul.mubr.f32.gmra.mrb[0].mxu0 %v873
    %v1021 = vpop.f32.mrb[0].mxu0
    %v1022 = vadd.f32 0.0, %v1021
    %v1023 = vpop.f32.mrb[0].mxu0
    %v1024 = vadd.f32 0.0, %v1023
    %1025 = vmatprep.mubr.f32.mxu0 0.0
    %1026 = vmatmul.mubr.f32.gmra.mrb[0].mxu0 %v876
    %v1027 = vpop.f32.mrb[0].mxu0
    %v1028 = vadd.f32 0.0, %v1027
    %v1029 = vpop.f32.mrb[0].mxu0
    %v1030 = vadd.f32 0.0, %v1029
    %1031 = vdwg.mxu0
    %v1032 = vmul.f32 %v704, %v945
    %v1033 = vmul.f32 %v705, %v947
    %v1034 = vmul.f32 %v706, %v1022
    %v1035 = vmul.f32 %v707, %v1024
    %v1036 = vmul.f32 %v708, %v951
    %v1037 = vmul.f32 %v709, %v953
    %v1038 = vmul.f32 %v710, %v1028
    %v1039 = vmul.f32 %v711, %v1030
    %v1041 = vlaneseq
    %v1042 = vshrl.u32 %v1041, 7
    %v1043 = vsub.s32 0, %v1042
    %v1044 = vrot.slane %v194, %v1043
    %v1047 = vsel %vm543, %v178, 0
    %v1050 = vsel %vm543, %v179, 0
    %1052 = vmatprep.subr.mxu0 0.0
    %1053 = vmatpush1.msra.mxu0 %v190
    %1054 = vmatprep.subr.mxu0 0.0
    %1055 = vmatpush1.msra.mxu0 %v191
    %1056 = vmatprep.subr.mxu0 0.0
    %1057 = vmatpush1.msra.mxu0 %v192
    %1058 = vmatprep.subr.mxu0 0.0
    %1059 = vmatpush1.msra.mxu0 %v193
    %1060 = vmatprep.subr.mxu0 0.0
    %1061 = vmatpush1.msra.mxu0 0.0
    %1062 = vmatprep.subr.mxu0 0.0
    %1063 = vmatpush1.msra.mxu0 0.0
    %1064 = vmatprep.subr.mxu0 0.0
    %1065 = vmatpush1.msra.mxu0 0.0
    %1066 = vmatprep.subr.mxu0 0.0
    %1067 = vmatpush1.msra.mxu0 0.0
    %1068 = vmatprep.subr.mxu0 0.0
    %1069 = vmatpush1.msra.mxu0 0.0
    %1070 = vmatprep.subr.mxu0 0.0
    %1071 = vmatpush1.msra.mxu0 0.0
    %1072 = vmatprep.subr.mxu0 0.0
    %1073 = vmatpush1.msra.mxu0 0.0
    %1074 = vmatprep.subr.mxu0 0.0
    %1075 = vmatpush1.msra.mxu0 0.0
    %1076 = vmatprep.subr.mxu0 0.0
    %1077 = vmatpush1.msra.mxu0 0.0
    %1078 = vmatprep.subr.mxu0 0.0
    %1079 = vmatpush1.msra.mxu0 0.0
    %1080 = vmatprep.subr.mxu0 0.0
    %1081 = vmatpush1.msra.mxu0 0.0
    %1082 = vmatprep.subr.mxu0 0.0
    %1083 = vmatpush1.msra.mxu0 0.0
    %1084 = vmatprep.subr.mxu0 0.0
    %1085 = vmatpush1.msra.mxu0 0.0
    %1086 = vmatprep.subr.mxu0 0.0
    %1087 = vmatpush1.msra.mxu0 0.0
    %1088 = vmatprep.subr.mxu0 0.0
    %1089 = vmatpush1.msra.mxu0 0.0
    %1090 = vmatprep.subr.mxu0 0.0
    %1091 = vmatpush1.msra.mxu0 0.0
    %1092 = vmatprep.subr.mxu0 0.0
    %1093 = vmatpush1.msra.mxu0 0.0
    %1094 = vmatprep.subr.mxu0 0.0
    %1095 = vmatpush1.msra.mxu0 0.0
    %1096 = vmatprep.subr.mxu0 0.0
    %1097 = vmatpush1.msra.mxu0 0.0
    %1098 = vmatprep.subr.mxu0 0.0
    %1099 = vmatpush1.msra.mxu0 0.0
    %1100 = vmatprep.subr.mxu0 0.0
    %1101 = vmatpush1.msra.mxu0 0.0
    %1102 = vmatprep.subr.mxu0 0.0
    %1103 = vmatpush1.msra.mxu0 0.0
    %1104 = vmatprep.subr.mxu0 0.0
    %1105 = vmatpush1.msra.mxu0 0.0
    %1106 = vmatprep.subr.mxu0 0.0
    %1107 = vmatpush1.msra.mxu0 0.0
    %1108 = vmatprep.subr.mxu0 0.0
    %1109 = vmatpush1.msra.mxu0 0.0
    %1110 = vmatprep.subr.mxu0 0.0
    %1111 = vmatpush1.msra.mxu0 0.0
    %1112 = vmatprep.subr.mxu0 0.0
    %1113 = vmatpush1.msra.mxu0 0.0
    %1114 = vmatprep.subr.mxu0 0.0
    %1115 = vmatpush1.msra.mxu0 0.0
    %1116 = vmatprep.mubr.f32.mxu0 0.0
    %1117 = vmatmul.mubr.f32.gmra.mrb[0].mxu0 %v1047
    %v1118 = vpop.f32.mrb[0].mxu0
    %v1119 = vadd.f32 %v1044, %v1118
    %v1120 = vpop.f32.mrb[0].mxu0
    %1121 = vmatprep.mubr.f32.mxu0 0.0
    %1122 = vmatmul.mubr.f32.gmra.mrb[0].mxu0 %v1050
    %v1123 = vpop.f32.mrb[0].mxu0
    %v1124 = vadd.f32 %v1044, %v1123
    %v1125 = vpop.f32.mrb[0].mxu0
    %1126 = vdwg.mxu0
    %v1128 = vlaneseq
    %v1129 = vshrl.u32 %v1128, 7
    %v1130 = vsub.s32 0, %v1129
    %v1131 = vrot.slane %v199, %v1130
    %1133 = vmatprep.subr.mxu0 0.0
    %1134 = vmatpush1.msra.mxu0 %v195
    %1135 = vmatprep.subr.mxu0 0.0
    %1136 = vmatpush1.msra.mxu0 %v196
    %1137 = vmatprep.subr.mxu0 0.0
    %1138 = vmatpush1.msra.mxu0 %v197
    %1139 = vmatprep.subr.mxu0 0.0
    %1140 = vmatpush1.msra.mxu0 %v198
    %1141 = vmatprep.subr.mxu0 0.0
    %1142 = vmatpush1.msra.mxu0 0.0
    %1143 = vmatprep.subr.mxu0 0.0
    %1144 = vmatpush1.msra.mxu0 0.0
    %1145 = vmatprep.subr.mxu0 0.0
    %1146 = vmatpush1.msra.mxu0 0.0
    %1147 = vmatprep.subr.mxu0 0.0
    %1148 = vmatpush1.msra.mxu0 0.0
    %1149 = vmatprep.subr.mxu0 0.0
    %1150 = vmatpush1.msra.mxu0 0.0
    %1151 = vmatprep.subr.mxu0 0.0
    %1152 = vmatpush1.msra.mxu0 0.0
    %1153 = vmatprep.subr.mxu0 0.0
    %1154 = vmatpush1.msra.mxu0 0.0
    %1155 = vmatprep.subr.mxu0 0.0
    %1156 = vmatpush1.msra.mxu0 0.0
    %1157 = vmatprep.subr.mxu0 0.0
    %1158 = vmatpush1.msra.mxu0 0.0
    %1159 = vmatprep.subr.mxu0 0.0
    %1160 = vmatpush1.msra.mxu0 0.0
    %1161 = vmatprep.subr.mxu0 0.0
    %1162 = vmatpush1.msra.mxu0 0.0
    %1163 = vmatprep.subr.mxu0 0.0
    %1164 = vmatpush1.msra.mxu0 0.0
    %1165 = vmatprep.subr.mxu0 0.0
    %1166 = vmatpush1.msra.mxu0 0.0
    %1167 = vmatprep.subr.mxu0 0.0
    %1168 = vmatpush1.msra.mxu0 0.0
    %1169 = vmatprep.subr.mxu0 0.0
    %1170 = vmatpush1.msra.mxu0 0.0
    %1171 = vmatprep.subr.mxu0 0.0
    %1172 = vmatpush1.msra.mxu0 0.0
    %1173 = vmatprep.subr.mxu0 0.0
    %1174 = vmatpush1.msra.mxu0 0.0
    %1175 = vmatprep.subr.mxu0 0.0
    %1176 = vmatpush1.msra.mxu0 0.0
    %1177 = vmatprep.subr.mxu0 0.0
    %1178 = vmatpush1.msra.mxu0 0.0
    %1179 = vmatprep.subr.mxu0 0.0
    %1180 = vmatpush1.msra.mxu0 0.0
    %1181 = vmatprep.subr.mxu0 0.0
    %1182 = vmatpush1.msra.mxu0 0.0
    %1183 = vmatprep.subr.mxu0 0.0
    %1184 = vmatpush1.msra.mxu0 0.0
    %1185 = vmatprep.subr.mxu0 0.0
    %1186 = vmatpush1.msra.mxu0 0.0
    %1187 = vmatprep.subr.mxu0 0.0
    %1188 = vmatpush1.msra.mxu0 0.0
    %1189 = vmatprep.subr.mxu0 0.0
    %1190 = vmatpush1.msra.mxu0 0.0
    %1191 = vmatprep.subr.mxu0 0.0
    %1192 = vmatpush1.msra.mxu0 0.0
    %1193 = vmatprep.subr.mxu0 0.0
    %1194 = vmatpush1.msra.mxu0 0.0
    %1195 = vmatprep.subr.mxu0 0.0
    %1196 = vmatpush1.msra.mxu0 0.0
    %1197 = vmatprep.mubr.f32.mxu0 0.0
    %1198 = vmatmul.mubr.f32.gmra.mrb[0].mxu0 %v1047
    %v1199 = vpop.f32.mrb[0].mxu0
    %v1200 = vadd.f32 %v1131, %v1199
    %v1201 = vpop.f32.mrb[0].mxu0
    %1202 = vmatprep.mubr.f32.mxu0 0.0
    %1203 = vmatmul.mubr.f32.gmra.mrb[0].mxu0 %v1050
    %v1204 = vpop.f32.mrb[0].mxu0
    %v1205 = vadd.f32 %v1131, %v1204
    %v1206 = vpop.f32.mrb[0].mxu0
    %1207 = vdwg.mxu0
    %v1209 = vsel %vm543, %v1119, 0
    %v1212 = vsel %vm543, %v1124, 0
    %1214 = vmatprep.subr.mxu0 %v141
    %1215 = vmatpush1.msra.mxu0 %v140
    %1216 = vmatprep.subr.mxu0 %v145
    %1217 = vmatpush1.msra.mxu0 %v144
    %1218 = vmatprep.subr.mxu0 %v149
    %1219 = vmatpush1.msra.mxu0 %v148
    %1220 = vmatprep.subr.mxu0 %v153
    %1221 = vmatpush1.msra.mxu0 %v152
    %1222 = vmatprep.subr.mxu0 0.0
    %1223 = vmatpush1.msra.mxu0 0.0
    %1224 = vmatprep.subr.mxu0 0.0
    %1225 = vmatpush1.msra.mxu0 0.0
    %1226 = vmatprep.subr.mxu0 0.0
    %1227 = vmatpush1.msra.mxu0 0.0
    %1228 = vmatprep.subr.mxu0 0.0
    %1229 = vmatpush1.msra.mxu0 0.0
    %1230 = vmatprep.subr.mxu0 0.0
    %1231 = vmatpush1.msra.mxu0 0.0
    %1232 = vmatprep.subr.mxu0 0.0
    %1233 = vmatpush1.msra.mxu0 0.0
    %1234 = vmatprep.subr.mxu0 0.0
    %1235 = vmatpush1.msra.mxu0 0.0
    %1236 = vmatprep.subr.mxu0 0.0
    %1237 = vmatpush1.msra.mxu0 0.0
    %1238 = vmatprep.subr.mxu0 0.0
    %1239 = vmatpush1.msra.mxu0 0.0
    %1240 = vmatprep.subr.mxu0 0.0
    %1241 = vmatpush1.msra.mxu0 0.0
    %1242 = vmatprep.subr.mxu0 0.0
    %1243 = vmatpush1.msra.mxu0 0.0
    %1244 = vmatprep.subr.mxu0 0.0
    %1245 = vmatpush1.msra.mxu0 0.0
    %1246 = vmatprep.subr.mxu0 0.0
    %1247 = vmatpush1.msra.mxu0 0.0
    %1248 = vmatprep.subr.mxu0 0.0
    %1249 = vmatpush1.msra.mxu0 0.0
    %1250 = vmatprep.subr.mxu0 0.0
    %1251 = vmatpush1.msra.mxu0 0.0
    %1252 = vmatprep.subr.mxu0 0.0
    %1253 = vmatpush1.msra.mxu0 0.0
    %1254 = vmatprep.subr.mxu0 0.0
    %1255 = vmatpush1.msra.mxu0 0.0
    %1256 = vmatprep.subr.mxu0 0.0
    %1257 = vmatpush1.msra.mxu0 0.0
    %1258 = vmatprep.subr.mxu0 0.0
    %1259 = vmatpush1.msra.mxu0 0.0
    %1260 = vmatprep.subr.mxu0 0.0
    %1261 = vmatpush1.msra.mxu0 0.0
    %1262 = vmatprep.subr.mxu0 0.0
    %1263 = vmatpush1.msra.mxu0 0.0
    %1264 = vmatprep.subr.mxu0 0.0
    %1265 = vmatpush1.msra.mxu0 0.0
    %1266 = vmatprep.subr.mxu0 0.0
    %1267 = vmatpush1.msra.mxu0 0.0
    %1268 = vmatprep.subr.mxu0 0.0
    %1269 = vmatpush1.msra.mxu0 0.0
    %1270 = vmatprep.subr.mxu0 0.0
    %1271 = vmatpush1.msra.mxu0 0.0
    %1272 = vmatprep.subr.mxu0 0.0
    %1273 = vmatpush1.msra.mxu0 0.0
    %1274 = vmatprep.subr.mxu0 0.0
    %1275 = vmatpush1.msra.mxu0 0.0
    %1276 = vmatprep.subr.mxu0 0.0
    %1277 = vmatpush1.msra.mxu0 0.0
    %1278 = vmatprep.mubr.f32.mxu0 0.0
    %1279 = vmatmul.mubr.f32.gmra.mrb[0].mxu0 %v1209
    %v1280 = vpop.f32.mrb[0].mxu0
    %v1281 = vadd.f32 0.0, %v1280
    %v1282 = vpop.f32.mrb[0].mxu0
    %v1283 = vadd.f32 0.0, %v1282
    %1284 = vmatprep.mubr.f32.mxu0 0.0
    %1285 = vmatmul.mubr.f32.gmra.mrb[0].mxu0 %v1212
    %v1286 = vpop.f32.mrb[0].mxu0
    %v1287 = vadd.f32 0.0, %v1286
    %v1288 = vpop.f32.mrb[0].mxu0
    %v1289 = vadd.f32 0.0, %v1288
    %1290 = vdwg.mxu0
    %1291 = vmatprep.subr.mxu0 %v143
    %1292 = vmatpush1.msra.mxu0 %v142
    %1293 = vmatprep.subr.mxu0 %v147
    %1294 = vmatpush1.msra.mxu0 %v146
    %1295 = vmatprep.subr.mxu0 %v151
    %1296 = vmatpush1.msra.mxu0 %v150
    %1297 = vmatprep.subr.mxu0 %v155
    %1298 = vmatpush1.msra.mxu0 %v154
    %1299 = vmatprep.subr.mxu0 0.0
    %1300 = vmatpush1.msra.mxu0 0.0
    %1301 = vmatprep.subr.mxu0 0.0
    %1302 = vmatpush1.msra.mxu0 0.0
    %1303 = vmatprep.subr.mxu0 0.0
    %1304 = vmatpush1.msra.mxu0 0.0
    %1305 = vmatprep.subr.mxu0 0.0
    %1306 = vmatpush1.msra.mxu0 0.0
    %1307 = vmatprep.subr.mxu0 0.0
    %1308 = vmatpush1.msra.mxu0 0.0
    %1309 = vmatprep.subr.mxu0 0.0
    %1310 = vmatpush1.msra.mxu0 0.0
    %1311 = vmatprep.subr.mxu0 0.0
    %1312 = vmatpush1.msra.mxu0 0.0
    %1313 = vmatprep.subr.mxu0 0.0
    %1314 = vmatpush1.msra.mxu0 0.0
    %1315 = vmatprep.subr.mxu0 0.0
    %1316 = vmatpush1.msra.mxu0 0.0
    %1317 = vmatprep.subr.mxu0 0.0
    %1318 = vmatpush1.msra.mxu0 0.0
    %1319 = vmatprep.subr.mxu0 0.0
    %1320 = vmatpush1.msra.mxu0 0.0
    %1321 = vmatprep.subr.mxu0 0.0
    %1322 = vmatpush1.msra.mxu0 0.0
    %1323 = vmatprep.subr.mxu0 0.0
    %1324 = vmatpush1.msra.mxu0 0.0
    %1325 = vmatprep.subr.mxu0 0.0
    %1326 = vmatpush1.msra.mxu0 0.0
    %1327 = vmatprep.subr.mxu0 0.0
    %1328 = vmatpush1.msra.mxu0 0.0
    %1329 = vmatprep.subr.mxu0 0.0
    %1330 = vmatpush1.msra.mxu0 0.0
    %1331 = vmatprep.subr.mxu0 0.0
    %1332 = vmatpush1.msra.mxu0 0.0
    %1333 = vmatprep.subr.mxu0 0.0
    %1334 = vmatpush1.msra.mxu0 0.0
    %1335 = vmatprep.subr.mxu0 0.0
    %1336 = vmatpush1.msra.mxu0 0.0
    %1337 = vmatprep.subr.mxu0 0.0
    %1338 = vmatpush1.msra.mxu0 0.0
    %1339 = vmatprep.subr.mxu0 0.0
    %1340 = vmatpush1.msra.mxu0 0.0
    %1341 = vmatprep.subr.mxu0 0.0
    %1342 = vmatpush1.msra.mxu0 0.0
    %1343 = vmatprep.subr.mxu0 0.0
    %1344 = vmatpush1.msra.mxu0 0.0
    %1345 = vmatprep.subr.mxu0 0.0
    %1346 = vmatpush1.msra.mxu0 0.0
    %1347 = vmatprep.subr.mxu0 0.0
    %1348 = vmatpush1.msra.mxu0 0.0
    %1349 = vmatprep.subr.mxu0 0.0
    %1350 = vmatpush1.msra.mxu0 0.0
    %1351 = vmatprep.subr.mxu0 0.0
    %1352 = vmatpush1.msra.mxu0 0.0
    %1353 = vmatprep.subr.mxu0 0.0
    %1354 = vmatpush1.msra.mxu0 0.0
    %1355 = vmatprep.mubr.f32.mxu0 0.0
    %1356 = vmatmul.mubr.f32.gmra.mrb[0].mxu0 %v1209
    %v1357 = vpop.f32.mrb[0].mxu0
    %v1358 = vadd.f32 0.0, %v1357
    %v1359 = vpop.f32.mrb[0].mxu0
    %v1360 = vadd.f32 0.0, %v1359
    %1361 = vmatprep.mubr.f32.mxu0 0.0
    %1362 = vmatmul.mubr.f32.gmra.mrb[0].mxu0 %v1212
    %v1363 = vpop.f32.mrb[0].mxu0
    %v1364 = vadd.f32 0.0, %v1363
    %v1365 = vpop.f32.mrb[0].mxu0
    %v1366 = vadd.f32 0.0, %v1365
    %1367 = vdwg.mxu0
    %v1368 = vmul.f32 %v1032, %v1281
    %v1369 = vmul.f32 %v1033, %v1283
    %v1370 = vmul.f32 %v1034, %v1358
    %v1371 = vmul.f32 %v1035, %v1360
    %v1372 = vmul.f32 %v1036, %v1287
    %v1373 = vmul.f32 %v1037, %v1289
    %v1374 = vmul.f32 %v1038, %v1364
    %v1375 = vmul.f32 %v1039, %v1366
    %v1377 = vsel %vm543, %v1200, 0
    %v1380 = vsel %vm543, %v1205, 0
    %1382 = vmatprep.subr.mxu0 %v141
    %1383 = vmatpush1.msra.mxu0 %v140
    %1384 = vmatprep.subr.mxu0 %v145
    %1385 = vmatpush1.msra.mxu0 %v144
    %1386 = vmatprep.subr.mxu0 %v149
    %1387 = vmatpush1.msra.mxu0 %v148
    %1388 = vmatprep.subr.mxu0 %v153
    %1389 = vmatpush1.msra.mxu0 %v152
    %1390 = vmatprep.subr.mxu0 0.0
    %1391 = vmatpush1.msra.mxu0 0.0
    %1392 = vmatprep.subr.mxu0 0.0
    %1393 = vmatpush1.msra.mxu0 0.0
    %1394 = vmatprep.subr.mxu0 0.0
    %1395 = vmatpush1.msra.mxu0 0.0
    %1396 = vmatprep.subr.mxu0 0.0
    %1397 = vmatpush1.msra.mxu0 0.0
    %1398 = vmatprep.subr.mxu0 0.0
    %1399 = vmatpush1.msra.mxu0 0.0
    %1400 = vmatprep.subr.mxu0 0.0
    %1401 = vmatpush1.msra.mxu0 0.0
    %1402 = vmatprep.subr.mxu0 0.0
    %1403 = vmatpush1.msra.mxu0 0.0
    %1404 = vmatprep.subr.mxu0 0.0
    %1405 = vmatpush1.msra.mxu0 0.0
    %1406 = vmatprep.subr.mxu0 0.0
    %1407 = vmatpush1.msra.mxu0 0.0
    %1408 = vmatprep.subr.mxu0 0.0
    %1409 = vmatpush1.msra.mxu0 0.0
    %1410 = vmatprep.subr.mxu0 0.0
    %1411 = vmatpush1.msra.mxu0 0.0
    %1412 = vmatprep.subr.mxu0 0.0
    %1413 = vmatpush1.msra.mxu0 0.0
    %1414 = vmatprep.subr.mxu0 0.0
    %1415 = vmatpush1.msra.mxu0 0.0
    %1416 = vmatprep.subr.mxu0 0.0
    %1417 = vmatpush1.msra.mxu0 0.0
    %1418 = vmatprep.subr.mxu0 0.0
    %1419 = vmatpush1.msra.mxu0 0.0
    %1420 = vmatprep.subr.mxu0 0.0
    %1421 = vmatpush1.msra.mxu0 0.0
    %1422 = vmatprep.subr.mxu0 0.0
    %1423 = vmatpush1.msra.mxu0 0.0
    %1424 = vmatprep.subr.mxu0 0.0
    %1425 = vmatpush1.msra.mxu0 0.0
    %1426 = vmatprep.subr.mxu0 0.0
    %1427 = vmatpush1.msra.mxu0 0.0
    %1428 = vmatprep.subr.mxu0 0.0
    %1429 = vmatpush1.msra.mxu0 0.0
    %1430 = vmatprep.subr.mxu0 0.0
    %1431 = vmatpush1.msra.mxu0 0.0
    %1432 = vmatprep.subr.mxu0 0.0
    %1433 = vmatpush1.msra.mxu0 0.0
    %1434 = vmatprep.subr.mxu0 0.0
    %1435 = vmatpush1.msra.mxu0 0.0
    %1436 = vmatprep.subr.mxu0 0.0
    %1437 = vmatpush1.msra.mxu0 0.0
    %1438 = vmatprep.subr.mxu0 0.0
    %1439 = vmatpush1.msra.mxu0 0.0
    %1440 = vmatprep.subr.mxu0 0.0
    %1441 = vmatpush1.msra.mxu0 0.0
    %1442 = vmatprep.subr.mxu0 0.0
    %1443 = vmatpush1.msra.mxu0 0.0
    %1444 = vmatprep.subr.mxu0 0.0
    %1445 = vmatpush1.msra.mxu0 0.0
    %1446 = vmatprep.mubr.f32.mxu0 0.0
    %1447 = vmatmul.mubr.f32.gmra.mrb[0].mxu0 %v1377
    %v1448 = vpop.f32.mrb[0].mxu0
    %v1449 = vadd.f32 0.0, %v1448
    %v1450 = vpop.f32.mrb[0].mxu0
    %v1451 = vadd.f32 0.0, %v1450
    %1452 = vmatprep.mubr.f32.mxu0 0.0
    %1453 = vmatmul.mubr.f32.gmra.mrb[0].mxu0 %v1380
    %v1454 = vpop.f32.mrb[0].mxu0
    %v1455 = vadd.f32 0.0, %v1454
    %v1456 = vpop.f32.mrb[0].mxu0
    %v1457 = vadd.f32 0.0, %v1456
    %1458 = vdwg.mxu0
    %1459 = vmatprep.subr.mxu0 %v143
    %1460 = vmatpush1.msra.mxu0 %v142
    %1461 = vmatprep.subr.mxu0 %v147
    %1462 = vmatpush1.msra.mxu0 %v146
    %1463 = vmatprep.subr.mxu0 %v151
    %1464 = vmatpush1.msra.mxu0 %v150
    %1465 = vmatprep.subr.mxu0 %v155
    %1466 = vmatpush1.msra.mxu0 %v154
    %1467 = vmatprep.subr.mxu0 0.0
    %1468 = vmatpush1.msra.mxu0 0.0
    %1469 = vmatprep.subr.mxu0 0.0
    %1470 = vmatpush1.msra.mxu0 0.0
    %1471 = vmatprep.subr.mxu0 0.0
    %1472 = vmatpush1.msra.mxu0 0.0
    %1473 = vmatprep.subr.mxu0 0.0
    %1474 = vmatpush1.msra.mxu0 0.0
    %1475 = vmatprep.subr.mxu0 0.0
    %1476 = vmatpush1.msra.mxu0 0.0
    %1477 = vmatprep.subr.mxu0 0.0
    %1478 = vmatpush1.msra.mxu0 0.0
    %1479 = vmatprep.subr.mxu0 0.0
    %1480 = vmatpush1.msra.mxu0 0.0
    %1481 = vmatprep.subr.mxu0 0.0
    %1482 = vmatpush1.msra.mxu0 0.0
    %1483 = vmatprep.subr.mxu0 0.0
    %1484 = vmatpush1.msra.mxu0 0.0
    %1485 = vmatprep.subr.mxu0 0.0
    %1486 = vmatpush1.msra.mxu0 0.0
    %1487 = vmatprep.subr.mxu0 0.0
    %1488 = vmatpush1.msra.mxu0 0.0
    %1489 = vmatprep.subr.mxu0 0.0
    %1490 = vmatpush1.msra.mxu0 0.0
    %1491 = vmatprep.subr.mxu0 0.0
    %1492 = vmatpush1.msra.mxu0 0.0
    %1493 = vmatprep.subr.mxu0 0.0
    %1494 = vmatpush1.msra.mxu0 0.0
    %1495 = vmatprep.subr.mxu0 0.0
    %1496 = vmatpush1.msra.mxu0 0.0
    %1497 = vmatprep.subr.mxu0 0.0
    %1498 = vmatpush1.msra.mxu0 0.0
    %1499 = vmatprep.subr.mxu0 0.0
    %1500 = vmatpush1.msra.mxu0 0.0
    %1501 = vmatprep.subr.mxu0 0.0
    %1502 = vmatpush1.msra.mxu0 0.0
    %1503 = vmatprep.subr.mxu0 0.0
    %1504 = vmatpush1.msra.mxu0 0.0
    %1505 = vmatprep.subr.mxu0 0.0
    %1506 = vmatpush1.msra.mxu0 0.0
    %1507 = vmatprep.subr.mxu0 0.0
    %1508 = vmatpush1.msra.mxu0 0.0
    %1509 = vmatprep.subr.mxu0 0.0
    %1510 = vmatpush1.msra.mxu0 0.0
    %1511 = vmatprep.subr.mxu0 0.0
    %1512 = vmatpush1.msra.mxu0 0.0
    %1513 = vmatprep.subr.mxu0 0.0
    %1514 = vmatpush1.msra.mxu0 0.0
    %1515 = vmatprep.subr.mxu0 0.0
    %1516 = vmatpush1.msra.mxu0 0.0
    %1517 = vmatprep.subr.mxu0 0.0
    %1518 = vmatpush1.msra.mxu0 0.0
    %1519 = vmatprep.subr.mxu0 0.0
    %1520 = vmatpush1.msra.mxu0 0.0
    %1521 = vmatprep.subr.mxu0 0.0
    %1522 = vmatpush1.msra.mxu0 0.0
    %1523 = vmatprep.mubr.f32.mxu0 0.0
    %1524 = vmatmul.mubr.f32.gmra.mrb[0].mxu0 %v1377
    %v1525 = vpop.f32.mrb[0].mxu0
    %v1526 = vadd.f32 0.0, %v1525
    %v1527 = vpop.f32.mrb[0].mxu0
    %v1528 = vadd.f32 0.0, %v1527
    %1529 = vmatprep.mubr.f32.mxu0 0.0
    %1530 = vmatmul.mubr.f32.gmra.mrb[0].mxu0 %v1380
    %v1531 = vpop.f32.mrb[0].mxu0
    %v1532 = vadd.f32 0.0, %v1531
    %v1533 = vpop.f32.mrb[0].mxu0
    %v1534 = vadd.f32 0.0, %v1533
    %1535 = vdwg.mxu0
    %v1536 = vadd.f32 %v1368, %v1449
    %v1537 = vadd.f32 %v1369, %v1451
    %v1538 = vadd.f32 %v1370, %v1526
    %v1539 = vadd.f32 %v1371, %v1528
    %v1540 = vadd.f32 %v1372, %v1455
    %v1541 = vadd.f32 %v1373, %v1457
    %v1542 = vadd.f32 %v1374, %v1532
    %v1543 = vadd.f32 %v1375, %v1534
    %v1544 = vld [vmem:[#allocation2] sm:$0xff]
    %v1545 = vld [vmem:[#allocation2 + $0x8] sm:$0xff]
    %v1546 = vld [vmem:[#allocation2 + $0x10] sm:$0xff]
    %v1547 = vld [vmem:[#allocation2 + $0x18] sm:$0xff]
    %v1548 = vld [vmem:[#allocation2 + $0x20] sm:$0xff]
    %v1549 = vld [vmem:[#allocation2 + $0x28] sm:$0xff]
    %v1550 = vld [vmem:[#allocation2 + $0x30] sm:$0xff]
    %v1551 = vld [vmem:[#allocation2 + $0x38] sm:$0xff]
    %v1552 = vld [vmem:[#allocation2 + $0x40] sm:$0xff]
    %v1553 = vld [vmem:[#allocation2 + $0x48] sm:$0xff]
    %v1554 = vld [vmem:[#allocation2 + $0x50] sm:$0xff]
    %v1555 = vld [vmem:[#allocation2 + $0x58] sm:$0xff]
    %v1556 = vld [vmem:[#allocation2 + $0x60] sm:$0xff]
    %v1557 = vld [vmem:[#allocation2 + $0x68] sm:$0xff]
    %v1558 = vld [vmem:[#allocation2 + $0x70] sm:$0xff]
    %v1559 = vld [vmem:[#allocation2 + $0x78] sm:$0xff]
    %v1560 = vld [vmem:[#allocation2 + $0x80] sm:$0xff]
    %v1561 = vld [vmem:[#allocation2 + $0x88] sm:$0xff]
    %v1562 = vld [vmem:[#allocation2 + $0x90] sm:$0xff]
    %v1563 = vld [vmem:[#allocation2 + $0x98] sm:$0xff]
    %v1564 = vld [vmem:[#allocation2 + $0xa0] sm:$0xff]
    %v1565 = vld [vmem:[#allocation2 + $0xa8] sm:$0xff]
    %v1566 = vld [vmem:[#allocation2 + $0xb0] sm:$0xff]
    %v1567 = vld [vmem:[#allocation2 + $0xb8] sm:$0xff]
    %v1568 = vld [vmem:[#allocation2 + $0xc0] sm:$0xff]
    %v1569 = vld [vmem:[#allocation2 + $0xc8] sm:$0xff]
    %v1570 = vld [vmem:[#allocation2 + $0xd0] sm:$0xff]
    %v1571 = vld [vmem:[#allocation2 + $0xd8] sm:$0xff]
    %v1572 = vld [vmem:[#allocation2 + $0xe0] sm:$0xff]
    %v1573 = vld [vmem:[#allocation2 + $0xe8] sm:$0xff]
    %v1574 = vld [vmem:[#allocation2 + $0xf0] sm:$0xff]
    %v1575 = vld [vmem:[#allocation2 + $0xf8] sm:$0xff]
    %v1576 = vld [vmem:[#allocation2 + $0x100] sm:$0xff]
    %v1577 = vld [vmem:[#allocation2 + $0x108] sm:$0xff]
    %v1578 = vld [vmem:[#allocation2 + $0x110] sm:$0xff]
    %v1579 = vld [vmem:[#allocation2 + $0x118] sm:$0xff]
    %v1580 = vld [vmem:[#allocation2 + $0x120] sm:$0xff]
    %v1581 = vld [vmem:[#allocation2 + $0x128] sm:$0xff]
    %v1582 = vld [vmem:[#allocation2 + $0x130] sm:$0xff]
    %v1583 = vld [vmem:[#allocation2 + $0x138] sm:$0xff]
    %v1584 = vld [vmem:[#allocation2 + $0x140] sm:$0xff]
    %v1585 = vld [vmem:[#allocation2 + $0x148] sm:$0xff]
    %v1586 = vld [vmem:[#allocation2 + $0x150] sm:$0xff]
    %v1587 = vld [vmem:[#allocation2 + $0x158] sm:$0xff]
    %v1588 = vld [vmem:[#allocation2 + $0x160] sm:$0xff]
    %v1589 = vld [vmem:[#allocation2 + $0x168] sm:$0xff]
    %v1590 = vld [vmem:[#allocation2 + $0x170] sm:$0xff]
    %v1591 = vld [vmem:[#allocation2 + $0x178] sm:$0xff]
    %v1592 = vld [vmem:[#allocation2 + $0x180] sm:$0xff]
    %v1593 = vld [vmem:[#allocation2 + $0x188] sm:$0xff]
    %v1594 = vld [vmem:[#allocation2 + $0x190] sm:$0xff]
    %v1595 = vld [vmem:[#allocation2 + $0x198] sm:$0xff]
    %v1596 = vld [vmem:[#allocation2 + $0x1a0] sm:$0xff]
    %v1597 = vld [vmem:[#allocation2 + $0x1a8] sm:$0xff]
    %v1598 = vld [vmem:[#allocation2 + $0x1b0] sm:$0xff]
    %v1599 = vld [vmem:[#allocation2 + $0x1b8] sm:$0xff]
    %v1600 = vld [vmem:[#allocation2 + $0x1c0] sm:$0xff]
    %v1601 = vld [vmem:[#allocation2 + $0x1c8] sm:$0xff]
    %v1602 = vld [vmem:[#allocation2 + $0x1d0] sm:$0xff]
    %v1603 = vld [vmem:[#allocation2 + $0x1d8] sm:$0xff]
    %v1604 = vld [vmem:[#allocation2 + $0x1e0] sm:$0xff]
    %v1605 = vld [vmem:[#allocation2 + $0x1e8] sm:$0xff]
    %v1606 = vld [vmem:[#allocation2 + $0x1f0] sm:$0xff]
    %v1607 = vld [vmem:[#allocation2 + $0x1f8] sm:$0xff]
    %v1608 = vld [vmem:[#allocation2 + $0x200] sm:$0xff]
    %v1609 = vld [vmem:[#allocation2 + $0x208] sm:$0xff]
    %v1610 = vld [vmem:[#allocation2 + $0x210] sm:$0xff]
    %v1611 = vld [vmem:[#allocation2 + $0x218] sm:$0xff]
    %v1612 = vld [vmem:[#allocation2 + $0x220] sm:$0xff]
    %v1613 = vld [vmem:[#allocation2 + $0x228] sm:$0xff]
    %v1614 = vld [vmem:[#allocation2 + $0x230] sm:$0xff]
    %v1615 = vld [vmem:[#allocation2 + $0x238] sm:$0xff]
    %v1616 = vld [vmem:[#allocation2 + $0x240] sm:$0xff]
    %v1617 = vld [vmem:[#allocation2 + $0x248] sm:$0xff]
    %v1618 = vld [vmem:[#allocation2 + $0x250] sm:$0xff]
    %v1619 = vld [vmem:[#allocation2 + $0x258] sm:$0xff]
    %v1620 = vld [vmem:[#allocation2 + $0x260] sm:$0xff]
    %v1621 = vld [vmem:[#allocation2 + $0x268] sm:$0xff]
    %v1622 = vld [vmem:[#allocation2 + $0x270] sm:$0xff]
    %v1623 = vld [vmem:[#allocation2 + $0x278] sm:$0xff]
    %v1624 = vld [vmem:[#allocation2 + $0x280] sm:$0xff]
    %v1625 = vld [vmem:[#allocation2 + $0x288] sm:$0xff]
    %v1626 = vld [vmem:[#allocation2 + $0x290] sm:$0xff]
    %v1627 = vld [vmem:[#allocation2 + $0x298] sm:$0xff]
    %v1628 = vld [vmem:[#allocation2 + $0x2a0] sm:$0xff]
    %v1629 = vld [vmem:[#allocation2 + $0x2a8] sm:$0xff]
    %v1630 = vld [vmem:[#allocation2 + $0x2b0] sm:$0xff]
    %v1631 = vld [vmem:[#allocation2 + $0x2b8] sm:$0xff]
    %v1632 = vld [vmem:[#allocation2 + $0x2c0] sm:$0xff]
    %v1633 = vld [vmem:[#allocation2 + $0x2c8] sm:$0xff]
    %v1634 = vld [vmem:[#allocation2 + $0x2d0] sm:$0xff]
    %v1635 = vld [vmem:[#allocation2 + $0x2d8] sm:$0xff]
    %v1636 = vld [vmem:[#allocation2 + $0x2e0] sm:$0xff]
    %v1637 = vld [vmem:[#allocation2 + $0x2e8] sm:$0xff]
    %v1638 = vld [vmem:[#allocation2 + $0x2f0] sm:$0xff]
    %v1639 = vld [vmem:[#allocation2 + $0x2f8] sm:$0xff]
    %v1640 = vld [vmem:[#allocation2 + $0x300] sm:$0xff]
    %v1641 = vld [vmem:[#allocation2 + $0x308] sm:$0xff]
    %v1642 = vld [vmem:[#allocation2 + $0x310] sm:$0xff]
    %v1643 = vld [vmem:[#allocation2 + $0x318] sm:$0xff]
    %v1644 = vld [vmem:[#allocation2 + $0x320] sm:$0xff]
    %v1645 = vld [vmem:[#allocation2 + $0x328] sm:$0xff]
    %v1646 = vld [vmem:[#allocation2 + $0x330] sm:$0xff]
    %v1647 = vld [vmem:[#allocation2 + $0x338] sm:$0xff]
    %v1648 = vld [vmem:[#allocation2 + $0x340] sm:$0xff]
    %v1649 = vld [vmem:[#allocation2 + $0x348] sm:$0xff]
    %v1650 = vld [vmem:[#allocation2 + $0x350] sm:$0xff]
    %v1651 = vld [vmem:[#allocation2 + $0x358] sm:$0xff]
    %v1652 = vld [vmem:[#allocation2 + $0x360] sm:$0xff]
    %v1653 = vld [vmem:[#allocation2 + $0x368] sm:$0xff]
    %v1654 = vld [vmem:[#allocation2 + $0x370] sm:$0xff]
    %v1655 = vld [vmem:[#allocation2 + $0x378] sm:$0xff]
    %v1656 = vld [vmem:[#allocation2 + $0x380] sm:$0xff]
    %v1657 = vld [vmem:[#allocation2 + $0x388] sm:$0xff]
    %v1658 = vld [vmem:[#allocation2 + $0x390] sm:$0xff]
    %v1659 = vld [vmem:[#allocation2 + $0x398] sm:$0xff]
    %v1660 = vld [vmem:[#allocation2 + $0x3a0] sm:$0xff]
    %v1661 = vld [vmem:[#allocation2 + $0x3a8] sm:$0xff]
    %v1662 = vld [vmem:[#allocation2 + $0x3b0] sm:$0xff]
    %v1663 = vld [vmem:[#allocation2 + $0x3b8] sm:$0xff]
    %v1664 = vld [vmem:[#allocation2 + $0x3c0] sm:$0xff]
    %v1665 = vld [vmem:[#allocation2 + $0x3c8] sm:$0xff]
    %v1666 = vld [vmem:[#allocation2 + $0x3d0] sm:$0xff]
    %v1667 = vld [vmem:[#allocation2 + $0x3d8] sm:$0xff]
    %v1668 = vld [vmem:[#allocation2 + $0x3e0] sm:$0xff]
    %v1669 = vld [vmem:[#allocation2 + $0x3e8] sm:$0xff]
    %v1670 = vld [vmem:[#allocation2 + $0x3f0] sm:$0xff]
    %v1671 = vld [vmem:[#allocation2 + $0x3f8] sm:$0xff]
    %v1672 = vld [vmem:[#allocation2 + $0x400] sm:$0xff]
    %v1673 = vld [vmem:[#allocation2 + $0x408] sm:$0xff]
    %v1674 = vld [vmem:[#allocation2 + $0x410] sm:$0xff]
    %v1675 = vld [vmem:[#allocation2 + $0x418] sm:$0xff]
    %v1676 = vld [vmem:[#allocation2 + $0x420] sm:$0xff]
    %v1677 = vld [vmem:[#allocation2 + $0x428] sm:$0xff]
    %v1678 = vld [vmem:[#allocation2 + $0x430] sm:$0xff]
    %v1679 = vld [vmem:[#allocation2 + $0x438] sm:$0xff]
    %v1680 = vld [vmem:[#allocation2 + $0x440] sm:$0xff]
    %v1681 = vld [vmem:[#allocation2 + $0x448] sm:$0xff]
    %v1682 = vld [vmem:[#allocation2 + $0x450] sm:$0xff]
    %v1683 = vld [vmem:[#allocation2 + $0x458] sm:$0xff]
    %v1684 = vld [vmem:[#allocation2 + $0x460] sm:$0xff]
    %v1685 = vld [vmem:[#allocation2 + $0x468] sm:$0xff]
    %v1686 = vld [vmem:[#allocation2 + $0x470] sm:$0xff]
    %v1687 = vld [vmem:[#allocation2 + $0x478] sm:$0xff]
    %v1688 = vld [vmem:[#allocation2 + $0x480] sm:$0xff]
    %v1689 = vld [vmem:[#allocation2 + $0x488] sm:$0xff]
    %v1690 = vld [vmem:[#allocation2 + $0x490] sm:$0xff]
    %v1691 = vld [vmem:[#allocation2 + $0x498] sm:$0xff]
    %v1692 = vld [vmem:[#allocation2 + $0x4a0] sm:$0xff]
    %v1693 = vld [vmem:[#allocation2 + $0x4a8] sm:$0xff]
    %v1694 = vld [vmem:[#allocation2 + $0x4b0] sm:$0xff]
    %v1695 = vld [vmem:[#allocation2 + $0x4b8] sm:$0xff]
    %v1696 = vld [vmem:[#allocation2 + $0x4c0] sm:$0xff]
    %v1697 = vld [vmem:[#allocation2 + $0x4c8] sm:$0xff]
    %v1698 = vld [vmem:[#allocation2 + $0x4d0] sm:$0xff]
    %v1699 = vld [vmem:[#allocation2 + $0x4d8] sm:$0xff]
    %v1700 = vld [vmem:[#allocation2 + $0x4e0] sm:$0xff]
    %v1701 = vld [vmem:[#allocation2 + $0x4e8] sm:$0xff]
    %v1702 = vld [vmem:[#allocation2 + $0x4f0] sm:$0xff]
    %v1703 = vld [vmem:[#allocation2 + $0x4f8] sm:$0xff]
    %v1704 = vld [vmem:[#allocation2 + $0x500] sm:$0xff]
    %v1705 = vld [vmem:[#allocation2 + $0x508] sm:$0xff]
    %v1706 = vld [vmem:[#allocation2 + $0x510] sm:$0xff]
    %v1707 = vld [vmem:[#allocation2 + $0x518] sm:$0xff]
    %v1708 = vld [vmem:[#allocation2 + $0x520] sm:$0xff]
    %v1709 = vld [vmem:[#allocation2 + $0x528] sm:$0xff]
    %v1710 = vld [vmem:[#allocation2 + $0x530] sm:$0xff]
    %v1711 = vld [vmem:[#allocation2 + $0x538] sm:$0xff]
    %v1712 = vld [vmem:[#allocation2 + $0x540] sm:$0xff]
    %v1713 = vld [vmem:[#allocation2 + $0x548] sm:$0xff]
    %v1714 = vld [vmem:[#allocation2 + $0x550] sm:$0xff]
    %v1715 = vld [vmem:[#allocation2 + $0x558] sm:$0xff]
    %v1716 = vld [vmem:[#allocation2 + $0x560] sm:$0xff]
    %v1717 = vld [vmem:[#allocation2 + $0x568] sm:$0xff]
    %v1718 = vld [vmem:[#allocation2 + $0x570] sm:$0xff]
    %v1719 = vld [vmem:[#allocation2 + $0x578] sm:$0xff]
    %v1720 = vld [vmem:[#allocation2 + $0x580] sm:$0xff]
    %v1721 = vld [vmem:[#allocation2 + $0x588] sm:$0xff]
    %v1722 = vld [vmem:[#allocation2 + $0x590] sm:$0xff]
    %v1723 = vld [vmem:[#allocation2 + $0x598] sm:$0xff]
    %v1724 = vld [vmem:[#allocation2 + $0x5a0] sm:$0xff]
    %v1725 = vld [vmem:[#allocation2 + $0x5a8] sm:$0xff]
    %v1726 = vld [vmem:[#allocation2 + $0x5b0] sm:$0xff]
    %v1727 = vld [vmem:[#allocation2 + $0x5b8] sm:$0xff]
    %v1728 = vld [vmem:[#allocation2 + $0x5c0] sm:$0xff]
    %v1729 = vld [vmem:[#allocation2 + $0x5c8] sm:$0xff]
    %v1730 = vld [vmem:[#allocation2 + $0x5d0] sm:$0xff]
    %v1731 = vld [vmem:[#allocation2 + $0x5d8] sm:$0xff]
    %v1732 = vld [vmem:[#allocation2 + $0x5e0] sm:$0xff]
    %v1733 = vld [vmem:[#allocation2 + $0x5e8] sm:$0xff]
    %v1734 = vld [vmem:[#allocation2 + $0x5f0] sm:$0xff]
    %v1735 = vld [vmem:[#allocation2 + $0x5f8] sm:$0xff]
    %v1736 = vld [vmem:[#allocation2 + $0x600] sm:$0xff]
    %v1737 = vld [vmem:[#allocation2 + $0x608] sm:$0xff]
    %v1738 = vld [vmem:[#allocation2 + $0x610] sm:$0xff]
    %v1739 = vld [vmem:[#allocation2 + $0x618] sm:$0xff]
    %v1740 = vld [vmem:[#allocation2 + $0x620] sm:$0xff]
    %v1741 = vld [vmem:[#allocation2 + $0x628] sm:$0xff]
    %v1742 = vld [vmem:[#allocation2 + $0x630] sm:$0xff]
    %v1743 = vld [vmem:[#allocation2 + $0x638] sm:$0xff]
    %v1744 = vld [vmem:[#allocation2 + $0x640] sm:$0xff]
    %v1745 = vld [vmem:[#allocation2 + $0x648] sm:$0xff]
    %v1746 = vld [vmem:[#allocation2 + $0x650] sm:$0xff]
    %v1747 = vld [vmem:[#allocation2 + $0x658] sm:$0xff]
    %v1748 = vld [vmem:[#allocation2 + $0x660] sm:$0xff]
    %v1749 = vld [vmem:[#allocation2 + $0x668] sm:$0xff]
    %v1750 = vld [vmem:[#allocation2 + $0x670] sm:$0xff]
    %v1751 = vld [vmem:[#allocation2 + $0x678] sm:$0xff]
    %v1752 = vld [vmem:[#allocation2 + $0x680] sm:$0xff]
    %v1753 = vld [vmem:[#allocation2 + $0x688] sm:$0xff]
    %v1754 = vld [vmem:[#allocation2 + $0x690] sm:$0xff]
    %v1755 = vld [vmem:[#allocation2 + $0x698] sm:$0xff]
    %v1756 = vld [vmem:[#allocation2 + $0x6a0] sm:$0xff]
    %v1757 = vld [vmem:[#allocation2 + $0x6a8] sm:$0xff]
    %v1758 = vld [vmem:[#allocation2 + $0x6b0] sm:$0xff]
    %v1759 = vld [vmem:[#allocation2 + $0x6b8] sm:$0xff]
    %v1760 = vld [vmem:[#allocation2 + $0x6c0] sm:$0xff]
    %v1761 = vld [vmem:[#allocation2 + $0x6c8] sm:$0xff]
    %v1762 = vld [vmem:[#allocation2 + $0x6d0] sm:$0xff]
    %v1763 = vld [vmem:[#allocation2 + $0x6d8] sm:$0xff]
    %v1764 = vld [vmem:[#allocation2 + $0x6e0] sm:$0xff]
    %v1765 = vld [vmem:[#allocation2 + $0x6e8] sm:$0xff]
    %v1766 = vld [vmem:[#allocation2 + $0x6f0] sm:$0xff]
    %v1767 = vld [vmem:[#allocation2 + $0x6f8] sm:$0xff]
    %v1768 = vld [vmem:[#allocation2 + $0x700] sm:$0xff]
    %v1769 = vld [vmem:[#allocation2 + $0x708] sm:$0xff]
    %v1770 = vld [vmem:[#allocation2 + $0x710] sm:$0xff]
    %v1771 = vld [vmem:[#allocation2 + $0x718] sm:$0xff]
    %v1772 = vld [vmem:[#allocation2 + $0x720] sm:$0xff]
    %v1773 = vld [vmem:[#allocation2 + $0x728] sm:$0xff]
    %v1774 = vld [vmem:[#allocation2 + $0x730] sm:$0xff]
    %v1775 = vld [vmem:[#allocation2 + $0x738] sm:$0xff]
    %v1776 = vld [vmem:[#allocation2 + $0x740] sm:$0xff]
    %v1777 = vld [vmem:[#allocation2 + $0x748] sm:$0xff]
    %v1778 = vld [vmem:[#allocation2 + $0x750] sm:$0xff]
    %v1779 = vld [vmem:[#allocation2 + $0x758] sm:$0xff]
    %v1780 = vld [vmem:[#allocation2 + $0x760] sm:$0xff]
    %v1781 = vld [vmem:[#allocation2 + $0x768] sm:$0xff]
    %v1782 = vld [vmem:[#allocation2 + $0x770] sm:$0xff]
    %v1783 = vld [vmem:[#allocation2 + $0x778] sm:$0xff]
    %v1784 = vld [vmem:[#allocation2 + $0x780] sm:$0xff]
    %v1785 = vld [vmem:[#allocation2 + $0x788] sm:$0xff]
    %v1786 = vld [vmem:[#allocation2 + $0x790] sm:$0xff]
    %v1787 = vld [vmem:[#allocation2 + $0x798] sm:$0xff]
    %v1788 = vld [vmem:[#allocation2 + $0x7a0] sm:$0xff]
    %v1789 = vld [vmem:[#allocation2 + $0x7a8] sm:$0xff]
    %v1790 = vld [vmem:[#allocation2 + $0x7b0] sm:$0xff]
    %v1791 = vld [vmem:[#allocation2 + $0x7b8] sm:$0xff]
    %v1792 = vld [vmem:[#allocation2 + $0x7c0] sm:$0xff]
    %v1793 = vld [vmem:[#allocation2 + $0x7c8] sm:$0xff]
    %v1794 = vld [vmem:[#allocation2 + $0x7d0] sm:$0xff]
    %v1795 = vld [vmem:[#allocation2 + $0x7d8] sm:$0xff]
    %v1796 = vld [vmem:[#allocation2 + $0x7e0] sm:$0xff]
    %v1797 = vld [vmem:[#allocation2 + $0x7e8] sm:$0xff]
    %v1798 = vld [vmem:[#allocation2 + $0x7f0] sm:$0xff]
    %v1799 = vld [vmem:[#allocation2 + $0x7f8] sm:$0xff]
    %v1800 = vld [vmem:[%s18] sm:$0xf]
    %v1802 = vlaneseq
    %v1803 = vshrl.u32 %v1802, 7
    %v1804 = vsub.s32 0, %v1803
    %v1805 = vrot.slane %v1800, %v1804
    %v1806 = vlaneseq
    %v1807 = vshrl.u32 %v1806, 7
    %v1808 = vsub.s32 1, %v1807
    %v1809 = vrot.slane %v1800, %v1808
    %v1810 = vlaneseq
    %v1811 = vshrl.u32 %v1810, 7
    %v1812 = vsub.s32 2, %v1811
    %v1813 = vrot.slane %v1800, %v1812
    %v1814 = vlaneseq
    %v1815 = vshrl.u32 %v1814, 7
    %v1816 = vsub.s32 3, %v1815
    %v1817 = vrot.slane %v1800, %v1816
    %1822 = vmatprep.subr.mxu0 %v1545
    %1823 = vmatpush1.msra.mxu0 %v1544
    %1824 = vmatprep.subr.mxu0 %v1549
    %1825 = vmatpush1.msra.mxu0 %v1548
    %1826 = vmatprep.subr.mxu0 %v1553
    %1827 = vmatpush1.msra.mxu0 %v1552
    %1828 = vmatprep.subr.mxu0 %v1557
    %1829 = vmatpush1.msra.mxu0 %v1556
    %1830 = vmatprep.subr.mxu0 %v1561
    %1831 = vmatpush1.msra.mxu0 %v1560
    %1832 = vmatprep.subr.mxu0 %v1565
    %1833 = vmatpush1.msra.mxu0 %v1564
    %1834 = vmatprep.subr.mxu0 %v1569
    %1835 = vmatpush1.msra.mxu0 %v1568
    %1836 = vmatprep.subr.mxu0 %v1573
    %1837 = vmatpush1.msra.mxu0 %v1572
    %1838 = vmatprep.subr.mxu0 %v1577
    %1839 = vmatpush1.msra.mxu0 %v1576
    %1840 = vmatprep.subr.mxu0 %v1581
    %1841 = vmatpush1.msra.mxu0 %v1580
    %1842 = vmatprep.subr.mxu0 %v1585
    %1843 = vmatpush1.msra.mxu0 %v1584
    %1844 = vmatprep.subr.mxu0 %v1589
    %1845 = vmatpush1.msra.mxu0 %v1588
    %1846 = vmatprep.subr.mxu0 %v1593
    %1847 = vmatpush1.msra.mxu0 %v1592
    %1848 = vmatprep.subr.mxu0 %v1597
    %1849 = vmatpush1.msra.mxu0 %v1596
    %1850 = vmatprep.subr.mxu0 %v1601
    %1851 = vmatpush1.msra.mxu0 %v1600
    %1852 = vmatprep.subr.mxu0 %v1605
    %1853 = vmatpush1.msra.mxu0 %v1604
    %1854 = vmatprep.subr.mxu0 %v1609
    %1855 = vmatpush1.msra.mxu0 %v1608
    %1856 = vmatprep.subr.mxu0 %v1613
    %1857 = vmatpush1.msra.mxu0 %v1612
    %1858 = vmatprep.subr.mxu0 %v1617
    %1859 = vmatpush1.msra.mxu0 %v1616
    %1860 = vmatprep.subr.mxu0 %v1621
    %1861 = vmatpush1.msra.mxu0 %v1620
    %1862 = vmatprep.subr.mxu0 %v1625
    %1863 = vmatpush1.msra.mxu0 %v1624
    %1864 = vmatprep.subr.mxu0 %v1629
    %1865 = vmatpush1.msra.mxu0 %v1628
    %1866 = vmatprep.subr.mxu0 %v1633
    %1867 = vmatpush1.msra.mxu0 %v1632
    %1868 = vmatprep.subr.mxu0 %v1637
    %1869 = vmatpush1.msra.mxu0 %v1636
    %1870 = vmatprep.subr.mxu0 %v1641
    %1871 = vmatpush1.msra.mxu0 %v1640
    %1872 = vmatprep.subr.mxu0 %v1645
    %1873 = vmatpush1.msra.mxu0 %v1644
    %1874 = vmatprep.subr.mxu0 %v1649
    %1875 = vmatpush1.msra.mxu0 %v1648
    %1876 = vmatprep.subr.mxu0 %v1653
    %1877 = vmatpush1.msra.mxu0 %v1652
    %1878 = vmatprep.subr.mxu0 %v1657
    %1879 = vmatpush1.msra.mxu0 %v1656
    %1880 = vmatprep.subr.mxu0 %v1661
    %1881 = vmatpush1.msra.mxu0 %v1660
    %1882 = vmatprep.subr.mxu0 %v1665
    %1883 = vmatpush1.msra.mxu0 %v1664
    %1884 = vmatprep.subr.mxu0 %v1669
    %1885 = vmatpush1.msra.mxu0 %v1668
    %1886 = vmatprep.mubr.f32.mxu0 %v1537
    %1887 = vmatmul.mubr.f32.gmra.mrb[0].mxu0 %v1536
    %v1888 = vpop.f32.mrb[0].mxu0
    %v1889 = vadd.f32 %v1805, %v1888
    %v1890 = vpop.f32.mrb[0].mxu0
    %v1891 = vadd.f32 %v1809, %v1890
    %1892 = vmatprep.mubr.f32.mxu0 %v1541
    %1893 = vmatmul.mubr.f32.gmra.mrb[0].mxu0 %v1540
    %v1894 = vpop.f32.mrb[0].mxu0
    %v1895 = vadd.f32 %v1805, %v1894
    %v1896 = vpop.f32.mrb[0].mxu0
    %v1897 = vadd.f32 %v1809, %v1896
    %1898 = vdwg.mxu0
    %1899 = vmatprep.subr.mxu0 %v1673
    %1900 = vmatpush1.msra.mxu0 %v1672
    %1901 = vmatprep.subr.mxu0 %v1677
    %1902 = vmatpush1.msra.mxu0 %v1676
    %1903 = vmatprep.subr.mxu0 %v1681
    %1904 = vmatpush1.msra.mxu0 %v1680
    %1905 = vmatprep.subr.mxu0 %v1685
    %1906 = vmatpush1.msra.mxu0 %v1684
    %1907 = vmatprep.subr.mxu0 %v1689
    %1908 = vmatpush1.msra.mxu0 %v1688
    %1909 = vmatprep.subr.mxu0 %v1693
    %1910 = vmatpush1.msra.mxu0 %v1692
    %1911 = vmatprep.subr.mxu0 %v1697
    %1912 = vmatpush1.msra.mxu0 %v1696
    %1913 = vmatprep.subr.mxu0 %v1701
    %1914 = vmatpush1.msra.mxu0 %v1700
    %1915 = vmatprep.subr.mxu0 %v1705
    %1916 = vmatpush1.msra.mxu0 %v1704
    %1917 = vmatprep.subr.mxu0 %v1709
    %1918 = vmatpush1.msra.mxu0 %v1708
    %1919 = vmatprep.subr.mxu0 %v1713
    %1920 = vmatpush1.msra.mxu0 %v1712
    %1921 = vmatprep.subr.mxu0 %v1717
    %1922 = vmatpush1.msra.mxu0 %v1716
    %1923 = vmatprep.subr.mxu0 %v1721
    %1924 = vmatpush1.msra.mxu0 %v1720
    %1925 = vmatprep.subr.mxu0 %v1725
    %1926 = vmatpush1.msra.mxu0 %v1724
    %1927 = vmatprep.subr.mxu0 %v1729
    %1928 = vmatpush1.msra.mxu0 %v1728
    %1929 = vmatprep.subr.mxu0 %v1733
    %1930 = vmatpush1.msra.mxu0 %v1732
    %1931 = vmatprep.subr.mxu0 %v1737
    %1932 = vmatpush1.msra.mxu0 %v1736
    %1933 = vmatprep.subr.mxu0 %v1741
    %1934 = vmatpush1.msra.mxu0 %v1740
    %1935 = vmatprep.subr.mxu0 %v1745
    %1936 = vmatpush1.msra.mxu0 %v1744
    %1937 = vmatprep.subr.mxu0 %v1749
    %1938 = vmatpush1.msra.mxu0 %v1748
    %1939 = vmatprep.subr.mxu0 %v1753
    %1940 = vmatpush1.msra.mxu0 %v1752
    %1941 = vmatprep.subr.mxu0 %v1757
    %1942 = vmatpush1.msra.mxu0 %v1756
    %1943 = vmatprep.subr.mxu0 %v1761
    %1944 = vmatpush1.msra.mxu0 %v1760
    %1945 = vmatprep.subr.mxu0 %v1765
    %1946 = vmatpush1.msra.mxu0 %v1764
    %1947 = vmatprep.subr.mxu0 %v1769
    %1948 = vmatpush1.msra.mxu0 %v1768
    %1949 = vmatprep.subr.mxu0 %v1773
    %1950 = vmatpush1.msra.mxu0 %v1772
    %1951 = vmatprep.subr.mxu0 %v1777
    %1952 = vmatpush1.msra.mxu0 %v1776
    %1953 = vmatprep.subr.mxu0 %v1781
    %1954 = vmatpush1.msra.mxu0 %v1780
    %1955 = vmatprep.subr.mxu0 %v1785
    %1956 = vmatpush1.msra.mxu0 %v1784
    %1957 = vmatprep.subr.mxu0 %v1789
    %1958 = vmatpush1.msra.mxu0 %v1788
    %1959 = vmatprep.subr.mxu0 %v1793
    %1960 = vmatpush1.msra.mxu0 %v1792
    %1961 = vmatprep.subr.mxu0 %v1797
    %1962 = vmatpush1.msra.mxu0 %v1796
    %1963 = vmatprep.mubr.f32.mxu0 %v1539
    %1964 = vmatmul.mubr.f32.gmra.mrb[0].mxu0 %v1538
    %v1965 = vpop.f32.mrb[0].mxu0
    %v1966 = vadd.f32 %v1889, %v1965
    %v1967 = vpop.f32.mrb[0].mxu0
    %v1968 = vadd.f32 %v1891, %v1967
    %1969 = vmatprep.mubr.f32.mxu0 %v1543
    %1970 = vmatmul.mubr.f32.gmra.mrb[0].mxu0 %v1542
    %v1971 = vpop.f32.mrb[0].mxu0
    %v1972 = vadd.f32 %v1895, %v1971
    %v1973 = vpop.f32.mrb[0].mxu0
    %v1974 = vadd.f32 %v1897, %v1973
    %1975 = vdwg.mxu0
    %1976 = vmatprep.subr.mxu0 %v1547
    %1977 = vmatpush1.msra.mxu0 %v1546
    %1978 = vmatprep.subr.mxu0 %v1551
    %1979 = vmatpush1.msra.mxu0 %v1550
    %1980 = vmatprep.subr.mxu0 %v1555
    %1981 = vmatpush1.msra.mxu0 %v1554
    %1982 = vmatprep.subr.mxu0 %v1559
    %1983 = vmatpush1.msra.mxu0 %v1558
    %1984 = vmatprep.subr.mxu0 %v1563
    %1985 = vmatpush1.msra.mxu0 %v1562
    %1986 = vmatprep.subr.mxu0 %v1567
    %1987 = vmatpush1.msra.mxu0 %v1566
    %1988 = vmatprep.subr.mxu0 %v1571
    %1989 = vmatpush1.msra.mxu0 %v1570
    %1990 = vmatprep.subr.mxu0 %v1575
    %1991 = vmatpush1.msra.mxu0 %v1574
    %1992 = vmatprep.subr.mxu0 %v1579
    %1993 = vmatpush1.msra.mxu0 %v1578
    %1994 = vmatprep.subr.mxu0 %v1583
    %1995 = vmatpush1.msra.mxu0 %v1582
    %1996 = vmatprep.subr.mxu0 %v1587
    %1997 = vmatpush1.msra.mxu0 %v1586
    %1998 = vmatprep.subr.mxu0 %v1591
    %1999 = vmatpush1.msra.mxu0 %v1590
    %2000 = vmatprep.subr.mxu0 %v1595
    %2001 = vmatpush1.msra.mxu0 %v1594
    %2002 = vmatprep.subr.mxu0 %v1599
    %2003 = vmatpush1.msra.mxu0 %v1598
    %2004 = vmatprep.subr.mxu0 %v1603
    %2005 = vmatpush1.msra.mxu0 %v1602
    %2006 = vmatprep.subr.mxu0 %v1607
    %2007 = vmatpush1.msra.mxu0 %v1606
    %2008 = vmatprep.subr.mxu0 %v1611
    %2009 = vmatpush1.msra.mxu0 %v1610
    %2010 = vmatprep.subr.mxu0 %v1615
    %2011 = vmatpush1.msra.mxu0 %v1614
    %2012 = vmatprep.subr.mxu0 %v1619
    %2013 = vmatpush1.msra.mxu0 %v1618
    %2014 = vmatprep.subr.mxu0 %v1623
    %2015 = vmatpush1.msra.mxu0 %v1622
    %2016 = vmatprep.subr.mxu0 %v1627
    %2017 = vmatpush1.msra.mxu0 %v1626
    %2018 = vmatprep.subr.mxu0 %v1631
    %2019 = vmatpush1.msra.mxu0 %v1630
    %2020 = vmatprep.subr.mxu0 %v1635
    %2021 = vmatpush1.msra.mxu0 %v1634
    %2022 = vmatprep.subr.mxu0 %v1639
    %2023 = vmatpush1.msra.mxu0 %v1638
    %2024 = vmatprep.subr.mxu0 %v1643
    %2025 = vmatpush1.msra.mxu0 %v1642
    %2026 = vmatprep.subr.mxu0 %v1647
    %2027 = vmatpush1.msra.mxu0 %v1646
    %2028 = vmatprep.subr.mxu0 %v1651
    %2029 = vmatpush1.msra.mxu0 %v1650
    %2030 = vmatprep.subr.mxu0 %v1655
    %2031 = vmatpush1.msra.mxu0 %v1654
    %2032 = vmatprep.subr.mxu0 %v1659
    %2033 = vmatpush1.msra.mxu0 %v1658
    %2034 = vmatprep.subr.mxu0 %v1663
    %2035 = vmatpush1.msra.mxu0 %v1662
    %2036 = vmatprep.subr.mxu0 %v1667
    %2037 = vmatpush1.msra.mxu0 %v1666
    %2038 = vmatprep.subr.mxu0 %v1671
    %2039 = vmatpush1.msra.mxu0 %v1670
    %2040 = vmatprep.mubr.f32.mxu0 %v1537
    %2041 = vmatmul.mubr.f32.gmra.mrb[0].mxu0 %v1536
    %v2042 = vpop.f32.mrb[0].mxu0
    %v2043 = vadd.f32 %v1813, %v2042
    %v2044 = vpop.f32.mrb[0].mxu0
    %v2045 = vadd.f32 %v1817, %v2044
    %2046 = vmatprep.mubr.f32.mxu0 %v1541
    %2047 = vmatmul.mubr.f32.gmra.mrb[0].mxu0 %v1540
    %v2048 = vpop.f32.mrb[0].mxu0
    %v2049 = vadd.f32 %v1813, %v2048
    %v2050 = vpop.f32.mrb[0].mxu0
    %v2051 = vadd.f32 %v1817, %v2050
    %2052 = vdwg.mxu0
    %2053 = vmatprep.subr.mxu0 %v1675
    %2054 = vmatpush1.msra.mxu0 %v1674
    %2055 = vmatprep.subr.mxu0 %v1679
    %2056 = vmatpush1.msra.mxu0 %v1678
    %2057 = vmatprep.subr.mxu0 %v1683
    %2058 = vmatpush1.msra.mxu0 %v1682
    %2059 = vmatprep.subr.mxu0 %v1687
    %2060 = vmatpush1.msra.mxu0 %v1686
    %2061 = vmatprep.subr.mxu0 %v1691
    %2062 = vmatpush1.msra.mxu0 %v1690
    %2063 = vmatprep.subr.mxu0 %v1695
    %2064 = vmatpush1.msra.mxu0 %v1694
    %2065 = vmatprep.subr.mxu0 %v1699
    %2066 = vmatpush1.msra.mxu0 %v1698
    %2067 = vmatprep.subr.mxu0 %v1703
    %2068 = vmatpush1.msra.mxu0 %v1702
    %2069 = vmatprep.subr.mxu0 %v1707
    %2070 = vmatpush1.msra.mxu0 %v1706
    %2071 = vmatprep.subr.mxu0 %v1711
    %2072 = vmatpush1.msra.mxu0 %v1710
    %2073 = vmatprep.subr.mxu0 %v1715
    %2074 = vmatpush1.msra.mxu0 %v1714
    %2075 = vmatprep.subr.mxu0 %v1719
    %2076 = vmatpush1.msra.mxu0 %v1718
    %2077 = vmatprep.subr.mxu0 %v1723
    %2078 = vmatpush1.msra.mxu0 %v1722
    %2079 = vmatprep.subr.mxu0 %v1727
    %2080 = vmatpush1.msra.mxu0 %v1726
    %2081 = vmatprep.subr.mxu0 %v1731
    %2082 = vmatpush1.msra.mxu0 %v1730
    %2083 = vmatprep.subr.mxu0 %v1735
    %2084 = vmatpush1.msra.mxu0 %v1734
    %2085 = vmatprep.subr.mxu0 %v1739
    %2086 = vmatpush1.msra.mxu0 %v1738
    %2087 = vmatprep.subr.mxu0 %v1743
    %2088 = vmatpush1.msra.mxu0 %v1742
    %2089 = vmatprep.subr.mxu0 %v1747
    %2090 = vmatpush1.msra.mxu0 %v1746
    %2091 = vmatprep.subr.mxu0 %v1751
    %2092 = vmatpush1.msra.mxu0 %v1750
    %2093 = vmatprep.subr.mxu0 %v1755
    %2094 = vmatpush1.msra.mxu0 %v1754
    %2095 = vmatprep.subr.mxu0 %v1759
    %2096 = vmatpush1.msra.mxu0 %v1758
    %2097 = vmatprep.subr.mxu0 %v1763
    %2098 = vmatpush1.msra.mxu0 %v1762
    %2099 = vmatprep.subr.mxu0 %v1767
    %2100 = vmatpush1.msra.mxu0 %v1766
    %2101 = vmatprep.subr.mxu0 %v1771
    %2102 = vmatpush1.msra.mxu0 %v1770
    %2103 = vmatprep.subr.mxu0 %v1775
    %2104 = vmatpush1.msra.mxu0 %v1774
    %2105 = vmatprep.subr.mxu0 %v1779
    %2106 = vmatpush1.msra.mxu0 %v1778
    %2107 = vmatprep.subr.mxu0 %v1783
    %2108 = vmatpush1.msra.mxu0 %v1782
    %2109 = vmatprep.subr.mxu0 %v1787
    %2110 = vmatpush1.msra.mxu0 %v1786
    %2111 = vmatprep.subr.mxu0 %v1791
    %2112 = vmatpush1.msra.mxu0 %v1790
    %2113 = vmatprep.subr.mxu0 %v1795
    %2114 = vmatpush1.msra.mxu0 %v1794
    %2115 = vmatprep.subr.mxu0 %v1799
    %2116 = vmatpush1.msra.mxu0 %v1798
    %2117 = vmatprep.mubr.f32.mxu0 %v1539
    %2118 = vmatmul.mubr.f32.gmra.mrb[0].mxu0 %v1538
    %v2119 = vpop.f32.mrb[0].mxu0
    %v2120 = vadd.f32 %v2043, %v2119
    %v2121 = vpop.f32.mrb[0].mxu0
    %v2122 = vadd.f32 %v2045, %v2121
    %2123 = vmatprep.mubr.f32.mxu0 %v1543
    %2124 = vmatmul.mubr.f32.gmra.mrb[0].mxu0 %v1542
    %v2125 = vpop.f32.mrb[0].mxu0
    %v2126 = vadd.f32 %v2049, %v2125
    %v2127 = vpop.f32.mrb[0].mxu0
    %v2128 = vadd.f32 %v2051, %v2127
    %2129 = vdwg.mxu0
    %v2130 = vld [vmem:[%s1] sm:$0xff]
    %v2131 = vld [vmem:[%s1 + $0x8] sm:$0xff]
    %v2132 = vld [vmem:[%s3] sm:$0xff]
    %v2133 = vld [vmem:[%s3 + $0x8] sm:$0xff]
    %v2134 = vld [vmem:[%s10] sm:$0xff]
    %v2135 = vld [vmem:[%s10 + $0x8] sm:$0xff]
    %v2136 = vld [vmem:[%s10 + $0x10] sm:$0xff]
    %v2137 = vld [vmem:[%s10 + $0x18] sm:$0xff]
    %v2138 = vld [vmem:[%s10 + $0x20] sm:$0xff]
    %v2139 = vld [vmem:[%s10 + $0x28] sm:$0xff]
    %v2140 = vld [vmem:[%s10 + $0x30] sm:$0xff]
    %v2141 = vld [vmem:[%s10 + $0x38] sm:$0xff]
    %v2142 = vld [vmem:[%s11] sm:$0xff]
    %v2143 = vld [vmem:[%s11 + $0x8] sm:$0xff]
    %v2144 = vld [vmem:[%s11 + $0x10] sm:$0xff]
    %v2145 = vld [vmem:[%s11 + $0x18] sm:$0xff]
    %v2146 = vld [vmem:[%s12] sm:$0x1]
    %v2147 = vld [vmem:[%s13] sm:$0xff]
    %v2148 = vld [vmem:[%s13 + $0x8] sm:$0xff]
    %v2149 = vld [vmem:[%s13 + $0x10] sm:$0xff]
    %v2150 = vld [vmem:[%s13 + $0x18] sm:$0xff]
    %v2151 = vld [vmem:[%s14] sm:$0x1]
    %v2153 = vsel %vm200, %v2132, 0
    %v2156 = vsel %vm200, %v2133, 0
    %2158 = vmatprep.subr.mxu0 %v2135
    %2159 = vmatpush1.msra.mxu0 %v2134
    %2160 = vmatprep.subr.mxu0 %v2139
    %2161 = vmatpush1.msra.mxu0 %v2138
    %2162 = vmatprep.subr.mxu0 0.0
    %2163 = vmatpush1.msra.mxu0 0.0
    %2164 = vmatprep.subr.mxu0 0.0
    %2165 = vmatpush1.msra.mxu0 0.0
    %2166 = vmatprep.subr.mxu0 0.0
    %2167 = vmatpush1.msra.mxu0 0.0
    %2168 = vmatprep.subr.mxu0 0.0
    %2169 = vmatpush1.msra.mxu0 0.0
    %2170 = vmatprep.subr.mxu0 0.0
    %2171 = vmatpush1.msra.mxu0 0.0
    %2172 = vmatprep.subr.mxu0 0.0
    %2173 = vmatpush1.msra.mxu0 0.0
    %2174 = vmatprep.subr.mxu0 0.0
    %2175 = vmatpush1.msra.mxu0 0.0
    %2176 = vmatprep.subr.mxu0 0.0
    %2177 = vmatpush1.msra.mxu0 0.0
    %2178 = vmatprep.subr.mxu0 0.0
    %2179 = vmatpush1.msra.mxu0 0.0
    %2180 = vmatprep.subr.mxu0 0.0
    %2181 = vmatpush1.msra.mxu0 0.0
    %2182 = vmatprep.subr.mxu0 0.0
    %2183 = vmatpush1.msra.mxu0 0.0
    %2184 = vmatprep.subr.mxu0 0.0
    %2185 = vmatpush1.msra.mxu0 0.0
    %2186 = vmatprep.subr.mxu0 0.0
    %2187 = vmatpush1.msra.mxu0 0.0
    %2188 = vmatprep.subr.mxu0 0.0
    %2189 = vmatpush1.msra.mxu0 0.0
    %2190 = vmatprep.subr.mxu0 0.0
    %2191 = vmatpush1.msra.mxu0 0.0
    %2192 = vmatprep.subr.mxu0 0.0
    %2193 = vmatpush1.msra.mxu0 0.0
    %2194 = vmatprep.subr.mxu0 0.0
    %2195 = vmatpush1.msra.mxu0 0.0
    %2196 = vmatprep.subr.mxu0 0.0
    %2197 = vmatpush1.msra.mxu0 0.0
    %2198 = vmatprep.subr.mxu0 0.0
    %2199 = vmatpush1.msra.mxu0 0.0
    %2200 = vmatprep.subr.mxu0 0.0
    %2201 = vmatpush1.msra.mxu0 0.0
    %2202 = vmatprep.subr.mxu0 0.0
    %2203 = vmatpush1.msra.mxu0 0.0
    %2204 = vmatprep.subr.mxu0 0.0
    %2205 = vmatpush1.msra.mxu0 0.0
    %2206 = vmatprep.subr.mxu0 0.0
    %2207 = vmatpush1.msra.mxu0 0.0
    %2208 = vmatprep.subr.mxu0 0.0
    %2209 = vmatpush1.msra.mxu0 0.0
    %2210 = vmatprep.subr.mxu0 0.0
    %2211 = vmatpush1.msra.mxu0 0.0
    %2212 = vmatprep.subr.mxu0 0.0
    %2213 = vmatpush1.msra.mxu0 0.0
    %2214 = vmatprep.subr.mxu0 0.0
    %2215 = vmatpush1.msra.mxu0 0.0
    %2216 = vmatprep.subr.mxu0 0.0
    %2217 = vmatpush1.msra.mxu0 0.0
    %2218 = vmatprep.subr.mxu0 0.0
    %2219 = vmatpush1.msra.mxu0 0.0
    %2220 = vmatprep.subr.mxu0 0.0
    %2221 = vmatpush1.msra.mxu0 0.0
    %2222 = vmatprep.mubr.f32.mxu0 0.0
    %2223 = vmatmul.mubr.f32.gmra.mrb[0].mxu0 %v2153
    %v2224 = vpop.f32.mrb[0].mxu0
    %v2225 = vadd.f32 0.0, %v2224
    %v2226 = vpop.f32.mrb[0].mxu0
    %v2227 = vadd.f32 0.0, %v2226
    %2228 = vmatprep.mubr.f32.mxu0 0.0
    %2229 = vmatmul.mubr.f32.gmra.mrb[0].mxu0 %v2156
    %v2230 = vpop.f32.mrb[0].mxu0
    %v2231 = vadd.f32 0.0, %v2230
    %v2232 = vpop.f32.mrb[0].mxu0
    %v2233 = vadd.f32 0.0, %v2232
    %2234 = vdwg.mxu0
    %2235 = vmatprep.subr.mxu0 %v2137
    %2236 = vmatpush1.msra.mxu0 %v2136
    %2237 = vmatprep.subr.mxu0 %v2141
    %2238 = vmatpush1.msra.mxu0 %v2140
    %2239 = vmatprep.subr.mxu0 0.0
    %2240 = vmatpush1.msra.mxu0 0.0
    %2241 = vmatprep.subr.mxu0 0.0
    %2242 = vmatpush1.msra.mxu0 0.0
    %2243 = vmatprep.subr.mxu0 0.0
    %2244 = vmatpush1.msra.mxu0 0.0
    %2245 = vmatprep.subr.mxu0 0.0
    %2246 = vmatpush1.msra.mxu0 0.0
    %2247 = vmatprep.subr.mxu0 0.0
    %2248 = vmatpush1.msra.mxu0 0.0
    %2249 = vmatprep.subr.mxu0 0.0
    %2250 = vmatpush1.msra.mxu0 0.0
    %2251 = vmatprep.subr.mxu0 0.0
    %2252 = vmatpush1.msra.mxu0 0.0
    %2253 = vmatprep.subr.mxu0 0.0
    %2254 = vmatpush1.msra.mxu0 0.0
    %2255 = vmatprep.subr.mxu0 0.0
    %2256 = vmatpush1.msra.mxu0 0.0
    %2257 = vmatprep.subr.mxu0 0.0
    %2258 = vmatpush1.msra.mxu0 0.0
    %2259 = vmatprep.subr.mxu0 0.0
    %2260 = vmatpush1.msra.mxu0 0.0
    %2261 = vmatprep.subr.mxu0 0.0
    %2262 = vmatpush1.msra.mxu0 0.0
    %2263 = vmatprep.subr.mxu0 0.0
    %2264 = vmatpush1.msra.mxu0 0.0
    %2265 = vmatprep.subr.mxu0 0.0
    %2266 = vmatpush1.msra.mxu0 0.0
    %2267 = vmatprep.subr.mxu0 0.0
    %2268 = vmatpush1.msra.mxu0 0.0
    %2269 = vmatprep.subr.mxu0 0.0
    %2270 = vmatpush1.msra.mxu0 0.0
    %2271 = vmatprep.subr.mxu0 0.0
    %2272 = vmatpush1.msra.mxu0 0.0
    %2273 = vmatprep.subr.mxu0 0.0
    %2274 = vmatpush1.msra.mxu0 0.0
    %2275 = vmatprep.subr.mxu0 0.0
    %2276 = vmatpush1.msra.mxu0 0.0
    %2277 = vmatprep.subr.mxu0 0.0
    %2278 = vmatpush1.msra.mxu0 0.0
    %2279 = vmatprep.subr.mxu0 0.0
    %2280 = vmatpush1.msra.mxu0 0.0
    %2281 = vmatprep.subr.mxu0 0.0
    %2282 = vmatpush1.msra.mxu0 0.0
    %2283 = vmatprep.subr.mxu0 0.0
    %2284 = vmatpush1.msra.mxu0 0.0
    %2285 = vmatprep.subr.mxu0 0.0
    %2286 = vmatpush1.msra.mxu0 0.0
    %2287 = vmatprep.subr.mxu0 0.0
    %2288 = vmatpush1.msra.mxu0 0.0
    %2289 = vmatprep.subr.mxu0 0.0
    %2290 = vmatpush1.msra.mxu0 0.0
    %2291 = vmatprep.subr.mxu0 0.0
    %2292 = vmatpush1.msra.mxu0 0.0
    %2293 = vmatprep.subr.mxu0 0.0
    %2294 = vmatpush1.msra.mxu0 0.0
    %2295 = vmatprep.subr.mxu0 0.0
    %2296 = vmatpush1.msra.mxu0 0.0
    %2297 = vmatprep.subr.mxu0 0.0
    %2298 = vmatpush1.msra.mxu0 0.0
    %2299 = vmatprep.mubr.f32.mxu0 0.0
    %2300 = vmatmul.mubr.f32.gmra.mrb[0].mxu0 %v2153
    %v2301 = vpop.f32.mrb[0].mxu0
    %v2302 = vadd.f32 0.0, %v2301
    %v2303 = vpop.f32.mrb[0].mxu0
    %v2304 = vadd.f32 0.0, %v2303
    %2305 = vmatprep.mubr.f32.mxu0 0.0
    %2306 = vmatmul.mubr.f32.gmra.mrb[0].mxu0 %v2156
    %v2307 = vpop.f32.mrb[0].mxu0
    %v2308 = vadd.f32 0.0, %v2307
    %v2309 = vpop.f32.mrb[0].mxu0
    %v2310 = vadd.f32 0.0, %v2309
    %2311 = vdwg.mxu0
    %v2312 = vadd.f32 %v1966, %v2225
    %v2313 = vadd.f32 %v1968, %v2227
    %v2314 = vadd.f32 %v2120, %v2302
    %v2315 = vadd.f32 %v2122, %v2304
    %v2316 = vadd.f32 %v1972, %v2231
    %v2317 = vadd.f32 %v1974, %v2233
    %v2318 = vadd.f32 %v2126, %v2308
    %v2319 = vadd.f32 %v2128, %v2310
    %vm2320 = vcmp.ge.f32.partialorder %v2312, 0.0
    %vm2321 = vcmp.ge.f32.partialorder %v2313, 0.0
    %vm2322 = vcmp.ge.f32.partialorder %v2314, 0.0
    %vm2323 = vcmp.ge.f32.partialorder %v2315, 0.0
    %vm2324 = vcmp.ge.f32.partialorder %v2316, 0.0
    %vm2325 = vcmp.ge.f32.partialorder %v2317, 0.0
    %vm2326 = vcmp.ge.f32.partialorder %v2318, 0.0
    %vm2327 = vcmp.ge.f32.partialorder %v2319, 0.0
    %v2328 = vmul.f32 %v2312, 0.2
    %v2329 = vmul.f32 %v2313, 0.2
    %v2330 = vmul.f32 %v2314, 0.2
    %v2331 = vmul.f32 %v2315, 0.2
    %v2332 = vmul.f32 %v2316, 0.2
    %v2333 = vmul.f32 %v2317, 0.2
    %v2334 = vmul.f32 %v2318, 0.2
    %v2335 = vmul.f32 %v2319, 0.2
    %v2336 = vsel %vm2320, %v2312, %v2328
    %v2337 = vsel %vm2321, %v2313, %v2329
    %v2338 = vsel %vm2322, %v2314, %v2330
    %v2339 = vsel %vm2323, %v2315, %v2331
    %v2340 = vsel %vm2324, %v2316, %v2332
    %v2341 = vsel %vm2325, %v2317, %v2333
    %v2342 = vsel %vm2326, %v2318, %v2334
    %v2343 = vsel %vm2327, %v2319, %v2335
    %2344 = vmatprep.subr.mxu0 0.0
    %2345 = vmatpush1.msra.mxu0 %v76
    %2346 = vmatprep.subr.mxu0 0.0
    %2347 = vmatpush1.msra.mxu0 %v77
    %2348 = vmatprep.subr.mxu0 0.0
    %2349 = vmatpush1.msra.mxu0 %v78
    %2350 = vmatprep.subr.mxu0 0.0
    %2351 = vmatpush1.msra.mxu0 %v79
    %2352 = vmatprep.subr.mxu0 0.0
    %2353 = vmatpush1.msra.mxu0 %v80
    %2354 = vmatprep.subr.mxu0 0.0
    %2355 = vmatpush1.msra.mxu0 %v81
    %2356 = vmatprep.subr.mxu0 0.0
    %2357 = vmatpush1.msra.mxu0 %v82
    %2358 = vmatprep.subr.mxu0 0.0
    %2359 = vmatpush1.msra.mxu0 %v83
    %2360 = vmatprep.subr.mxu0 0.0
    %2361 = vmatpush1.msra.mxu0 %v84
    %2362 = vmatprep.subr.mxu0 0.0
    %2363 = vmatpush1.msra.mxu0 %v85
    %2364 = vmatprep.subr.mxu0 0.0
    %2365 = vmatpush1.msra.mxu0 %v86
    %2366 = vmatprep.subr.mxu0 0.0
    %2367 = vmatpush1.msra.mxu0 %v87
    %2368 = vmatprep.subr.mxu0 0.0
    %2369 = vmatpush1.msra.mxu0 %v88
    %2370 = vmatprep.subr.mxu0 0.0
    %2371 = vmatpush1.msra.mxu0 %v89
    %2372 = vmatprep.subr.mxu0 0.0
    %2373 = vmatpush1.msra.mxu0 %v90
    %2374 = vmatprep.subr.mxu0 0.0
    %2375 = vmatpush1.msra.mxu0 %v91
    %2376 = vmatprep.subr.mxu0 0.0
    %2377 = vmatpush1.msra.mxu0 %v92
    %2378 = vmatprep.subr.mxu0 0.0
    %2379 = vmatpush1.msra.mxu0 %v93
    %2380 = vmatprep.subr.mxu0 0.0
    %2381 = vmatpush1.msra.mxu0 %v94
    %2382 = vmatprep.subr.mxu0 0.0
    %2383 = vmatpush1.msra.mxu0 %v95
    %2384 = vmatprep.subr.mxu0 0.0
    %2385 = vmatpush1.msra.mxu0 %v96
    %2386 = vmatprep.subr.mxu0 0.0
    %2387 = vmatpush1.msra.mxu0 %v97
    %2388 = vmatprep.subr.mxu0 0.0
    %2389 = vmatpush1.msra.mxu0 %v98
    %2390 = vmatprep.subr.mxu0 0.0
    %2391 = vmatpush1.msra.mxu0 %v99
    %2392 = vmatprep.subr.mxu0 0.0
    %2393 = vmatpush1.msra.mxu0 %v100
    %2394 = vmatprep.subr.mxu0 0.0
    %2395 = vmatpush1.msra.mxu0 %v101
    %2396 = vmatprep.subr.mxu0 0.0
    %2397 = vmatpush1.msra.mxu0 %v102
    %2398 = vmatprep.subr.mxu0 0.0
    %2399 = vmatpush1.msra.mxu0 %v103
    %2400 = vmatprep.subr.mxu0 0.0
    %2401 = vmatpush1.msra.mxu0 %v104
    %2402 = vmatprep.subr.mxu0 0.0
    %2403 = vmatpush1.msra.mxu0 %v105
    %2404 = vmatprep.subr.mxu0 0.0
    %2405 = vmatpush1.msra.mxu0 %v106
    %2406 = vmatprep.subr.mxu0 0.0
    %2407 = vmatpush1.msra.mxu0 %v107
    %2408 = vmatprep.mubr.f32.mxu0 %v2337
    %2409 = vmatmul.mubr.f32.gmra.mrb[0].mxu0 %v2336
    %v2410 = vpop.f32.mrb[0].mxu0
    %v2411 = vadd.f32 0.0, %v2410
    %v2412 = vpop.f32.mrb[0].mxu0
    %2413 = vmatprep.mubr.f32.mxu0 %v2341
    %2414 = vmatmul.mubr.f32.gmra.mrb[0].mxu0 %v2340
    %v2415 = vpop.f32.mrb[0].mxu0
    %v2416 = vadd.f32 0.0, %v2415
    %v2417 = vpop.f32.mrb[0].mxu0
    %2418 = vdwg.mxu0
    %2419 = vmatprep.subr.mxu0 0.0
    %2420 = vmatpush1.msra.mxu0 %v108
    %2421 = vmatprep.subr.mxu0 0.0
    %2422 = vmatpush1.msra.mxu0 %v109
    %2423 = vmatprep.subr.mxu0 0.0
    %2424 = vmatpush1.msra.mxu0 %v110
    %2425 = vmatprep.subr.mxu0 0.0
    %2426 = vmatpush1.msra.mxu0 %v111
    %2427 = vmatprep.subr.mxu0 0.0
    %2428 = vmatpush1.msra.mxu0 %v112
    %2429 = vmatprep.subr.mxu0 0.0
    %2430 = vmatpush1.msra.mxu0 %v113
    %2431 = vmatprep.subr.mxu0 0.0
    %2432 = vmatpush1.msra.mxu0 %v114
    %2433 = vmatprep.subr.mxu0 0.0
    %2434 = vmatpush1.msra.mxu0 %v115
    %2435 = vmatprep.subr.mxu0 0.0
    %2436 = vmatpush1.msra.mxu0 %v116
    %2437 = vmatprep.subr.mxu0 0.0
    %2438 = vmatpush1.msra.mxu0 %v117
    %2439 = vmatprep.subr.mxu0 0.0
    %2440 = vmatpush1.msra.mxu0 %v118
    %2441 = vmatprep.subr.mxu0 0.0
    %2442 = vmatpush1.msra.mxu0 %v119
    %2443 = vmatprep.subr.mxu0 0.0
    %2444 = vmatpush1.msra.mxu0 %v120
    %2445 = vmatprep.subr.mxu0 0.0
    %2446 = vmatpush1.msra.mxu0 %v121
    %2447 = vmatprep.subr.mxu0 0.0
    %2448 = vmatpush1.msra.mxu0 %v122
    %2449 = vmatprep.subr.mxu0 0.0
    %2450 = vmatpush1.msra.mxu0 %v123
    %2451 = vmatprep.subr.mxu0 0.0
    %2452 = vmatpush1.msra.mxu0 %v124
    %2453 = vmatprep.subr.mxu0 0.0
    %2454 = vmatpush1.msra.mxu0 %v125
    %2455 = vmatprep.subr.mxu0 0.0
    %2456 = vmatpush1.msra.mxu0 %v126
    %2457 = vmatprep.subr.mxu0 0.0
    %2458 = vmatpush1.msra.mxu0 %v127
    %2459 = vmatprep.subr.mxu0 0.0
    %2460 = vmatpush1.msra.mxu0 %v128
    %2461 = vmatprep.subr.mxu0 0.0
    %2462 = vmatpush1.msra.mxu0 %v129
    %2463 = vmatprep.subr.mxu0 0.0
    %2464 = vmatpush1.msra.mxu0 %v130
    %2465 = vmatprep.subr.mxu0 0.0
    %2466 = vmatpush1.msra.mxu0 %v131
    %2467 = vmatprep.subr.mxu0 0.0
    %2468 = vmatpush1.msra.mxu0 %v132
    %2469 = vmatprep.subr.mxu0 0.0
    %2470 = vmatpush1.msra.mxu0 %v133
    %2471 = vmatprep.subr.mxu0 0.0
    %2472 = vmatpush1.msra.mxu0 %v134
    %2473 = vmatprep.subr.mxu0 0.0
    %2474 = vmatpush1.msra.mxu0 %v135
    %2475 = vmatprep.subr.mxu0 0.0
    %2476 = vmatpush1.msra.mxu0 %v136
    %2477 = vmatprep.subr.mxu0 0.0
    %2478 = vmatpush1.msra.mxu0 %v137
    %2479 = vmatprep.subr.mxu0 0.0
    %2480 = vmatpush1.msra.mxu0 %v138
    %2481 = vmatprep.subr.mxu0 0.0
    %2482 = vmatpush1.msra.mxu0 %v139
    %2483 = vmatprep.mubr.f32.mxu0 %v2339
    %2484 = vmatmul.mubr.f32.gmra.mrb[0].mxu0 %v2338
    %v2485 = vpop.f32.mrb[0].mxu0
    %v2486 = vadd.f32 %v2411, %v2485
    %v2487 = vpop.f32.mrb[0].mxu0
    %2488 = vmatprep.mubr.f32.mxu0 %v2343
    %2489 = vmatmul.mubr.f32.gmra.mrb[0].mxu0 %v2342
    %v2490 = vpop.f32.mrb[0].mxu0
    %v2491 = vadd.f32 %v2416, %v2490
    %v2492 = vpop.f32.mrb[0].mxu0
    %2493 = vdwg.mxu0
    %v2495 = vsel %vm543, %v2486, 0
    %v2498 = vsel %vm543, %v2491, 0
    %2500 = vmatprep.subr.mxu0 %v141
    %2501 = vmatpush1.msra.mxu0 %v140
    %2502 = vmatprep.subr.mxu0 %v145
    %2503 = vmatpush1.msra.mxu0 %v144
    %2504 = vmatprep.subr.mxu0 %v149
    %2505 = vmatpush1.msra.mxu0 %v148
    %2506 = vmatprep.subr.mxu0 %v153
    %2507 = vmatpush1.msra.mxu0 %v152
    %2508 = vmatprep.subr.mxu0 0.0
    %2509 = vmatpush1.msra.mxu0 0.0
    %2510 = vmatprep.subr.mxu0 0.0
    %2511 = vmatpush1.msra.mxu0 0.0
    %2512 = vmatprep.subr.mxu0 0.0
    %2513 = vmatpush1.msra.mxu0 0.0
    %2514 = vmatprep.subr.mxu0 0.0
    %2515 = vmatpush1.msra.mxu0 0.0
    %2516 = vmatprep.subr.mxu0 0.0
    %2517 = vmatpush1.msra.mxu0 0.0
    %2518 = vmatprep.subr.mxu0 0.0
    %2519 = vmatpush1.msra.mxu0 0.0
    %2520 = vmatprep.subr.mxu0 0.0
    %2521 = vmatpush1.msra.mxu0 0.0
    %2522 = vmatprep.subr.mxu0 0.0
    %2523 = vmatpush1.msra.mxu0 0.0
    %2524 = vmatprep.subr.mxu0 0.0
    %2525 = vmatpush1.msra.mxu0 0.0
    %2526 = vmatprep.subr.mxu0 0.0
    %2527 = vmatpush1.msra.mxu0 0.0
    %2528 = vmatprep.subr.mxu0 0.0
    %2529 = vmatpush1.msra.mxu0 0.0
    %2530 = vmatprep.subr.mxu0 0.0
    %2531 = vmatpush1.msra.mxu0 0.0
    %2532 = vmatprep.subr.mxu0 0.0
    %2533 = vmatpush1.msra.mxu0 0.0
    %2534 = vmatprep.subr.mxu0 0.0
    %2535 = vmatpush1.msra.mxu0 0.0
    %2536 = vmatprep.subr.mxu0 0.0
    %2537 = vmatpush1.msra.mxu0 0.0
    %2538 = vmatprep.subr.mxu0 0.0
    %2539 = vmatpush1.msra.mxu0 0.0
    %2540 = vmatprep.subr.mxu0 0.0
    %2541 = vmatpush1.msra.mxu0 0.0
    %2542 = vmatprep.subr.mxu0 0.0
    %2543 = vmatpush1.msra.mxu0 0.0
    %2544 = vmatprep.subr.mxu0 0.0
    %2545 = vmatpush1.msra.mxu0 0.0
    %2546 = vmatprep.subr.mxu0 0.0
    %2547 = vmatpush1.msra.mxu0 0.0
    %2548 = vmatprep.subr.mxu0 0.0
    %2549 = vmatpush1.msra.mxu0 0.0
    %2550 = vmatprep.subr.mxu0 0.0
    %2551 = vmatpush1.msra.mxu0 0.0
    %2552 = vmatprep.subr.mxu0 0.0
    %2553 = vmatpush1.msra.mxu0 0.0
    %2554 = vmatprep.subr.mxu0 0.0
    %2555 = vmatpush1.msra.mxu0 0.0
    %2556 = vmatprep.subr.mxu0 0.0
    %2557 = vmatpush1.msra.mxu0 0.0
    %2558 = vmatprep.subr.mxu0 0.0
    %2559 = vmatpush1.msra.mxu0 0.0
    %2560 = vmatprep.subr.mxu0 0.0
    %2561 = vmatpush1.msra.mxu0 0.0
    %2562 = vmatprep.subr.mxu0 0.0
    %2563 = vmatpush1.msra.mxu0 0.0
    %2564 = vmatprep.mubr.f32.mxu0 0.0
    %2565 = vmatmul.mubr.f32.gmra.mrb[0].mxu0 %v2495
    %v2566 = vpop.f32.mrb[0].mxu0
    %v2567 = vadd.f32 0.0, %v2566
    %v2568 = vpop.f32.mrb[0].mxu0
    %v2569 = vadd.f32 0.0, %v2568
    %2570 = vmatprep.mubr.f32.mxu0 0.0
    %2571 = vmatmul.mubr.f32.gmra.mrb[0].mxu0 %v2498
    %v2572 = vpop.f32.mrb[0].mxu0
    %v2573 = vadd.f32 0.0, %v2572
    %v2574 = vpop.f32.mrb[0].mxu0
    %v2575 = vadd.f32 0.0, %v2574
    %2576 = vdwg.mxu0
    %2577 = vmatprep.subr.mxu0 %v143
    %2578 = vmatpush1.msra.mxu0 %v142
    %2579 = vmatprep.subr.mxu0 %v147
    %2580 = vmatpush1.msra.mxu0 %v146
    %2581 = vmatprep.subr.mxu0 %v151
    %2582 = vmatpush1.msra.mxu0 %v150
    %2583 = vmatprep.subr.mxu0 %v155
    %2584 = vmatpush1.msra.mxu0 %v154
    %2585 = vmatprep.subr.mxu0 0.0
    %2586 = vmatpush1.msra.mxu0 0.0
    %2587 = vmatprep.subr.mxu0 0.0
    %2588 = vmatpush1.msra.mxu0 0.0
    %2589 = vmatprep.subr.mxu0 0.0
    %2590 = vmatpush1.msra.mxu0 0.0
    %2591 = vmatprep.subr.mxu0 0.0
    %2592 = vmatpush1.msra.mxu0 0.0
    %2593 = vmatprep.subr.mxu0 0.0
    %2594 = vmatpush1.msra.mxu0 0.0
    %2595 = vmatprep.subr.mxu0 0.0
    %2596 = vmatpush1.msra.mxu0 0.0
    %2597 = vmatprep.subr.mxu0 0.0
    %2598 = vmatpush1.msra.mxu0 0.0
    %2599 = vmatprep.subr.mxu0 0.0
    %2600 = vmatpush1.msra.mxu0 0.0
    %2601 = vmatprep.subr.mxu0 0.0
    %2602 = vmatpush1.msra.mxu0 0.0
    %2603 = vmatprep.subr.mxu0 0.0
    %2604 = vmatpush1.msra.mxu0 0.0
    %2605 = vmatprep.subr.mxu0 0.0
    %2606 = vmatpush1.msra.mxu0 0.0
    %2607 = vmatprep.subr.mxu0 0.0
    %2608 = vmatpush1.msra.mxu0 0.0
    %2609 = vmatprep.subr.mxu0 0.0
    %2610 = vmatpush1.msra.mxu0 0.0
    %2611 = vmatprep.subr.mxu0 0.0
    %2612 = vmatpush1.msra.mxu0 0.0
    %2613 = vmatprep.subr.mxu0 0.0
    %2614 = vmatpush1.msra.mxu0 0.0
    %2615 = vmatprep.subr.mxu0 0.0
    %2616 = vmatpush1.msra.mxu0 0.0
    %2617 = vmatprep.subr.mxu0 0.0
    %2618 = vmatpush1.msra.mxu0 0.0
    %2619 = vmatprep.subr.mxu0 0.0
    %2620 = vmatpush1.msra.mxu0 0.0
    %2621 = vmatprep.subr.mxu0 0.0
    %2622 = vmatpush1.msra.mxu0 0.0
    %2623 = vmatprep.subr.mxu0 0.0
    %2624 = vmatpush1.msra.mxu0 0.0
    %2625 = vmatprep.subr.mxu0 0.0
    %2626 = vmatpush1.msra.mxu0 0.0
    %2627 = vmatprep.subr.mxu0 0.0
    %2628 = vmatpush1.msra.mxu0 0.0
    %2629 = vmatprep.subr.mxu0 0.0
    %2630 = vmatpush1.msra.mxu0 0.0
    %2631 = vmatprep.subr.mxu0 0.0
    %2632 = vmatpush1.msra.mxu0 0.0
    %2633 = vmatprep.subr.mxu0 0.0
    %2634 = vmatpush1.msra.mxu0 0.0
    %2635 = vmatprep.subr.mxu0 0.0
    %2636 = vmatpush1.msra.mxu0 0.0
    %2637 = vmatprep.subr.mxu0 0.0
    %2638 = vmatpush1.msra.mxu0 0.0
    %2639 = vmatprep.subr.mxu0 0.0
    %2640 = vmatpush1.msra.mxu0 0.0
    %2641 = vmatprep.mubr.f32.mxu0 0.0
    %2642 = vmatmul.mubr.f32.gmra.mrb[0].mxu0 %v2495
    %v2643 = vpop.f32.mrb[0].mxu0
    %v2644 = vadd.f32 0.0, %v2643
    %v2645 = vpop.f32.mrb[0].mxu0
    %v2646 = vadd.f32 0.0, %v2645
    %2647 = vmatprep.mubr.f32.mxu0 0.0
    %2648 = vmatmul.mubr.f32.gmra.mrb[0].mxu0 %v2498
    %v2649 = vpop.f32.mrb[0].mxu0
    %v2650 = vadd.f32 0.0, %v2649
    %v2651 = vpop.f32.mrb[0].mxu0
    %v2652 = vadd.f32 0.0, %v2651
    %2653 = vdwg.mxu0
    %v2654 = vsub.f32 %v2336, %v2567
    %v2655 = vsub.f32 %v2337, %v2569
    %v2656 = vsub.f32 %v2338, %v2644
    %v2657 = vsub.f32 %v2339, %v2646
    %v2658 = vsub.f32 %v2340, %v2573
    %v2659 = vsub.f32 %v2341, %v2575
    %v2660 = vsub.f32 %v2342, %v2650
    %v2661 = vsub.f32 %v2343, %v2652
    %v2662 = vmul.f32 %v2654, %v2654
    %v2663 = vmul.f32 %v2655, %v2655
    %v2664 = vmul.f32 %v2656, %v2656
    %v2665 = vmul.f32 %v2657, %v2657
    %v2666 = vmul.f32 %v2658, %v2658
    %v2667 = vmul.f32 %v2659, %v2659
    %v2668 = vmul.f32 %v2660, %v2660
    %v2669 = vmul.f32 %v2661, %v2661
    %2670 = vmatprep.subr.mxu0 0.0
    %2671 = vmatpush1.msra.mxu0 %v76
    %2672 = vmatprep.subr.mxu0 0.0
    %2673 = vmatpush1.msra.mxu0 %v77
    %2674 = vmatprep.subr.mxu0 0.0
    %2675 = vmatpush1.msra.mxu0 %v78
    %2676 = vmatprep.subr.mxu0 0.0
    %2677 = vmatpush1.msra.mxu0 %v79
    %2678 = vmatprep.subr.mxu0 0.0
    %2679 = vmatpush1.msra.mxu0 %v80
    %2680 = vmatprep.subr.mxu0 0.0
    %2681 = vmatpush1.msra.mxu0 %v81
    %2682 = vmatprep.subr.mxu0 0.0
    %2683 = vmatpush1.msra.mxu0 %v82
    %2684 = vmatprep.subr.mxu0 0.0
    %2685 = vmatpush1.msra.mxu0 %v83
    %2686 = vmatprep.subr.mxu0 0.0
    %2687 = vmatpush1.msra.mxu0 %v84
    %2688 = vmatprep.subr.mxu0 0.0
    %2689 = vmatpush1.msra.mxu0 %v85
    %2690 = vmatprep.subr.mxu0 0.0
    %2691 = vmatpush1.msra.mxu0 %v86
    %2692 = vmatprep.subr.mxu0 0.0
    %2693 = vmatpush1.msra.mxu0 %v87
    %2694 = vmatprep.subr.mxu0 0.0
    %2695 = vmatpush1.msra.mxu0 %v88
    %2696 = vmatprep.subr.mxu0 0.0
    %2697 = vmatpush1.msra.mxu0 %v89
    %2698 = vmatprep.subr.mxu0 0.0
    %2699 = vmatpush1.msra.mxu0 %v90
    %2700 = vmatprep.subr.mxu0 0.0
    %2701 = vmatpush1.msra.mxu0 %v91
    %2702 = vmatprep.subr.mxu0 0.0
    %2703 = vmatpush1.msra.mxu0 %v92
    %2704 = vmatprep.subr.mxu0 0.0
    %2705 = vmatpush1.msra.mxu0 %v93
    %2706 = vmatprep.subr.mxu0 0.0
    %2707 = vmatpush1.msra.mxu0 %v94
    %2708 = vmatprep.subr.mxu0 0.0
    %2709 = vmatpush1.msra.mxu0 %v95
    %2710 = vmatprep.subr.mxu0 0.0
    %2711 = vmatpush1.msra.mxu0 %v96
    %2712 = vmatprep.subr.mxu0 0.0
    %2713 = vmatpush1.msra.mxu0 %v97
    %2714 = vmatprep.subr.mxu0 0.0
    %2715 = vmatpush1.msra.mxu0 %v98
    %2716 = vmatprep.subr.mxu0 0.0
    %2717 = vmatpush1.msra.mxu0 %v99
    %2718 = vmatprep.subr.mxu0 0.0
    %2719 = vmatpush1.msra.mxu0 %v100
    %2720 = vmatprep.subr.mxu0 0.0
    %2721 = vmatpush1.msra.mxu0 %v101
    %2722 = vmatprep.subr.mxu0 0.0
    %2723 = vmatpush1.msra.mxu0 %v102
    %2724 = vmatprep.subr.mxu0 0.0
    %2725 = vmatpush1.msra.mxu0 %v103
    %2726 = vmatprep.subr.mxu0 0.0
    %2727 = vmatpush1.msra.mxu0 %v104
    %2728 = vmatprep.subr.mxu0 0.0
    %2729 = vmatpush1.msra.mxu0 %v105
    %2730 = vmatprep.subr.mxu0 0.0
    %2731 = vmatpush1.msra.mxu0 %v106
    %2732 = vmatprep.subr.mxu0 0.0
    %2733 = vmatpush1.msra.mxu0 %v107
    %2734 = vmatprep.mubr.f32.mxu0 %v2663
    %2735 = vmatmul.mubr.f32.gmra.mrb[0].mxu0 %v2662
    %v2736 = vpop.f32.mrb[0].mxu0
    %v2737 = vadd.f32 1e-05, %v2736
    %v2738 = vpop.f32.mrb[0].mxu0
    %2739 = vmatprep.mubr.f32.mxu0 %v2667
    %2740 = vmatmul.mubr.f32.gmra.mrb[0].mxu0 %v2666
    %v2741 = vpop.f32.mrb[0].mxu0
    %v2742 = vadd.f32 1e-05, %v2741
    %v2743 = vpop.f32.mrb[0].mxu0
    %2744 = vdwg.mxu0
    %2745 = vmatprep.subr.mxu0 0.0
    %2746 = vmatpush1.msra.mxu0 %v108
    %2747 = vmatprep.subr.mxu0 0.0
    %2748 = vmatpush1.msra.mxu0 %v109
    %2749 = vmatprep.subr.mxu0 0.0
    %2750 = vmatpush1.msra.mxu0 %v110
    %2751 = vmatprep.subr.mxu0 0.0
    %2752 = vmatpush1.msra.mxu0 %v111
    %2753 = vmatprep.subr.mxu0 0.0
    %2754 = vmatpush1.msra.mxu0 %v112
    %2755 = vmatprep.subr.mxu0 0.0
    %2756 = vmatpush1.msra.mxu0 %v113
    %2757 = vmatprep.subr.mxu0 0.0
    %2758 = vmatpush1.msra.mxu0 %v114
    %2759 = vmatprep.subr.mxu0 0.0
    %2760 = vmatpush1.msra.mxu0 %v115
    %2761 = vmatprep.subr.mxu0 0.0
    %2762 = vmatpush1.msra.mxu0 %v116
    %2763 = vmatprep.subr.mxu0 0.0
    %2764 = vmatpush1.msra.mxu0 %v117
    %2765 = vmatprep.subr.mxu0 0.0
    %2766 = vmatpush1.msra.mxu0 %v118
    %2767 = vmatprep.subr.mxu0 0.0
    %2768 = vmatpush1.msra.mxu0 %v119
    %2769 = vmatprep.subr.mxu0 0.0
    %2770 = vmatpush1.msra.mxu0 %v120
    %2771 = vmatprep.subr.mxu0 0.0
    %2772 = vmatpush1.msra.mxu0 %v121
    %2773 = vmatprep.subr.mxu0 0.0
    %2774 = vmatpush1.msra.mxu0 %v122
    %2775 = vmatprep.subr.mxu0 0.0
    %2776 = vmatpush1.msra.mxu0 %v123
    %2777 = vmatprep.subr.mxu0 0.0
    %2778 = vmatpush1.msra.mxu0 %v124
    %2779 = vmatprep.subr.mxu0 0.0
    %2780 = vmatpush1.msra.mxu0 %v125
    %2781 = vmatprep.subr.mxu0 0.0
    %2782 = vmatpush1.msra.mxu0 %v126
    %2783 = vmatprep.subr.mxu0 0.0
    %2784 = vmatpush1.msra.mxu0 %v127
    %2785 = vmatprep.subr.mxu0 0.0
    %2786 = vmatpush1.msra.mxu0 %v128
    %2787 = vmatprep.subr.mxu0 0.0
    %2788 = vmatpush1.msra.mxu0 %v129
    %2789 = vmatprep.subr.mxu0 0.0
    %2790 = vmatpush1.msra.mxu0 %v130
    %2791 = vmatprep.subr.mxu0 0.0
    %2792 = vmatpush1.msra.mxu0 %v131
    %2793 = vmatprep.subr.mxu0 0.0
    %2794 = vmatpush1.msra.mxu0 %v132
    %2795 = vmatprep.subr.mxu0 0.0
    %2796 = vmatpush1.msra.mxu0 %v133
    %2797 = vmatprep.subr.mxu0 0.0
    %2798 = vmatpush1.msra.mxu0 %v134
    %2799 = vmatprep.subr.mxu0 0.0
    %2800 = vmatpush1.msra.mxu0 %v135
    %2801 = vmatprep.subr.mxu0 0.0
    %2802 = vmatpush1.msra.mxu0 %v136
    %2803 = vmatprep.subr.mxu0 0.0
    %2804 = vmatpush1.msra.mxu0 %v137
    %2805 = vmatprep.subr.mxu0 0.0
    %2806 = vmatpush1.msra.mxu0 %v138
    %2807 = vmatprep.subr.mxu0 0.0
    %2808 = vmatpush1.msra.mxu0 %v139
    %2809 = vmatprep.mubr.f32.mxu0 %v2665
    %2810 = vmatmul.mubr.f32.gmra.mrb[0].mxu0 %v2664
    %v2811 = vpop.f32.mrb[0].mxu0
    %v2812 = vadd.f32 %v2737, %v2811
    %v2813 = vpop.f32.mrb[0].mxu0
    %2814 = vmatprep.mubr.f32.mxu0 %v2669
    %2815 = vmatmul.mubr.f32.gmra.mrb[0].mxu0 %v2668
    %v2816 = vpop.f32.mrb[0].mxu0
    %v2817 = vadd.f32 %v2742, %v2816
    %v2818 = vpop.f32.mrb[0].mxu0
    %2819 = vdwg.mxu0
    %v2820 = vrsqrt.pop %v2812
    %v2821 = vrsqrt.pop %v2817
    %v2823 = vsel %vm543, %v2820, 0
    %v2826 = vsel %vm543, %v2821, 0
    %2828 = vmatprep.subr.mxu0 %v141
    %2829 = vmatpush1.msra.mxu0 %v140
    %2830 = vmatprep.subr.mxu0 %v145
    %2831 = vmatpush1.msra.mxu0 %v144
    %2832 = vmatprep.subr.mxu0 %v149
    %2833 = vmatpush1.msra.mxu0 %v148
    %2834 = vmatprep.subr.mxu0 %v153
    %2835 = vmatpush1.msra.mxu0 %v152
    %2836 = vmatprep.subr.mxu0 0.0
    %2837 = vmatpush1.msra.mxu0 0.0
    %2838 = vmatprep.subr.mxu0 0.0
    %2839 = vmatpush1.msra.mxu0 0.0
    %2840 = vmatprep.subr.mxu0 0.0
    %2841 = vmatpush1.msra.mxu0 0.0
    %2842 = vmatprep.subr.mxu0 0.0
    %2843 = vmatpush1.msra.mxu0 0.0
    %2844 = vmatprep.subr.mxu0 0.0
    %2845 = vmatpush1.msra.mxu0 0.0
    %2846 = vmatprep.subr.mxu0 0.0
    %2847 = vmatpush1.msra.mxu0 0.0
    %2848 = vmatprep.subr.mxu0 0.0
    %2849 = vmatpush1.msra.mxu0 0.0
    %2850 = vmatprep.subr.mxu0 0.0
    %2851 = vmatpush1.msra.mxu0 0.0
    %2852 = vmatprep.subr.mxu0 0.0
    %2853 = vmatpush1.msra.mxu0 0.0
    %2854 = vmatprep.subr.mxu0 0.0
    %2855 = vmatpush1.msra.mxu0 0.0
    %2856 = vmatprep.subr.mxu0 0.0
    %2857 = vmatpush1.msra.mxu0 0.0
    %2858 = vmatprep.subr.mxu0 0.0
    %2859 = vmatpush1.msra.mxu0 0.0
    %2860 = vmatprep.subr.mxu0 0.0
    %2861 = vmatpush1.msra.mxu0 0.0
    %2862 = vmatprep.subr.mxu0 0.0
    %2863 = vmatpush1.msra.mxu0 0.0
    %2864 = vmatprep.subr.mxu0 0.0
    %2865 = vmatpush1.msra.mxu0 0.0
    %2866 = vmatprep.subr.mxu0 0.0
    %2867 = vmatpush1.msra.mxu0 0.0
    %2868 = vmatprep.subr.mxu0 0.0
    %2869 = vmatpush1.msra.mxu0 0.0
    %2870 = vmatprep.subr.mxu0 0.0
    %2871 = vmatpush1.msra.mxu0 0.0
    %2872 = vmatprep.subr.mxu0 0.0
    %2873 = vmatpush1.msra.mxu0 0.0
    %2874 = vmatprep.subr.mxu0 0.0
    %2875 = vmatpush1.msra.mxu0 0.0
    %2876 = vmatprep.subr.mxu0 0.0
    %2877 = vmatpush1.msra.mxu0 0.0
    %2878 = vmatprep.subr.mxu0 0.0
    %2879 = vmatpush1.msra.mxu0 0.0
    %2880 = vmatprep.subr.mxu0 0.0
    %2881 = vmatpush1.msra.mxu0 0.0
    %2882 = vmatprep.subr.mxu0 0.0
    %2883 = vmatpush1.msra.mxu0 0.0
    %2884 = vmatprep.subr.mxu0 0.0
    %2885 = vmatpush1.msra.mxu0 0.0
    %2886 = vmatprep.subr.mxu0 0.0
    %2887 = vmatpush1.msra.mxu0 0.0
    %2888 = vmatprep.subr.mxu0 0.0
    %2889 = vmatpush1.msra.mxu0 0.0
    %2890 = vmatprep.subr.mxu0 0.0
    %2891 = vmatpush1.msra.mxu0 0.0
    %2892 = vmatprep.mubr.f32.mxu0 0.0
    %2893 = vmatmul.mubr.f32.gmra.mrb[0].mxu0 %v2823
    %v2894 = vpop.f32.mrb[0].mxu0
    %v2895 = vadd.f32 0.0, %v2894
    %v2896 = vpop.f32.mrb[0].mxu0
    %v2897 = vadd.f32 0.0, %v2896
    %2898 = vmatprep.mubr.f32.mxu0 0.0
    %2899 = vmatmul.mubr.f32.gmra.mrb[0].mxu0 %v2826
    %v2900 = vpop.f32.mrb[0].mxu0
    %v2901 = vadd.f32 0.0, %v2900
    %v2902 = vpop.f32.mrb[0].mxu0
    %v2903 = vadd.f32 0.0, %v2902
    %2904 = vdwg.mxu0
    %2905 = vmatprep.subr.mxu0 %v143
    %2906 = vmatpush1.msra.mxu0 %v142
    %2907 = vmatprep.subr.mxu0 %v147
    %2908 = vmatpush1.msra.mxu0 %v146
    %2909 = vmatprep.subr.mxu0 %v151
    %2910 = vmatpush1.msra.mxu0 %v150
    %2911 = vmatprep.subr.mxu0 %v155
    %2912 = vmatpush1.msra.mxu0 %v154
    %2913 = vmatprep.subr.mxu0 0.0
    %2914 = vmatpush1.msra.mxu0 0.0
    %2915 = vmatprep.subr.mxu0 0.0
    %2916 = vmatpush1.msra.mxu0 0.0
    %2917 = vmatprep.subr.mxu0 0.0
    %2918 = vmatpush1.msra.mxu0 0.0
    %2919 = vmatprep.subr.mxu0 0.0
    %2920 = vmatpush1.msra.mxu0 0.0
    %2921 = vmatprep.subr.mxu0 0.0
    %2922 = vmatpush1.msra.mxu0 0.0
    %2923 = vmatprep.subr.mxu0 0.0
    %2924 = vmatpush1.msra.mxu0 0.0
    %2925 = vmatprep.subr.mxu0 0.0
    %2926 = vmatpush1.msra.mxu0 0.0
    %2927 = vmatprep.subr.mxu0 0.0
    %2928 = vmatpush1.msra.mxu0 0.0
    %2929 = vmatprep.subr.mxu0 0.0
    %2930 = vmatpush1.msra.mxu0 0.0
    %2931 = vmatprep.subr.mxu0 0.0
    %2932 = vmatpush1.msra.mxu0 0.0
    %2933 = vmatprep.subr.mxu0 0.0
    %2934 = vmatpush1.msra.mxu0 0.0
    %2935 = vmatprep.subr.mxu0 0.0
    %2936 = vmatpush1.msra.mxu0 0.0
    %2937 = vmatprep.subr.mxu0 0.0
    %2938 = vmatpush1.msra.mxu0 0.0
    %2939 = vmatprep.subr.mxu0 0.0
    %2940 = vmatpush1.msra.mxu0 0.0
    %2941 = vmatprep.subr.mxu0 0.0
    %2942 = vmatpush1.msra.mxu0 0.0
    %2943 = vmatprep.subr.mxu0 0.0
    %2944 = vmatpush1.msra.mxu0 0.0
    %2945 = vmatprep.subr.mxu0 0.0
    %2946 = vmatpush1.msra.mxu0 0.0
    %2947 = vmatprep.subr.mxu0 0.0
    %2948 = vmatpush1.msra.mxu0 0.0
    %2949 = vmatprep.subr.mxu0 0.0
    %2950 = vmatpush1.msra.mxu0 0.0
    %2951 = vmatprep.subr.mxu0 0.0
    %2952 = vmatpush1.msra.mxu0 0.0
    %2953 = vmatprep.subr.mxu0 0.0
    %2954 = vmatpush1.msra.mxu0 0.0
    %2955 = vmatprep.subr.mxu0 0.0
    %2956 = vmatpush1.msra.mxu0 0.0
    %2957 = vmatprep.subr.mxu0 0.0
    %2958 = vmatpush1.msra.mxu0 0.0
    %2959 = vmatprep.subr.mxu0 0.0
    %2960 = vmatpush1.msra.mxu0 0.0
    %2961 = vmatprep.subr.mxu0 0.0
    %2962 = vmatpush1.msra.mxu0 0.0
    %2963 = vmatprep.subr.mxu0 0.0
    %2964 = vmatpush1.msra.mxu0 0.0
    %2965 = vmatprep.subr.mxu0 0.0
    %2966 = vmatpush1.msra.mxu0 0.0
    %2967 = vmatprep.subr.mxu0 0.0
    %2968 = vmatpush1.msra.mxu0 0.0
    %2969 = vmatprep.mubr.f32.mxu0 0.0
    %2970 = vmatmul.mubr.f32.gmra.mrb[0].mxu0 %v2823
    %v2971 = vpop.f32.mrb[0].mxu0
    %v2972 = vadd.f32 0.0, %v2971
    %v2973 = vpop.f32.mrb[0].mxu0
    %v2974 = vadd.f32 0.0, %v2973
    %2975 = vmatprep.mubr.f32.mxu0 0.0
    %2976 = vmatmul.mubr.f32.gmra.mrb[0].mxu0 %v2826
    %v2977 = vpop.f32.mrb[0].mxu0
    %v2978 = vadd.f32 0.0, %v2977
    %v2979 = vpop.f32.mrb[0].mxu0
    %v2980 = vadd.f32 0.0, %v2979
    %2981 = vdwg.mxu0
    %v2982 = vmul.f32 %v2654, %v2895
    %v2983 = vmul.f32 %v2655, %v2897
    %v2984 = vmul.f32 %v2656, %v2972
    %v2985 = vmul.f32 %v2657, %v2974
    %v2986 = vmul.f32 %v2658, %v2901
    %v2987 = vmul.f32 %v2659, %v2903
    %v2988 = vmul.f32 %v2660, %v2978
    %v2989 = vmul.f32 %v2661, %v2980
    %v2991 = vlaneseq
    %v2992 = vshrl.u32 %v2991, 7
    %v2993 = vsub.s32 0, %v2992
    %v2994 = vrot.slane %v2146, %v2993
    %v2997 = vsel %vm543, %v2130, 0
    %v3000 = vsel %vm543, %v2131, 0
    %3002 = vmatprep.subr.mxu0 0.0
    %3003 = vmatpush1.msra.mxu0 %v2142
    %3004 = vmatprep.subr.mxu0 0.0
    %3005 = vmatpush1.msra.mxu0 %v2143
    %3006 = vmatprep.subr.mxu0 0.0
    %3007 = vmatpush1.msra.mxu0 %v2144
    %3008 = vmatprep.subr.mxu0 0.0
    %3009 = vmatpush1.msra.mxu0 %v2145
    %3010 = vmatprep.subr.mxu0 0.0
    %3011 = vmatpush1.msra.mxu0 0.0
    %3012 = vmatprep.subr.mxu0 0.0
    %3013 = vmatpush1.msra.mxu0 0.0
    %3014 = vmatprep.subr.mxu0 0.0
    %3015 = vmatpush1.msra.mxu0 0.0
    %3016 = vmatprep.subr.mxu0 0.0
    %3017 = vmatpush1.msra.mxu0 0.0
    %3018 = vmatprep.subr.mxu0 0.0
    %3019 = vmatpush1.msra.mxu0 0.0
    %3020 = vmatprep.subr.mxu0 0.0
    %3021 = vmatpush1.msra.mxu0 0.0
    %3022 = vmatprep.subr.mxu0 0.0
    %3023 = vmatpush1.msra.mxu0 0.0
    %3024 = vmatprep.subr.mxu0 0.0
    %3025 = vmatpush1.msra.mxu0 0.0
    %3026 = vmatprep.subr.mxu0 0.0
    %3027 = vmatpush1.msra.mxu0 0.0
    %3028 = vmatprep.subr.mxu0 0.0
    %3029 = vmatpush1.msra.mxu0 0.0
    %3030 = vmatprep.subr.mxu0 0.0
    %3031 = vmatpush1.msra.mxu0 0.0
    %3032 = vmatprep.subr.mxu0 0.0
    %3033 = vmatpush1.msra.mxu0 0.0
    %3034 = vmatprep.subr.mxu0 0.0
    %3035 = vmatpush1.msra.mxu0 0.0
    %3036 = vmatprep.subr.mxu0 0.0
    %3037 = vmatpush1.msra.mxu0 0.0
    %3038 = vmatprep.subr.mxu0 0.0
    %3039 = vmatpush1.msra.mxu0 0.0
    %3040 = vmatprep.subr.mxu0 0.0
    %3041 = vmatpush1.msra.mxu0 0.0
    %3042 = vmatprep.subr.mxu0 0.0
    %3043 = vmatpush1.msra.mxu0 0.0
    %3044 = vmatprep.subr.mxu0 0.0
    %3045 = vmatpush1.msra.mxu0 0.0
    %3046 = vmatprep.subr.mxu0 0.0
    %3047 = vmatpush1.msra.mxu0 0.0
    %3048 = vmatprep.subr.mxu0 0.0
    %3049 = vmatpush1.msra.mxu0 0.0
    %3050 = vmatprep.subr.mxu0 0.0
    %3051 = vmatpush1.msra.mxu0 0.0
    %3052 = vmatprep.subr.mxu0 0.0
    %3053 = vmatpush1.msra.mxu0 0.0
    %3054 = vmatprep.subr.mxu0 0.0
    %3055 = vmatpush1.msra.mxu0 0.0
    %3056 = vmatprep.subr.mxu0 0.0
    %3057 = vmatpush1.msra.mxu0 0.0
    %3058 = vmatprep.subr.mxu0 0.0
    %3059 = vmatpush1.msra.mxu0 0.0
    %3060 = vmatprep.subr.mxu0 0.0
    %3061 = vmatpush1.msra.mxu0 0.0
    %3062 = vmatprep.subr.mxu0 0.0
    %3063 = vmatpush1.msra.mxu0 0.0
    %3064 = vmatprep.subr.mxu0 0.0
    %3065 = vmatpush1.msra.mxu0 0.0
    %3066 = vmatprep.mubr.f32.mxu0 0.0
    %3067 = vmatmul.mubr.f32.gmra.mrb[0].mxu0 %v2997
    %v3068 = vpop.f32.mrb[0].mxu0
    %v3069 = vadd.f32 %v2994, %v3068
    %v3070 = vpop.f32.mrb[0].mxu0
    %3071 = vmatprep.mubr.f32.mxu0 0.0
    %3072 = vmatmul.mubr.f32.gmra.mrb[0].mxu0 %v3000
    %v3073 = vpop.f32.mrb[0].mxu0
    %v3074 = vadd.f32 %v2994, %v3073
    %v3075 = vpop.f32.mrb[0].mxu0
    %3076 = vdwg.mxu0
    %v3078 = vlaneseq
    %v3079 = vshrl.u32 %v3078, 7
    %v3080 = vsub.s32 0, %v3079
    %v3081 = vrot.slane %v2151, %v3080
    %3083 = vmatprep.subr.mxu0 0.0
    %3084 = vmatpush1.msra.mxu0 %v2147
    %3085 = vmatprep.subr.mxu0 0.0
    %3086 = vmatpush1.msra.mxu0 %v2148
    %3087 = vmatprep.subr.mxu0 0.0
    %3088 = vmatpush1.msra.mxu0 %v2149
    %3089 = vmatprep.subr.mxu0 0.0
    %3090 = vmatpush1.msra.mxu0 %v2150
    %3091 = vmatprep.subr.mxu0 0.0
    %3092 = vmatpush1.msra.mxu0 0.0
    %3093 = vmatprep.subr.mxu0 0.0
    %3094 = vmatpush1.msra.mxu0 0.0
    %3095 = vmatprep.subr.mxu0 0.0
    %3096 = vmatpush1.msra.mxu0 0.0
    %3097 = vmatprep.subr.mxu0 0.0
    %3098 = vmatpush1.msra.mxu0 0.0
    %3099 = vmatprep.subr.mxu0 0.0
    %3100 = vmatpush1.msra.mxu0 0.0
    %3101 = vmatprep.subr.mxu0 0.0
    %3102 = vmatpush1.msra.mxu0 0.0
    %3103 = vmatprep.subr.mxu0 0.0
    %3104 = vmatpush1.msra.mxu0 0.0
    %3105 = vmatprep.subr.mxu0 0.0
    %3106 = vmatpush1.msra.mxu0 0.0
    %3107 = vmatprep.subr.mxu0 0.0
    %3108 = vmatpush1.msra.mxu0 0.0
    %3109 = vmatprep.subr.mxu0 0.0
    %3110 = vmatpush1.msra.mxu0 0.0
    %3111 = vmatprep.subr.mxu0 0.0
    %3112 = vmatpush1.msra.mxu0 0.0
    %3113 = vmatprep.subr.mxu0 0.0
    %3114 = vmatpush1.msra.mxu0 0.0
    %3115 = vmatprep.subr.mxu0 0.0
    %3116 = vmatpush1.msra.mxu0 0.0
    %3117 = vmatprep.subr.mxu0 0.0
    %3118 = vmatpush1.msra.mxu0 0.0
    %3119 = vmatprep.subr.mxu0 0.0
    %3120 = vmatpush1.msra.mxu0 0.0
    %3121 = vmatprep.subr.mxu0 0.0
    %3122 = vmatpush1.msra.mxu0 0.0
    %3123 = vmatprep.subr.mxu0 0.0
    %3124 = vmatpush1.msra.mxu0 0.0
    %3125 = vmatprep.subr.mxu0 0.0
    %3126 = vmatpush1.msra.mxu0 0.0
    %3127 = vmatprep.subr.mxu0 0.0
    %3128 = vmatpush1.msra.mxu0 0.0
    %3129 = vmatprep.subr.mxu0 0.0
    %3130 = vmatpush1.msra.mxu0 0.0
    %3131 = vmatprep.subr.mxu0 0.0
    %3132 = vmatpush1.msra.mxu0 0.0
    %3133 = vmatprep.subr.mxu0 0.0
    %3134 = vmatpush1.msra.mxu0 0.0
    %3135 = vmatprep.subr.mxu0 0.0
    %3136 = vmatpush1.msra.mxu0 0.0
    %3137 = vmatprep.subr.mxu0 0.0
    %3138 = vmatpush1.msra.mxu0 0.0
    %3139 = vmatprep.subr.mxu0 0.0
    %3140 = vmatpush1.msra.mxu0 0.0
    %3141 = vmatprep.subr.mxu0 0.0
    %3142 = vmatpush1.msra.mxu0 0.0
    %3143 = vmatprep.subr.mxu0 0.0
    %3144 = vmatpush1.msra.mxu0 0.0
    %3145 = vmatprep.subr.mxu0 0.0
    %3146 = vmatpush1.msra.mxu0 0.0
    %3147 = vmatprep.mubr.f32.mxu0 0.0
    %3148 = vmatmul.mubr.f32.gmra.mrb[0].mxu0 %v2997
    %v3149 = vpop.f32.mrb[0].mxu0
    %v3150 = vadd.f32 %v3081, %v3149
    %v3151 = vpop.f32.mrb[0].mxu0
    %3152 = vmatprep.mubr.f32.mxu0 0.0
    %3153 = vmatmul.mubr.f32.gmra.mrb[0].mxu0 %v3000
    %v3154 = vpop.f32.mrb[0].mxu0
    %v3155 = vadd.f32 %v3081, %v3154
    %v3156 = vpop.f32.mrb[0].mxu0
    %3157 = vdwg.mxu0
    %v3159 = vsel %vm543, %v3069, 0
    %v3162 = vsel %vm543, %v3074, 0
    %3164 = vmatprep.subr.mxu0 %v141
    %3165 = vmatpush1.msra.mxu0 %v140
    %3166 = vmatprep.subr.mxu0 %v145
    %3167 = vmatpush1.msra.mxu0 %v144
    %3168 = vmatprep.subr.mxu0 %v149
    %3169 = vmatpush1.msra.mxu0 %v148
    %3170 = vmatprep.subr.mxu0 %v153
    %3171 = vmatpush1.msra.mxu0 %v152
    %3172 = vmatprep.subr.mxu0 0.0
    %3173 = vmatpush1.msra.mxu0 0.0
    %3174 = vmatprep.subr.mxu0 0.0
    %3175 = vmatpush1.msra.mxu0 0.0
    %3176 = vmatprep.subr.mxu0 0.0
    %3177 = vmatpush1.msra.mxu0 0.0
    %3178 = vmatprep.subr.mxu0 0.0
    %3179 = vmatpush1.msra.mxu0 0.0
    %3180 = vmatprep.subr.mxu0 0.0
    %3181 = vmatpush1.msra.mxu0 0.0
    %3182 = vmatprep.subr.mxu0 0.0
    %3183 = vmatpush1.msra.mxu0 0.0
    %3184 = vmatprep.subr.mxu0 0.0
    %3185 = vmatpush1.msra.mxu0 0.0
    %3186 = vmatprep.subr.mxu0 0.0
    %3187 = vmatpush1.msra.mxu0 0.0
    %3188 = vmatprep.subr.mxu0 0.0
    %3189 = vmatpush1.msra.mxu0 0.0
    %3190 = vmatprep.subr.mxu0 0.0
    %3191 = vmatpush1.msra.mxu0 0.0
    %3192 = vmatprep.subr.mxu0 0.0
    %3193 = vmatpush1.msra.mxu0 0.0
    %3194 = vmatprep.subr.mxu0 0.0
    %3195 = vmatpush1.msra.mxu0 0.0
    %3196 = vmatprep.subr.mxu0 0.0
    %3197 = vmatpush1.msra.mxu0 0.0
    %3198 = vmatprep.subr.mxu0 0.0
    %3199 = vmatpush1.msra.mxu0 0.0
    %3200 = vmatprep.subr.mxu0 0.0
    %3201 = vmatpush1.msra.mxu0 0.0
    %3202 = vmatprep.subr.mxu0 0.0
    %3203 = vmatpush1.msra.mxu0 0.0
    %3204 = vmatprep.subr.mxu0 0.0
    %3205 = vmatpush1.msra.mxu0 0.0
    %3206 = vmatprep.subr.mxu0 0.0
    %3207 = vmatpush1.msra.mxu0 0.0
    %3208 = vmatprep.subr.mxu0 0.0
    %3209 = vmatpush1.msra.mxu0 0.0
    %3210 = vmatprep.subr.mxu0 0.0
    %3211 = vmatpush1.msra.mxu0 0.0
    %3212 = vmatprep.subr.mxu0 0.0
    %3213 = vmatpush1.msra.mxu0 0.0
    %3214 = vmatprep.subr.mxu0 0.0
    %3215 = vmatpush1.msra.mxu0 0.0
    %3216 = vmatprep.subr.mxu0 0.0
    %3217 = vmatpush1.msra.mxu0 0.0
    %3218 = vmatprep.subr.mxu0 0.0
    %3219 = vmatpush1.msra.mxu0 0.0
    %3220 = vmatprep.subr.mxu0 0.0
    %3221 = vmatpush1.msra.mxu0 0.0
    %3222 = vmatprep.subr.mxu0 0.0
    %3223 = vmatpush1.msra.mxu0 0.0
    %3224 = vmatprep.subr.mxu0 0.0
    %3225 = vmatpush1.msra.mxu0 0.0
    %3226 = vmatprep.subr.mxu0 0.0
    %3227 = vmatpush1.msra.mxu0 0.0
    %3228 = vmatprep.mubr.f32.mxu0 0.0
    %3229 = vmatmul.mubr.f32.gmra.mrb[0].mxu0 %v3159
    %v3230 = vpop.f32.mrb[0].mxu0
    %v3231 = vadd.f32 0.0, %v3230
    %v3232 = vpop.f32.mrb[0].mxu0
    %v3233 = vadd.f32 0.0, %v3232
    %3234 = vmatprep.mubr.f32.mxu0 0.0
    %3235 = vmatmul.mubr.f32.gmra.mrb[0].mxu0 %v3162
    %v3236 = vpop.f32.mrb[0].mxu0
    %v3237 = vadd.f32 0.0, %v3236
    %v3238 = vpop.f32.mrb[0].mxu0
    %v3239 = vadd.f32 0.0, %v3238
    %3240 = vdwg.mxu0
    %3241 = vmatprep.subr.mxu0 %v143
    %3242 = vmatpush1.msra.mxu0 %v142
    %3243 = vmatprep.subr.mxu0 %v147
    %3244 = vmatpush1.msra.mxu0 %v146
    %3245 = vmatprep.subr.mxu0 %v151
    %3246 = vmatpush1.msra.mxu0 %v150
    %3247 = vmatprep.subr.mxu0 %v155
    %3248 = vmatpush1.msra.mxu0 %v154
    %3249 = vmatprep.subr.mxu0 0.0
    %3250 = vmatpush1.msra.mxu0 0.0
    %3251 = vmatprep.subr.mxu0 0.0
    %3252 = vmatpush1.msra.mxu0 0.0
    %3253 = vmatprep.subr.mxu0 0.0
    %3254 = vmatpush1.msra.mxu0 0.0
    %3255 = vmatprep.subr.mxu0 0.0
    %3256 = vmatpush1.msra.mxu0 0.0
    %3257 = vmatprep.subr.mxu0 0.0
    %3258 = vmatpush1.msra.mxu0 0.0
    %3259 = vmatprep.subr.mxu0 0.0
    %3260 = vmatpush1.msra.mxu0 0.0
    %3261 = vmatprep.subr.mxu0 0.0
    %3262 = vmatpush1.msra.mxu0 0.0
    %3263 = vmatprep.subr.mxu0 0.0
    %3264 = vmatpush1.msra.mxu0 0.0
    %3265 = vmatprep.subr.mxu0 0.0
    %3266 = vmatpush1.msra.mxu0 0.0
    %3267 = vmatprep.subr.mxu0 0.0
    %3268 = vmatpush1.msra.mxu0 0.0
    %3269 = vmatprep.subr.mxu0 0.0
    %3270 = vmatpush1.msra.mxu0 0.0
    %3271 = vmatprep.subr.mxu0 0.0
    %3272 = vmatpush1.msra.mxu0 0.0
    %3273 = vmatprep.subr.mxu0 0.0
    %3274 = vmatpush1.msra.mxu0 0.0
    %3275 = vmatprep.subr.mxu0 0.0
    %3276 = vmatpush1.msra.mxu0 0.0
    %3277 = vmatprep.subr.mxu0 0.0
    %3278 = vmatpush1.msra.mxu0 0.0
    %3279 = vmatprep.subr.mxu0 0.0
    %3280 = vmatpush1.msra.mxu0 0.0
    %3281 = vmatprep.subr.mxu0 0.0
    %3282 = vmatpush1.msra.mxu0 0.0
    %3283 = vmatprep.subr.mxu0 0.0
    %3284 = vmatpush1.msra.mxu0 0.0
    %3285 = vmatprep.subr.mxu0 0.0
    %3286 = vmatpush1.msra.mxu0 0.0
    %3287 = vmatprep.subr.mxu0 0.0
    %3288 = vmatpush1.msra.mxu0 0.0
    %3289 = vmatprep.subr.mxu0 0.0
    %3290 = vmatpush1.msra.mxu0 0.0
    %3291 = vmatprep.subr.mxu0 0.0
    %3292 = vmatpush1.msra.mxu0 0.0
    %3293 = vmatprep.subr.mxu0 0.0
    %3294 = vmatpush1.msra.mxu0 0.0
    %3295 = vmatprep.subr.mxu0 0.0
    %3296 = vmatpush1.msra.mxu0 0.0
    %3297 = vmatprep.subr.mxu0 0.0
    %3298 = vmatpush1.msra.mxu0 0.0
    %3299 = vmatprep.subr.mxu0 0.0
    %3300 = vmatpush1.msra.mxu0 0.0
    %3301 = vmatprep.subr.mxu0 0.0
    %3302 = vmatpush1.msra.mxu0 0.0
    %3303 = vmatprep.subr.mxu0 0.0
    %3304 = vmatpush1.msra.mxu0 0.0
    %3305 = vmatprep.mubr.f32.mxu0 0.0
    %3306 = vmatmul.mubr.f32.gmra.mrb[0].mxu0 %v3159
    %v3307 = vpop.f32.mrb[0].mxu0
    %v3308 = vadd.f32 0.0, %v3307
    %v3309 = vpop.f32.mrb[0].mxu0
    %v3310 = vadd.f32 0.0, %v3309
    %3311 = vmatprep.mubr.f32.mxu0 0.0
    %3312 = vmatmul.mubr.f32.gmra.mrb[0].mxu0 %v3162
    %v3313 = vpop.f32.mrb[0].mxu0
    %v3314 = vadd.f32 0.0, %v3313
    %v3315 = vpop.f32.mrb[0].mxu0
    %v3316 = vadd.f32 0.0, %v3315
    %3317 = vdwg.mxu0
    %v3318 = vmul.f32 %v2982, %v3231
    %v3319 = vmul.f32 %v2983, %v3233
    %v3320 = vmul.f32 %v2984, %v3308
    %v3321 = vmul.f32 %v2985, %v3310
    %v3322 = vmul.f32 %v2986, %v3237
    %v3323 = vmul.f32 %v2987, %v3239
    %v3324 = vmul.f32 %v2988, %v3314
    %v3325 = vmul.f32 %v2989, %v3316
    %v3327 = vsel %vm543, %v3150, 0
    %v3330 = vsel %vm543, %v3155, 0
    %3332 = vmatprep.subr.mxu0 %v141
    %3333 = vmatpush1.msra.mxu0 %v140
    %3334 = vmatprep.subr.mxu0 %v145
    %3335 = vmatpush1.msra.mxu0 %v144
    %3336 = vmatprep.subr.mxu0 %v149
    %3337 = vmatpush1.msra.mxu0 %v148
    %3338 = vmatprep.subr.mxu0 %v153
    %3339 = vmatpush1.msra.mxu0 %v152
    %3340 = vmatprep.subr.mxu0 0.0
    %3341 = vmatpush1.msra.mxu0 0.0
    %3342 = vmatprep.subr.mxu0 0.0
    %3343 = vmatpush1.msra.mxu0 0.0
    %3344 = vmatprep.subr.mxu0 0.0
    %3345 = vmatpush1.msra.mxu0 0.0
    %3346 = vmatprep.subr.mxu0 0.0
    %3347 = vmatpush1.msra.mxu0 0.0
    %3348 = vmatprep.subr.mxu0 0.0
    %3349 = vmatpush1.msra.mxu0 0.0
    %3350 = vmatprep.subr.mxu0 0.0
    %3351 = vmatpush1.msra.mxu0 0.0
    %3352 = vmatprep.subr.mxu0 0.0
    %3353 = vmatpush1.msra.mxu0 0.0
    %3354 = vmatprep.subr.mxu0 0.0
    %3355 = vmatpush1.msra.mxu0 0.0
    %3356 = vmatprep.subr.mxu0 0.0
    %3357 = vmatpush1.msra.mxu0 0.0
    %3358 = vmatprep.subr.mxu0 0.0
    %3359 = vmatpush1.msra.mxu0 0.0
    %3360 = vmatprep.subr.mxu0 0.0
    %3361 = vmatpush1.msra.mxu0 0.0
    %3362 = vmatprep.subr.mxu0 0.0
    %3363 = vmatpush1.msra.mxu0 0.0
    %3364 = vmatprep.subr.mxu0 0.0
    %3365 = vmatpush1.msra.mxu0 0.0
    %3366 = vmatprep.subr.mxu0 0.0
    %3367 = vmatpush1.msra.mxu0 0.0
    %3368 = vmatprep.subr.mxu0 0.0
    %3369 = vmatpush1.msra.mxu0 0.0
    %3370 = vmatprep.subr.mxu0 0.0
    %3371 = vmatpush1.msra.mxu0 0.0
    %3372 = vmatprep.subr.mxu0 0.0
    %3373 = vmatpush1.msra.mxu0 0.0
    %3374 = vmatprep.subr.mxu0 0.0
    %3375 = vmatpush1.msra.mxu0 0.0
    %3376 = vmatprep.subr.mxu0 0.0
    %3377 = vmatpush1.msra.mxu0 0.0
    %3378 = vmatprep.subr.mxu0 0.0
    %3379 = vmatpush1.msra.mxu0 0.0
    %3380 = vmatprep.subr.mxu0 0.0
    %3381 = vmatpush1.msra.mxu0 0.0
    %3382 = vmatprep.subr.mxu0 0.0
    %3383 = vmatpush1.msra.mxu0 0.0
    %3384 = vmatprep.subr.mxu0 0.0
    %3385 = vmatpush1.msra.mxu0 0.0
    %3386 = vmatprep.subr.mxu0 0.0
    %3387 = vmatpush1.msra.mxu0 0.0
    %3388 = vmatprep.subr.mxu0 0.0
    %3389 = vmatpush1.msra.mxu0 0.0
    %3390 = vmatprep.subr.mxu0 0.0
    %3391 = vmatpush1.msra.mxu0 0.0
    %3392 = vmatprep.subr.mxu0 0.0
    %3393 = vmatpush1.msra.mxu0 0.0
    %3394 = vmatprep.subr.mxu0 0.0
    %3395 = vmatpush1.msra.mxu0 0.0
    %3396 = vmatprep.mubr.f32.mxu0 0.0
    %3397 = vmatmul.mubr.f32.gmra.mrb[0].mxu0 %v3327
    %v3398 = vpop.f32.mrb[0].mxu0
    %v3399 = vadd.f32 0.0, %v3398
    %v3400 = vpop.f32.mrb[0].mxu0
    %v3401 = vadd.f32 0.0, %v3400
    %3402 = vmatprep.mubr.f32.mxu0 0.0
    %3403 = vmatmul.mubr.f32.gmra.mrb[0].mxu0 %v3330
    %v3404 = vpop.f32.mrb[0].mxu0
    %v3405 = vadd.f32 0.0, %v3404
    %v3406 = vpop.f32.mrb[0].mxu0
    %v3407 = vadd.f32 0.0, %v3406
    %3408 = vdwg.mxu0
    %3409 = vmatprep.subr.mxu0 %v143
    %3410 = vmatpush1.msra.mxu0 %v142
    %3411 = vmatprep.subr.mxu0 %v147
    %3412 = vmatpush1.msra.mxu0 %v146
    %3413 = vmatprep.subr.mxu0 %v151
    %3414 = vmatpush1.msra.mxu0 %v150
    %3415 = vmatprep.subr.mxu0 %v155
    %3416 = vmatpush1.msra.mxu0 %v154
    %3417 = vmatprep.subr.mxu0 0.0
    %3418 = vmatpush1.msra.mxu0 0.0
    %3419 = vmatprep.subr.mxu0 0.0
    %3420 = vmatpush1.msra.mxu0 0.0
    %3421 = vmatprep.subr.mxu0 0.0
    %3422 = vmatpush1.msra.mxu0 0.0
    %3423 = vmatprep.subr.mxu0 0.0
    %3424 = vmatpush1.msra.mxu0 0.0
    %3425 = vmatprep.subr.mxu0 0.0
    %3426 = vmatpush1.msra.mxu0 0.0
    %3427 = vmatprep.subr.mxu0 0.0
    %3428 = vmatpush1.msra.mxu0 0.0
    %3429 = vmatprep.subr.mxu0 0.0
    %3430 = vmatpush1.msra.mxu0 0.0
    %3431 = vmatprep.subr.mxu0 0.0
    %3432 = vmatpush1.msra.mxu0 0.0
    %3433 = vmatprep.subr.mxu0 0.0
    %3434 = vmatpush1.msra.mxu0 0.0
    %3435 = vmatprep.subr.mxu0 0.0
    %3436 = vmatpush1.msra.mxu0 0.0
    %3437 = vmatprep.subr.mxu0 0.0
    %3438 = vmatpush1.msra.mxu0 0.0
    %3439 = vmatprep.subr.mxu0 0.0
    %3440 = vmatpush1.msra.mxu0 0.0
    %3441 = vmatprep.subr.mxu0 0.0
    %3442 = vmatpush1.msra.mxu0 0.0
    %3443 = vmatprep.subr.mxu0 0.0
    %3444 = vmatpush1.msra.mxu0 0.0
    %3445 = vmatprep.subr.mxu0 0.0
    %3446 = vmatpush1.msra.mxu0 0.0
    %3447 = vmatprep.subr.mxu0 0.0
    %3448 = vmatpush1.msra.mxu0 0.0
    %3449 = vmatprep.subr.mxu0 0.0
    %3450 = vmatpush1.msra.mxu0 0.0
    %3451 = vmatprep.subr.mxu0 0.0
    %3452 = vmatpush1.msra.mxu0 0.0
    %3453 = vmatprep.subr.mxu0 0.0
    %3454 = vmatpush1.msra.mxu0 0.0
    %3455 = vmatprep.subr.mxu0 0.0
    %3456 = vmatpush1.msra.mxu0 0.0
    %3457 = vmatprep.subr.mxu0 0.0
    %3458 = vmatpush1.msra.mxu0 0.0
    %3459 = vmatprep.subr.mxu0 0.0
    %3460 = vmatpush1.msra.mxu0 0.0
    %3461 = vmatprep.subr.mxu0 0.0
    %3462 = vmatpush1.msra.mxu0 0.0
    %3463 = vmatprep.subr.mxu0 0.0
    %3464 = vmatpush1.msra.mxu0 0.0
    %3465 = vmatprep.subr.mxu0 0.0
    %3466 = vmatpush1.msra.mxu0 0.0
    %3467 = vmatprep.subr.mxu0 0.0
    %3468 = vmatpush1.msra.mxu0 0.0
    %3469 = vmatprep.subr.mxu0 0.0
    %3470 = vmatpush1.msra.mxu0 0.0
    %3471 = vmatprep.subr.mxu0 0.0
    %3472 = vmatpush1.msra.mxu0 0.0
    %3473 = vmatprep.mubr.f32.mxu0 0.0
    %3474 = vmatmul.mubr.f32.gmra.mrb[0].mxu0 %v3327
    %v3475 = vpop.f32.mrb[0].mxu0
    %v3476 = vadd.f32 0.0, %v3475
    %v3477 = vpop.f32.mrb[0].mxu0
    %v3478 = vadd.f32 0.0, %v3477
    %3479 = vmatprep.mubr.f32.mxu0 0.0
    %3480 = vmatmul.mubr.f32.gmra.mrb[0].mxu0 %v3330
    %v3481 = vpop.f32.mrb[0].mxu0
    %v3482 = vadd.f32 0.0, %v3481
    %v3483 = vpop.f32.mrb[0].mxu0
    %v3484 = vadd.f32 0.0, %v3483
    %3485 = vdwg.mxu0
    %v3486 = vadd.f32 %v3318, %v3399
    %v3487 = vadd.f32 %v3319, %v3401
    %v3488 = vadd.f32 %v3320, %v3476
    %v3489 = vadd.f32 %v3321, %v3478
    %v3490 = vadd.f32 %v3322, %v3405
    %v3491 = vadd.f32 %v3323, %v3407
    %v3492 = vadd.f32 %v3324, %v3482
    %v3493 = vadd.f32 %v3325, %v3484
    %3494 = vst [vmem:[%s19] sm:$0xff] %v3486
    %3495 = vst [vmem:[%s19 + $0x8] sm:$0xff] %v3487
    %3496 = vst [vmem:[%s19 + $0x10] sm:$0xff] %v3488
    %3497 = vst [vmem:[%s19 + $0x18] sm:$0xff] %v3489
    %3498 = vst [vmem:[%s19 + $0x20] sm:$0xff] %v3490
    %3499 = vst [vmem:[%s19 + $0x28] sm:$0xff] %v3491
    %3500 = vst [vmem:[%s19 + $0x30] sm:$0xff] %v3492
    %3501 = vst [vmem:[%s19 + $0x38] sm:$0xff] %v3493
    // Predicated region
    $region82: #{input_block_forward.1} parent=1 // pred_check
      _
    $region83: #{input_block_forward.1} parent=1 // pred_check_branch
      %3503 = sbr.rel (0) target = $region85
    $region84: #{input_block_forward.1} parent=1 // pred_region
      _
    $region85: #{input_block_forward.1} parent=1 // pred_fallthru
      _
    // Predicated region
    $region86: #{input_block_forward.1} parent=1 // pred_check
      _
    $region87: #{input_block_forward.1} parent=1 // pred_check_branch
      %3505 = sbr.rel (0) target = $region89
    $region88: #{input_block_forward.1} parent=1 // pred_region
      _
    $region89: #{input_block_forward.1} parent=1 // pred_fallthru
      _
    %3506 = vsyncpa [#allocation3], 1

</llo_original>
